<compile_context>
chip_gen: v7x
topology: tpu7x:2x2x1
jax: 0.10.0
libtpu: 0.0.40
codegen_flags: <defaults>
</compile_context>

<pallas_src>
import functools
import math

import jax
import jax.numpy as jnp
from jax.experimental import pallas as pl
from jax.experimental.pallas import tpu as pltpu

MASKING_VALUE = -1e15
VMEM_LIMIT = 48 * 1024 * 1024   # well below v7x's 64 MiB physical VMEM; usage here is ~1 MiB


# --------------------------------------------------------------------------- fused decoder kernel
def _decoder_kernel(
    ids_ref,                       # (N,) int32 SMEM (scalar prefetch): token ids
    emb_ref,                       # (V, D) f32 embedding table (VMEM resident across layers)
    mq_ref,                        # (N, 1) f32 query-validity mask (1 = not padded)
    bias_ref,                      # (N, N) f32 additive bias: window & same-batch & key padding
    pe_ref,                        # (N, D) f32 sinusoidal positional encoding (tiled per batch)
    g1_ref, bt1_ref,               # (1, 1, D) LN1 gamma / beta           (current layer)
    wqkv_ref, bqkv_ref,            # (1, D, 3D) bf16 / (1, 1, 3D) f32     (Wq pre-scaled by 1/sqrt(dk))
    wo_ref, bo_ref,                # (1, D, D)  bf16 / (1, 1, D)  f32
    g2_ref, bt2_ref,               # (1, 1, D) LN2 gamma / beta
    w1_ref, bf1_ref,               # (1, D, F)  bf16 / (1, 1, F)  f32
    w2_ref, bf2_ref,               # (1, F, D)  bf16 / (1, 1, D)  f32
    o_ref,                         # (N, D) f32 output block == layer-to-layer activation carry
    *, n_heads, n_rows,
):
    l = pl.program_id(0)

    # ----- layer 0 only: fused embedding gather straight into the activation carry.
    # Vocab is small, so the full table stays VMEM-resident and rows are copied by dynamic index.
    # TODO(synk): for large vocabularies keep the table in HBM (memory_space=pl.ANY) and issue
    #             manual make_async_copy row gathers instead of a VMEM-resident table.
    @pl.when(l == 0)
    def _():
        @pl.loop(0, n_rows)
        def _(i):
            o_ref[pl.ds(i, 1), :] = emb_ref[pl.ds(ids_ref[i], 1), :]

    x = o_ref[...]                                  # (N, D) f32, carried across the layer axis
    _, D = x.shape
    dk = D // n_heads

    mq = mq_ref[...]                                # (N, 1)
    bias = bias_ref[...]                            # (N, N)
    pe = pe_ref[...]                                # (N, D)

    def layer_norm(z, g, b):                        # f32 elementwise (v5e has no bf16 VPU)
        mu = jnp.mean(z, axis=-1, keepdims=True)
        var = jnp.mean((z - mu) ** 2, axis=-1, keepdims=True)
        return (z - mu) * jax.lax.rsqrt(var + 1e-5) * g + b

    # --- sublayer 1: LN -> + positional encoding -> truncated MHSA -> residual
    xn = layer_norm(x, g1_ref[0], bt1_ref[0])
    xp = (xn + pe).astype(jnp.bfloat16)             # bf16 only at the MXU boundary

    qkv = jnp.dot(xp, wqkv_ref[0], preferred_element_type=jnp.float32) + bqkv_ref[0]
    qkv = qkv.astype(jnp.bfloat16)                  # (N, 3D)
    q = qkv[:, 0 * D:1 * D]
    k = qkv[:, 1 * D:2 * D]
    v = qkv[:, 2 * D:3 * D]

    # per-head contexts assembled in registers; single concat + single Wo matmul afterwards
    ctxs = []
    for hh in range(n_heads):                       # static unroll over heads
        lo = hh * dk
        s = jnp.einsum("qd,kd->qk", q[:, lo:lo + dk], k[:, lo:lo + dk],
                       preferred_element_type=jnp.float32)
        s = s + bias                                # 1/sqrt(dk) already folded into Wq / bq
        s = s - jnp.max(s, axis=-1, keepdims=True)
        p = jnp.exp(s)
        p = p * pl.reciprocal(jnp.sum(p, axis=-1, keepdims=True), approx=True)
        ctxs.append(jnp.dot(p.astype(jnp.bfloat16), v[:, lo:lo + dk],
                            preferred_element_type=jnp.float32))
    ctx = jnp.concatenate(ctxs, axis=-1)            # (N, D) f32, lives in vregs

    attn = jnp.dot(ctx.astype(jnp.bfloat16), wo_ref[0],
                   preferred_element_type=jnp.float32) + bo_ref[0]
    h1 = x + mq * attn                              # zero attention contribution on pad rows

    # --- sublayer 2: LN -> position-wise FFN -> residual
    hn = layer_norm(h1, g2_ref[0], bt2_ref[0])
    ff = jnp.dot(hn.astype(jnp.bfloat16), w1_ref[0],
                 preferred_element_type=jnp.float32) + bf1_ref[0]
    ff = jnp.maximum(ff, 0.0)
    ff = jnp.dot(ff.astype(jnp.bfloat16), w2_ref[0],
                 preferred_element_type=jnp.float32) + bf2_ref[0]

    o_ref[...] = (h1 + ff).astype(o_ref.dtype)      # next layer reads this back (resident block)


def decoder_forward(flat_ids, emb_table, mq, bias, pe, s, *, n_heads):
    """Single pallas_call: grid=(L,), stacked weights streamed once, activation kept in VMEM."""
    N = flat_ids.shape[0]
    V, D = emb_table.shape
    L = s["wqkv"].shape[0]
    F = s["w1"].shape[2]

    def wspec(*dims):        # per-layer stacked weight; block index advances with l
        nd = len(dims)
        return pl.BlockSpec((1,) + dims, lambda l, ids, _nd=nd: (l,) + (0,) * _nd)

    def const2(shape):       # whole-array block, DMA'd once and resident across the layer loop
        return pl.BlockSpec(shape, lambda l, ids: (0, 0))

    kernel = functools.partial(_decoder_kernel, n_heads=n_heads, n_rows=N)
    return pl.pallas_call(
        kernel,
        out_shape=jax.ShapeDtypeStruct((N, D), jnp.float32),
        grid_spec=pltpu.PrefetchScalarGridSpec(
            num_scalar_prefetch=1,                   # token ids -> SMEM, drive the l==0 gather
            grid=(L,),
            in_specs=[
                const2((V, D)),                      # embedding table
                const2((N, 1)),                      # query validity mask
                const2((N, N)),                      # combined additive attention bias
                const2((N, D)),                      # positional encoding
                wspec(1, D), wspec(1, D),            # LN1 gamma / beta
                wspec(D, 3 * D), wspec(1, 3 * D),    # fused Wqkv / bqkv
                wspec(D, D), wspec(1, D),            # Wo / bo
                wspec(1, D), wspec(1, D),            # LN2 gamma / beta
                wspec(D, F), wspec(1, F),            # W1 / b1
                wspec(F, D), wspec(1, D),            # W2 / b2
            ],
            out_specs=pl.BlockSpec((N, D), lambda l, ids: (0, 0)),   # resident carry
        ),
        compiler_params=pltpu.CompilerParams(
            dimension_semantics=("arbitrary",),      # layer axis is a sequential carry
            vmem_limit_bytes=VMEM_LIMIT,
        ),
    )(
        flat_ids, emb_table, mq, bias, pe,
        s["g1"], s["bt1"], s["wqkv"], s["bqkv"], s["wo"], s["bo"],
        s["g2"], s["bt2"], s["w1"], s["bf1"], s["w2"], s["bf2"],
    )


# --------------------------------------------------------------------------- full decoder forward
def transformer_transducer_decoder(ids, mask, emb_table, stacked_params, pos_enc,
                                   *, n_heads, left_size, right_size):
    B, M = ids.shape
    D = emb_table.shape[1]
    assert D % n_heads == 0
    N = B * M

    # lengths = mask.sum(dim=-1)  (trivial glue reduction in plain JAX)
    lengths = jnp.sum(mask.astype(jnp.int32), axis=-1)

    flat_ids = ids.reshape(N).astype(jnp.int32)
    mq = mask.astype(jnp.float32).reshape(N, 1)

    # Combined additive attention bias, computed ONCE host-side:
    #   truncated [left, right] window (on local positions), same-batch block diagonal
    #   (rows of different batch elements never attend to each other after the batch fold),
    #   and key-padding validity.
    pos = jnp.arange(N)
    b_id = pos // M
    loc = pos % M
    same_b = b_id[:, None] == b_id[None, :]
    window = ((loc[None, :] >= loc[:, None] - left_size) &
              (loc[None, :] <= loc[:, None] + right_size))
    key_ok = mask.reshape(N)[None, :]
    bias = jnp.where(same_b & window & key_ok, 0.0, MASKING_VALUE).astype(jnp.float32)

    pe = jnp.tile(pos_enc, (B, 1)).astype(jnp.float32)      # (N, D)

    out = decoder_forward(flat_ids, emb_table, mq, bias, pe, stacked_params, n_heads=n_heads)
    return out.reshape(B, M, D), lengths


# --------------------------------------------------------------------------- setup helpers
def sinusoidal_pos_enc(max_len, d_model):
    pos = jnp.arange(max_len, dtype=jnp.float32)[:, None]
    i = jnp.arange(d_model // 2, dtype=jnp.float32)[None, :]
    angle = pos / jnp.power(10000.0, 2.0 * i / d_model)
    pe = jnp.zeros((max_len, d_model), jnp.float32)
    pe = pe.at[:, 0::2].set(jnp.sin(angle))
    pe = pe.at[:, 1::2].set(jnp.cos(angle))
    return pe


def init_layer_params(key, d_model, ff_size):
    ks = jax.random.split(key, 6)
    s = 1.0 / math.sqrt(d_model)
    sf = 1.0 / math.sqrt(ff_size)
    f32 = jnp.float32
    return {
        "g1": jnp.ones((1, d_model), f32), "bt1": jnp.zeros((1, d_model), f32),
        "wq": (jax.random.normal(ks[0], (d_model, d_model)) * s).astype(f32),
        "bq": jnp.zeros((1, d_model), f32),
        "wk": (jax.random.normal(ks[1], (d_model, d_model)) * s).astype(f32),
        "bk": jnp.zeros((1, d_model), f32),
        "wv": (jax.random.normal(ks[2], (d_model, d_model)) * s).astype(f32),
        "bv": jnp.zeros((1, d_model), f32),
        "wo": (jax.random.normal(ks[3], (d_model, d_model)) * s).astype(f32),
        "bo": jnp.zeros((1, d_model), f32),
        "g2": jnp.ones((1, d_model), f32), "bt2": jnp.zeros((1, d_model), f32),
        "w1": (jax.random.normal(ks[4], (d_model, ff_size)) * s).astype(f32),
        "bf1": jnp.zeros((1, ff_size), f32),
        "w2": (jax.random.normal(ks[5], (ff_size, d_model)) * sf).astype(f32),
        "bf2": jnp.zeros((1, d_model), f32),
    }


def stack_layer_params(layer_params, n_heads):
    """Stack params along a leading L axis, fuse Q/K/V, fold 1/sqrt(dk) into Wq/bq (one-time
    host transform), and store matmul weights in bf16 (MXU-native)."""
    d_model = layer_params[0]["wq"].shape[0]
    scale = 1.0 / math.sqrt(d_model // n_heads)
    f32, bf16 = jnp.float32, jnp.bfloat16

    def stack(k):
        return jnp.stack([p[k] for p in layer_params], axis=0)

    wqkv = jnp.concatenate([stack("wq") * scale, stack("wk"), stack("wv")], axis=-1)
    bqkv = jnp.concatenate([stack("bq") * scale, stack("bk"), stack("bv")], axis=-1)
    return {
        "g1": stack("g1").astype(f32), "bt1": stack("bt1").astype(f32),
        "wqkv": wqkv.astype(bf16), "bqkv": bqkv.astype(f32),
        "wo": stack("wo").astype(bf16), "bo": stack("bo").astype(f32),
        "g2": stack("g2").astype(f32), "bt2": stack("bt2").astype(f32),
        "w1": stack("w1").astype(bf16), "bf1": stack("bf1").astype(f32),
        "w2": stack("w2").astype(bf16), "bf2": stack("bf2").astype(f32),
    }


if __name__ == "__main__":
    # lane/sublane-friendly demo shapes: B*M = 128 rows, d_model / ff multiples of 128
    B, M = 2, 64
    vocab_size = 32
    n_layers = 3
    d_model = 128
    ff_size = 256
    n_heads = 4
    left_size, right_size = 6, 2
    # p_dropout is part of the module signature but dropout is identity at inference.

    key = jax.random.PRNGKey(0)
    k_emb, k_layers, k_ids = jax.random.split(key, 3)

    emb_table = (jax.random.normal(k_emb, (vocab_size, d_model)) * 0.1).astype(jnp.float32)
    layer_params = [init_layer_params(k, d_model, ff_size)
                    for k in jax.random.split(k_layers, n_layers)]
    stacked = stack_layer_params(layer_params, n_heads)
    pos_enc = sinusoidal_pos_enc(M, d_model)

    ids = jax.random.randint(k_ids, (B, M), 0, vocab_size, dtype=jnp.int32)
    seq_lens = jnp.array([64, 45], dtype=jnp.int32)
    mask = jnp.arange(M)[None, :] < seq_lens[:, None]          # [B, M] bool, True = not padded

    out, lengths = transformer_transducer_decoder(
        ids, mask, emb_table, stacked, pos_enc,
        n_heads=n_heads, left_size=left_size, right_size=right_size,
    )
    out = jax.block_until_ready(out)
    lengths = jax.block_until_ready(lengths)

    assert out.shape == (B, M, d_model)
    assert lengths.shape == (B,)
    assert bool(jnp.all(lengths == seq_lens))
    assert bool(jnp.all(jnp.isfinite(out)))
    print("KERNEL_OK")
</pallas_src>

<mosaic_0001>
module attributes {stable_mosaic.version = 11 : i64} {
  func.func @_decoder_kernel(%arg0: i32, %arg1: memref<128xi32, #tpu.memory_space<smem>>, %arg2: memref<32x128xf32, #tpu.memory_space<vmem>>, %arg3: memref<128x1xf32, #tpu.memory_space<vmem>>, %arg4: memref<128x128xf32, #tpu.memory_space<vmem>>, %arg5: memref<128x128xf32, #tpu.memory_space<vmem>>, %arg6: memref<1x1x128xf32, #tpu.memory_space<vmem>>, %arg7: memref<1x1x128xf32, #tpu.memory_space<vmem>>, %arg8: memref<1x128x384xbf16, #tpu.memory_space<vmem>>, %arg9: memref<1x1x384xf32, #tpu.memory_space<vmem>>, %arg10: memref<1x128x128xbf16, #tpu.memory_space<vmem>>, %arg11: memref<1x1x128xf32, #tpu.memory_space<vmem>>, %arg12: memref<1x1x128xf32, #tpu.memory_space<vmem>>, %arg13: memref<1x1x128xf32, #tpu.memory_space<vmem>>, %arg14: memref<1x128x256xbf16, #tpu.memory_space<vmem>>, %arg15: memref<1x1x256xf32, #tpu.memory_space<vmem>>, %arg16: memref<1x256x128xbf16, #tpu.memory_space<vmem>>, %arg17: memref<1x1x128xf32, #tpu.memory_space<vmem>>, %arg18: memref<128x128xf32, #tpu.memory_space<vmem>>) attributes {dimension_semantics = [#tpu.dimension_semantics<arbitrary>], iteration_bounds = array<i64: 3>, scalar_prefetch = 1 : i64, scratch_operands = 0 : i64, tpu.core_type = #tpu.core_type<tc>, window_params = [{pipeline_mode = #tpu.pipeline_mode<synchronous>, transform_indices = @transform_0, window_bounds = array<i64: 32, 128>}, {pipeline_mode = #tpu.pipeline_mode<synchronous>, transform_indices = @transform_1, window_bounds = array<i64: 128, 1>}, {pipeline_mode = #tpu.pipeline_mode<synchronous>, transform_indices = @transform_2, window_bounds = array<i64: 128, 128>}, {pipeline_mode = #tpu.pipeline_mode<synchronous>, transform_indices = @transform_3, window_bounds = array<i64: 128, 128>}, {transform_indices = @transform_4, window_bounds = array<i64: 1, 1, 128>}, {transform_indices = @transform_5, window_bounds = array<i64: 1, 1, 128>}, {transform_indices = @transform_6, window_bounds = array<i64: 1, 128, 384>}, {transform_indices = @transform_7, window_bounds = array<i64: 1, 1, 384>}, {transform_indices = @transform_8, window_bounds = array<i64: 1, 128, 128>}, {transform_indices = @transform_9, window_bounds = array<i64: 1, 1, 128>}, {transform_indices = @transform_10, window_bounds = array<i64: 1, 1, 128>}, {transform_indices = @transform_11, window_bounds = array<i64: 1, 1, 128>}, {transform_indices = @transform_12, window_bounds = array<i64: 1, 128, 256>}, {transform_indices = @transform_13, window_bounds = array<i64: 1, 1, 256>}, {transform_indices = @transform_14, window_bounds = array<i64: 1, 256, 128>}, {transform_indices = @transform_15, window_bounds = array<i64: 1, 1, 128>}, {pipeline_mode = #tpu.pipeline_mode<synchronous>, transform_indices = @transform_16, window_bounds = array<i64: 128, 128>}]} {
    %c0_i32 = arith.constant 0 : i32
    %0 = arith.cmpi eq, %arg0, %c0_i32 : i32
    %1 = arith.extui %0 : i1 to i32
    %c0_i32_0 = arith.constant 0 : i32
    %2 = arith.cmpi ne, %1, %c0_i32_0 : i32
    scf.if %2 {
      %c0_i32_76 = arith.constant 0 : i32
      %c128_i32 = arith.constant 128 : i32
      %172 = arith.addi %c0_i32_76, %c128_i32 : i32
      %c1_i32 = arith.constant 1 : i32
      scf.for %arg19 = %c0_i32_76 to %172 step %c1_i32  : i32 {
        %c1_i32_78 = arith.constant 1 : i32
        %173 = arith.muli %arg19, %c1_i32_78 : i32
        %c0_i32_79 = arith.constant 0 : i32
        %174 = arith.addi %c0_i32_79, %173 : i32
        %175 = arith.index_cast %174 : i32 to index
        %176 = memref.load %arg1[%175] : memref<128xi32, #tpu.memory_space<smem>>
        %177 = arith.index_cast %176 : i32 to index
        %c0_80 = arith.constant 0 : index
        %178 = vector.load %arg2[%177, %c0_80] : memref<32x128xf32, #tpu.memory_space<vmem>>, vector<1x128xf32>
        %179 = arith.index_cast %174 : i32 to index
        %c0_81 = arith.constant 0 : index
        %180 = vector.load %arg18[%179, %c0_81] : memref<128x128xf32, #tpu.memory_space<vmem>>, vector<1x128xf32>
        tpu.vector_store %arg18[%179, %c0_81], %178 {strides = array<i32>} : memref<128x128xf32, #tpu.memory_space<vmem>>, vector<1x128xf32>,
      }
      %c128_i32_77 = arith.constant 128 : i32
    } else {
    }
    %c0 = arith.constant 0 : index
    %c0_1 = arith.constant 0 : index
    %3 = vector.load %arg18[%c0, %c0_1] : memref<128x128xf32, #tpu.memory_space<vmem>>, vector<128x128xf32>
    %c0_2 = arith.constant 0 : index
    %c0_3 = arith.constant 0 : index
    %4 = vector.load %arg3[%c0_2, %c0_3] : memref<128x1xf32, #tpu.memory_space<vmem>>, vector<128x1xf32>
    %c0_4 = arith.constant 0 : index
    %c0_5 = arith.constant 0 : index
    %5 = vector.load %arg4[%c0_4, %c0_5] : memref<128x128xf32, #tpu.memory_space<vmem>>, vector<128x128xf32>
    %c0_6 = arith.constant 0 : index
    %c0_7 = arith.constant 0 : index
    %6 = vector.load %arg5[%c0_6, %c0_7] : memref<128x128xf32, #tpu.memory_space<vmem>>, vector<128x128xf32>
    %c0_8 = arith.constant 0 : index
    %c0_9 = arith.constant 0 : index
    %c0_10 = arith.constant 0 : index
    %7 = vector.load %arg6[%c0_8, %c0_9, %c0_10] : memref<1x1x128xf32, #tpu.memory_space<vmem>>, vector<1x1x128xf32>
    %8 = vector.shape_cast %7 : vector<1x1x128xf32> to vector<1x128xf32>
    %c0_11 = arith.constant 0 : index
    %c0_12 = arith.constant 0 : index
    %c0_13 = arith.constant 0 : index
    %9 = vector.load %arg7[%c0_11, %c0_12, %c0_13] : memref<1x1x128xf32, #tpu.memory_space<vmem>>, vector<1x1x128xf32>
    %10 = vector.shape_cast %9 : vector<1x1x128xf32> to vector<1x128xf32>
    %cst = arith.constant dense<0.000000e+00> : vector<128xf32>
    %11 = vector.multi_reduction <add>, %3, %cst [1] : vector<128x128xf32> to vector<128xf32>
    %12 = vector.shape_cast %11 : vector<128xf32> to vector<128x1xf32>
    %cst_14 = arith.constant 1.280000e+02 : f32
    %13 = vector.broadcast %cst_14 : f32 to vector<128x1xf32>
    %14 = arith.divf %12, %13 : vector<128x1xf32>
    %15 = vector.broadcast %14 : vector<128x1xf32> to vector<128x128xf32>
    %16 = arith.subf %3, %15 : vector<128x128xf32>
    %17 = arith.mulf %16, %16 : vector<128x128xf32>
    %cst_15 = arith.constant dense<0.000000e+00> : vector<128xf32>
    %18 = vector.multi_reduction <add>, %17, %cst_15 [1] : vector<128x128xf32> to vector<128xf32>
    %19 = vector.shape_cast %18 : vector<128xf32> to vector<128x1xf32>
    %cst_16 = arith.constant 1.280000e+02 : f32
    %20 = vector.broadcast %cst_16 : f32 to vector<128x1xf32>
    %21 = arith.divf %19, %20 : vector<128x1xf32>
    %22 = vector.broadcast %14 : vector<128x1xf32> to vector<128x128xf32>
    %23 = arith.subf %3, %22 : vector<128x128xf32>
    %cst_17 = arith.constant 9.99999974E-6 : f32
    %24 = vector.broadcast %cst_17 : f32 to vector<128x1xf32>
    %25 = arith.addf %21, %24 : vector<128x1xf32>
    %26 = math.rsqrt %25 : vector<128x1xf32>
    %27 = vector.broadcast %26 : vector<128x1xf32> to vector<128x128xf32>
    %28 = arith.mulf %23, %27 : vector<128x128xf32>
    %29 = vector.broadcast %8 : vector<1x128xf32> to vector<128x128xf32>
    %30 = arith.mulf %28, %29 : vector<128x128xf32>
    %31 = vector.broadcast %10 : vector<1x128xf32> to vector<128x128xf32>
    %32 = arith.addf %30, %31 : vector<128x128xf32>
    %33 = arith.addf %32, %6 : vector<128x128xf32>
    %34 = arith.truncf %33 : vector<128x128xf32> to vector<128x128xbf16>
    %c0_18 = arith.constant 0 : index
    %c0_19 = arith.constant 0 : index
    %c0_20 = arith.constant 0 : index
    %35 = vector.load %arg8[%c0_18, %c0_19, %c0_20] : memref<1x128x384xbf16, #tpu.memory_space<vmem>>, vector<1x128x384xbf16>
    %36 = vector.shape_cast %35 : vector<1x128x384xbf16> to vector<128x384xbf16>
    %cst_21 = arith.constant dense<0.000000e+00> : vector<128x384xf32>
    %37 = tpu.matmul %34, %36, %cst_21 {dimension_numbers = #tpu.dot_dimension_numbers<[1], [0], [0], [1], [0, 0, 1, 1], [], []>} : vector<128x128xbf16>, vector<128x384xbf16>, vector<128x384xf32> -> vector<128x384xf32>
    %c0_22 = arith.constant 0 : index
    %c0_23 = arith.constant 0 : index
    %c0_24 = arith.constant 0 : index
    %38 = vector.load %arg9[%c0_22, %c0_23, %c0_24] : memref<1x1x384xf32, #tpu.memory_space<vmem>>, vector<1x1x384xf32>
    %39 = vector.shape_cast %38 : vector<1x1x384xf32> to vector<1x384xf32>
    %40 = vector.broadcast %39 : vector<1x384xf32> to vector<128x384xf32>
    %41 = arith.addf %37, %40 : vector<128x384xf32>
    %42 = arith.truncf %41 : vector<128x384xf32> to vector<128x384xbf16>
    %43 = vector.extract_strided_slice %42 {offsets = [0, 0], sizes = [128, 128], strides = [1, 1]} : vector<128x384xbf16> to vector<128x128xbf16>
    %44 = vector.extract_strided_slice %42 {offsets = [0, 128], sizes = [128, 128], strides = [1, 1]} : vector<128x384xbf16> to vector<128x128xbf16>
    %45 = vector.extract_strided_slice %42 {offsets = [0, 256], sizes = [128, 128], strides = [1, 1]} : vector<128x384xbf16> to vector<128x128xbf16>
    %46 = vector.extract_strided_slice %43 {offsets = [0, 0], sizes = [128, 32], strides = [1, 1]} : vector<128x128xbf16> to vector<128x32xbf16>
    %47 = vector.extract_strided_slice %44 {offsets = [0, 0], sizes = [128, 32], strides = [1, 1]} : vector<128x128xbf16> to vector<128x32xbf16>
    "tpu.trace_start"() <{level = 10 : i32, message = "qd,kd->qk"}> : () -> ()
    %cst_25 = arith.constant dense<0.000000e+00> : vector<128x128xf32>
    %48 = tpu.matmul %46, %47, %cst_25 {dimension_numbers = #tpu.dot_dimension_numbers<[1], [1], [0], [0], [0, 0, 1, 0], [], []>} : vector<128x32xbf16>, vector<128x32xbf16>, vector<128x128xf32> -> vector<128x128xf32>
    "tpu.trace_stop"() : () -> ()
    %49 = arith.addf %48, %5 : vector<128x128xf32>
    %cst_26 = arith.constant dense<0xFF800000> : vector<128xf32>
    %50 = vector.multi_reduction <maximumf>, %49, %cst_26 [1] : vector<128x128xf32> to vector<128xf32>
    %51 = vector.shape_cast %50 : vector<128xf32> to vector<128x1xf32>
    %52 = vector.broadcast %51 : vector<128x1xf32> to vector<128x128xf32>
    %53 = arith.subf %49, %52 : vector<128x128xf32>
    %54 = math.exp %53 : vector<128x128xf32>
    %cst_27 = arith.constant dense<0.000000e+00> : vector<128xf32>
    %55 = vector.multi_reduction <add>, %54, %cst_27 [1] : vector<128x128xf32> to vector<128xf32>
    %56 = vector.shape_cast %55 : vector<128xf32> to vector<128x1xf32>
    %57 = tpu.reciprocal %56 {approx = true} : vector<128x1xf32> -> vector<128x1xf32>
    %58 = vector.broadcast %57 : vector<128x1xf32> to vector<128x128xf32>
    %59 = arith.mulf %54, %58 : vector<128x128xf32>
    %60 = arith.truncf %59 : vector<128x128xf32> to vector<128x128xbf16>
    %61 = vector.extract_strided_slice %45 {offsets = [0, 0], sizes = [128, 32], strides = [1, 1]} : vector<128x128xbf16> to vector<128x32xbf16>
    %cst_28 = arith.constant dense<0.000000e+00> : vector<128x32xf32>
    %62 = tpu.matmul %60, %61, %cst_28 {dimension_numbers = #tpu.dot_dimension_numbers<[1], [0], [0], [1], [0, 0, 1, 1], [], []>} : vector<128x128xbf16>, vector<128x32xbf16>, vector<128x32xf32> -> vector<128x32xf32>
    %63 = vector.extract_strided_slice %43 {offsets = [0, 32], sizes = [128, 32], strides = [1, 1]} : vector<128x128xbf16> to vector<128x32xbf16>
    %64 = vector.extract_strided_slice %44 {offsets = [0, 32], sizes = [128, 32], strides = [1, 1]} : vector<128x128xbf16> to vector<128x32xbf16>
    "tpu.trace_start"() <{level = 10 : i32, message = "qd,kd->qk"}> : () -> ()
    %cst_29 = arith.constant dense<0.000000e+00> : vector<128x128xf32>
    %65 = tpu.matmul %63, %64, %cst_29 {dimension_numbers = #tpu.dot_dimension_numbers<[1], [1], [0], [0], [0, 0, 1, 0], [], []>} : vector<128x32xbf16>, vector<128x32xbf16>, vector<128x128xf32> -> vector<128x128xf32>
    "tpu.trace_stop"() : () -> ()
    %66 = arith.addf %65, %5 : vector<128x128xf32>
    %cst_30 = arith.constant dense<0xFF800000> : vector<128xf32>
    %67 = vector.multi_reduction <maximumf>, %66, %cst_30 [1] : vector<128x128xf32> to vector<128xf32>
    %68 = vector.shape_cast %67 : vector<128xf32> to vector<128x1xf32>
    %69 = vector.broadcast %68 : vector<128x1xf32> to vector<128x128xf32>
    %70 = arith.subf %66, %69 : vector<128x128xf32>
    %71 = math.exp %70 : vector<128x128xf32>
    %cst_31 = arith.constant dense<0.000000e+00> : vector<128xf32>
    %72 = vector.multi_reduction <add>, %71, %cst_31 [1] : vector<128x128xf32> to vector<128xf32>
    %73 = vector.shape_cast %72 : vector<128xf32> to vector<128x1xf32>
    %74 = tpu.reciprocal %73 {approx = true} : vector<128x1xf32> -> vector<128x1xf32>
    %75 = vector.broadcast %74 : vector<128x1xf32> to vector<128x128xf32>
    %76 = arith.mulf %71, %75 : vector<128x128xf32>
    %77 = arith.truncf %76 : vector<128x128xf32> to vector<128x128xbf16>
    %78 = vector.extract_strided_slice %45 {offsets = [0, 32], sizes = [128, 32], strides = [1, 1]} : vector<128x128xbf16> to vector<128x32xbf16>
    %cst_32 = arith.constant dense<0.000000e+00> : vector<128x32xf32>
    %79 = tpu.matmul %77, %78, %cst_32 {dimension_numbers = #tpu.dot_dimension_numbers<[1], [0], [0], [1], [0, 0, 1, 1], [], []>} : vector<128x128xbf16>, vector<128x32xbf16>, vector<128x32xf32> -> vector<128x32xf32>
    %80 = vector.extract_strided_slice %43 {offsets = [0, 64], sizes = [128, 32], strides = [1, 1]} : vector<128x128xbf16> to vector<128x32xbf16>
    %81 = vector.extract_strided_slice %44 {offsets = [0, 64], sizes = [128, 32], strides = [1, 1]} : vector<128x128xbf16> to vector<128x32xbf16>
    "tpu.trace_start"() <{level = 10 : i32, message = "qd,kd->qk"}> : () -> ()
    %cst_33 = arith.constant dense<0.000000e+00> : vector<128x128xf32>
    %82 = tpu.matmul %80, %81, %cst_33 {dimension_numbers = #tpu.dot_dimension_numbers<[1], [1], [0], [0], [0, 0, 1, 0], [], []>} : vector<128x32xbf16>, vector<128x32xbf16>, vector<128x128xf32> -> vector<128x128xf32>
    "tpu.trace_stop"() : () -> ()
    %83 = arith.addf %82, %5 : vector<128x128xf32>
    %cst_34 = arith.constant dense<0xFF800000> : vector<128xf32>
    %84 = vector.multi_reduction <maximumf>, %83, %cst_34 [1] : vector<128x128xf32> to vector<128xf32>
    %85 = vector.shape_cast %84 : vector<128xf32> to vector<128x1xf32>
    %86 = vector.broadcast %85 : vector<128x1xf32> to vector<128x128xf32>
    %87 = arith.subf %83, %86 : vector<128x128xf32>
    %88 = math.exp %87 : vector<128x128xf32>
    %cst_35 = arith.constant dense<0.000000e+00> : vector<128xf32>
    %89 = vector.multi_reduction <add>, %88, %cst_35 [1] : vector<128x128xf32> to vector<128xf32>
    %90 = vector.shape_cast %89 : vector<128xf32> to vector<128x1xf32>
    %91 = tpu.reciprocal %90 {approx = true} : vector<128x1xf32> -> vector<128x1xf32>
    %92 = vector.broadcast %91 : vector<128x1xf32> to vector<128x128xf32>
    %93 = arith.mulf %88, %92 : vector<128x128xf32>
    %94 = arith.truncf %93 : vector<128x128xf32> to vector<128x128xbf16>
    %95 = vector.extract_strided_slice %45 {offsets = [0, 64], sizes = [128, 32], strides = [1, 1]} : vector<128x128xbf16> to vector<128x32xbf16>
    %cst_36 = arith.constant dense<0.000000e+00> : vector<128x32xf32>
    %96 = tpu.matmul %94, %95, %cst_36 {dimension_numbers = #tpu.dot_dimension_numbers<[1], [0], [0], [1], [0, 0, 1, 1], [], []>} : vector<128x128xbf16>, vector<128x32xbf16>, vector<128x32xf32> -> vector<128x32xf32>
    %97 = vector.extract_strided_slice %43 {offsets = [0, 96], sizes = [128, 32], strides = [1, 1]} : vector<128x128xbf16> to vector<128x32xbf16>
    %98 = vector.extract_strided_slice %44 {offsets = [0, 96], sizes = [128, 32], strides = [1, 1]} : vector<128x128xbf16> to vector<128x32xbf16>
    "tpu.trace_start"() <{level = 10 : i32, message = "qd,kd->qk"}> : () -> ()
    %cst_37 = arith.constant dense<0.000000e+00> : vector<128x128xf32>
    %99 = tpu.matmul %97, %98, %cst_37 {dimension_numbers = #tpu.dot_dimension_numbers<[1], [1], [0], [0], [0, 0, 1, 0], [], []>} : vector<128x32xbf16>, vector<128x32xbf16>, vector<128x128xf32> -> vector<128x128xf32>
    "tpu.trace_stop"() : () -> ()
    %100 = arith.addf %99, %5 : vector<128x128xf32>
    %cst_38 = arith.constant dense<0xFF800000> : vector<128xf32>
    %101 = vector.multi_reduction <maximumf>, %100, %cst_38 [1] : vector<128x128xf32> to vector<128xf32>
    %102 = vector.shape_cast %101 : vector<128xf32> to vector<128x1xf32>
    %103 = vector.broadcast %102 : vector<128x1xf32> to vector<128x128xf32>
    %104 = arith.subf %100, %103 : vector<128x128xf32>
    %105 = math.exp %104 : vector<128x128xf32>
    %cst_39 = arith.constant dense<0.000000e+00> : vector<128xf32>
    %106 = vector.multi_reduction <add>, %105, %cst_39 [1] : vector<128x128xf32> to vector<128xf32>
    %107 = vector.shape_cast %106 : vector<128xf32> to vector<128x1xf32>
    %108 = tpu.reciprocal %107 {approx = true} : vector<128x1xf32> -> vector<128x1xf32>
    %109 = vector.broadcast %108 : vector<128x1xf32> to vector<128x128xf32>
    %110 = arith.mulf %105, %109 : vector<128x128xf32>
    %111 = arith.truncf %110 : vector<128x128xf32> to vector<128x128xbf16>
    %112 = vector.extract_strided_slice %45 {offsets = [0, 96], sizes = [128, 32], strides = [1, 1]} : vector<128x128xbf16> to vector<128x32xbf16>
    %cst_40 = arith.constant dense<0.000000e+00> : vector<128x32xf32>
    %113 = tpu.matmul %111, %112, %cst_40 {dimension_numbers = #tpu.dot_dimension_numbers<[1], [0], [0], [1], [0, 0, 1, 1], [], []>} : vector<128x128xbf16>, vector<128x32xbf16>, vector<128x32xf32> -> vector<128x32xf32>
    %114 = tpu.concatenate %62, %79, %96, %113 in 1 : vector<128x32xf32>, vector<128x32xf32>, vector<128x32xf32>, vector<128x32xf32> -> vector<128x128xf32>
    %115 = arith.truncf %114 : vector<128x128xf32> to vector<128x128xbf16>
    %c0_41 = arith.constant 0 : index
    %c0_42 = arith.constant 0 : index
    %c0_43 = arith.constant 0 : index
    %116 = vector.load %arg10[%c0_41, %c0_42, %c0_43] : memref<1x128x128xbf16, #tpu.memory_space<vmem>>, vector<1x128x128xbf16>
    %117 = vector.shape_cast %116 : vector<1x128x128xbf16> to vector<128x128xbf16>
    %cst_44 = arith.constant dense<0.000000e+00> : vector<128x128xf32>
    %118 = tpu.matmul %115, %117, %cst_44 {dimension_numbers = #tpu.dot_dimension_numbers<[1], [0], [0], [1], [0, 0, 1, 1], [], []>} : vector<128x128xbf16>, vector<128x128xbf16>, vector<128x128xf32> -> vector<128x128xf32>
    %c0_45 = arith.constant 0 : index
    %c0_46 = arith.constant 0 : index
    %c0_47 = arith.constant 0 : index
    %119 = vector.load %arg11[%c0_45, %c0_46, %c0_47] : memref<1x1x128xf32, #tpu.memory_space<vmem>>, vector<1x1x128xf32>
    %120 = vector.shape_cast %119 : vector<1x1x128xf32> to vector<1x128xf32>
    %121 = vector.broadcast %120 : vector<1x128xf32> to vector<128x128xf32>
    %122 = arith.addf %118, %121 : vector<128x128xf32>
    %123 = vector.broadcast %4 : vector<128x1xf32> to vector<128x128xf32>
    %124 = arith.mulf %123, %122 : vector<128x128xf32>
    %125 = arith.addf %3, %124 : vector<128x128xf32>
    %c0_48 = arith.constant 0 : index
    %c0_49 = arith.constant 0 : index
    %c0_50 = arith.constant 0 : index
    %126 = vector.load %arg12[%c0_48, %c0_49, %c0_50] : memref<1x1x128xf32, #tpu.memory_space<vmem>>, vector<1x1x128xf32>
    %127 = vector.shape_cast %126 : vector<1x1x128xf32> to vector<1x128xf32>
    %c0_51 = arith.constant 0 : index
    %c0_52 = arith.constant 0 : index
    %c0_53 = arith.constant 0 : index
    %128 = vector.load %arg13[%c0_51, %c0_52, %c0_53] : memref<1x1x128xf32, #tpu.memory_space<vmem>>, vector<1x1x128xf32>
    %129 = vector.shape_cast %128 : vector<1x1x128xf32> to vector<1x128xf32>
    %cst_54 = arith.constant dense<0.000000e+00> : vector<128xf32>
    %130 = vector.multi_reduction <add>, %125, %cst_54 [1] : vector<128x128xf32> to vector<128xf32>
    %131 = vector.shape_cast %130 : vector<128xf32> to vector<128x1xf32>
    %cst_55 = arith.constant 1.280000e+02 : f32
    %132 = vector.broadcast %cst_55 : f32 to vector<128x1xf32>
    %133 = arith.divf %131, %132 : vector<128x1xf32>
    %134 = vector.broadcast %133 : vector<128x1xf32> to vector<128x128xf32>
    %135 = arith.subf %125, %134 : vector<128x128xf32>
    %136 = arith.mulf %135, %135 : vector<128x128xf32>
    %cst_56 = arith.constant dense<0.000000e+00> : vector<128xf32>
    %137 = vector.multi_reduction <add>, %136, %cst_56 [1] : vector<128x128xf32> to vector<128xf32>
    %138 = vector.shape_cast %137 : vector<128xf32> to vector<128x1xf32>
    %cst_57 = arith.constant 1.280000e+02 : f32
    %139 = vector.broadcast %cst_57 : f32 to vector<128x1xf32>
    %140 = arith.divf %138, %139 : vector<128x1xf32>
    %141 = vector.broadcast %133 : vector<128x1xf32> to vector<128x128xf32>
    %142 = arith.subf %125, %141 : vector<128x128xf32>
    %cst_58 = arith.constant 9.99999974E-6 : f32
    %143 = vector.broadcast %cst_58 : f32 to vector<128x1xf32>
    %144 = arith.addf %140, %143 : vector<128x1xf32>
    %145 = math.rsqrt %144 : vector<128x1xf32>
    %146 = vector.broadcast %145 : vector<128x1xf32> to vector<128x128xf32>
    %147 = arith.mulf %142, %146 : vector<128x128xf32>
    %148 = vector.broadcast %127 : vector<1x128xf32> to vector<128x128xf32>
    %149 = arith.mulf %147, %148 : vector<128x128xf32>
    %150 = vector.broadcast %129 : vector<1x128xf32> to vector<128x128xf32>
    %151 = arith.addf %149, %150 : vector<128x128xf32>
    %152 = arith.truncf %151 : vector<128x128xf32> to vector<128x128xbf16>
    %c0_59 = arith.constant 0 : index
    %c0_60 = arith.constant 0 : index
    %c0_61 = arith.constant 0 : index
    %153 = vector.load %arg14[%c0_59, %c0_60, %c0_61] : memref<1x128x256xbf16, #tpu.memory_space<vmem>>, vector<1x128x256xbf16>
    %154 = vector.shape_cast %153 : vector<1x128x256xbf16> to vector<128x256xbf16>
    %cst_62 = arith.constant dense<0.000000e+00> : vector<128x256xf32>
    %155 = tpu.matmul %152, %154, %cst_62 {dimension_numbers = #tpu.dot_dimension_numbers<[1], [0], [0], [1], [0, 0, 1, 1], [], []>} : vector<128x128xbf16>, vector<128x256xbf16>, vector<128x256xf32> -> vector<128x256xf32>
    %c0_63 = arith.constant 0 : index
    %c0_64 = arith.constant 0 : index
    %c0_65 = arith.constant 0 : index
    %156 = vector.load %arg15[%c0_63, %c0_64, %c0_65] : memref<1x1x256xf32, #tpu.memory_space<vmem>>, vector<1x1x256xf32>
    %157 = vector.shape_cast %156 : vector<1x1x256xf32> to vector<1x256xf32>
    %158 = vector.broadcast %157 : vector<1x256xf32> to vector<128x256xf32>
    %159 = arith.addf %155, %158 : vector<128x256xf32>
    %cst_66 = arith.constant 0.000000e+00 : f32
    %160 = vector.broadcast %cst_66 : f32 to vector<128x256xf32>
    %161 = arith.maximumf %159, %160 : vector<128x256xf32>
    %162 = arith.truncf %161 : vector<128x256xf32> to vector<128x256xbf16>
    %c0_67 = arith.constant 0 : index
    %c0_68 = arith.constant 0 : index
    %c0_69 = arith.constant 0 : index
    %163 = vector.load %arg16[%c0_67, %c0_68, %c0_69] : memref<1x256x128xbf16, #tpu.memory_space<vmem>>, vector<1x256x128xbf16>
    %164 = vector.shape_cast %163 : vector<1x256x128xbf16> to vector<256x128xbf16>
    %cst_70 = arith.constant dense<0.000000e+00> : vector<128x128xf32>
    %165 = tpu.matmul %162, %164, %cst_70 {dimension_numbers = #tpu.dot_dimension_numbers<[1], [0], [0], [1], [0, 0, 1, 1], [], []>} : vector<128x256xbf16>, vector<256x128xbf16>, vector<128x128xf32> -> vector<128x128xf32>
    %c0_71 = arith.constant 0 : index
    %c0_72 = arith.constant 0 : index
    %c0_73 = arith.constant 0 : index
    %166 = vector.load %arg17[%c0_71, %c0_72, %c0_73] : memref<1x1x128xf32, #tpu.memory_space<vmem>>, vector<1x1x128xf32>
    %167 = vector.shape_cast %166 : vector<1x1x128xf32> to vector<1x128xf32>
    %168 = vector.broadcast %167 : vector<1x128xf32> to vector<128x128xf32>
    %169 = arith.addf %165, %168 : vector<128x128xf32>
    %170 = arith.addf %125, %169 : vector<128x128xf32>
    %c0_74 = arith.constant 0 : index
    %c0_75 = arith.constant 0 : index
    %171 = vector.load %arg18[%c0_74, %c0_75] : memref<128x128xf32, #tpu.memory_space<vmem>>, vector<128x128xf32>
    tpu.vector_store %arg18[%c0_74, %c0_75], %170 {strides = array<i32>} : memref<128x128xf32, #tpu.memory_space<vmem>>, vector<128x128xf32>,
    return
  }
  func.func @transform_0(%arg0: i32, %arg1: memref<128xi32, #tpu.memory_space<smem>>) -> (i32, i32) {
    %c0_i32 = arith.constant 0 : i32
    %c0_i32_0 = arith.constant 0 : i32
    %c0_i32_1 = arith.constant 0 : i32
    return %c0_i32, %c0_i32_0 : i32, i32
  }
  func.func @transform_1(%arg0: i32, %arg1: memref<128xi32, #tpu.memory_space<smem>>) -> (i32, i32) {
    %c0_i32 = arith.constant 0 : i32
    %c0_i32_0 = arith.constant 0 : i32
    %c0_i32_1 = arith.constant 0 : i32
    return %c0_i32, %c0_i32_0 : i32, i32
  }
  func.func @transform_2(%arg0: i32, %arg1: memref<128xi32, #tpu.memory_space<smem>>) -> (i32, i32) {
    %c0_i32 = arith.constant 0 : i32
    %c0_i32_0 = arith.constant 0 : i32
    %c0_i32_1 = arith.constant 0 : i32
    return %c0_i32, %c0_i32_0 : i32, i32
  }
  func.func @transform_3(%arg0: i32, %arg1: memref<128xi32, #tpu.memory_space<smem>>) -> (i32, i32) {
    %c0_i32 = arith.constant 0 : i32
    %c0_i32_0 = arith.constant 0 : i32
    %c0_i32_1 = arith.constant 0 : i32
    return %c0_i32, %c0_i32_0 : i32, i32
  }
  func.func @transform_4(%arg0: i32, %arg1: memref<128xi32, #tpu.memory_space<smem>>) -> (i32, i32, i32) {
    %c0_i32 = arith.constant 0 : i32
    %c0_i32_0 = arith.constant 0 : i32
    %c0_i32_1 = arith.constant 0 : i32
    return %arg0, %c0_i32, %c0_i32_0 : i32, i32, i32
  }
  func.func @transform_5(%arg0: i32, %arg1: memref<128xi32, #tpu.memory_space<smem>>) -> (i32, i32, i32) {
    %c0_i32 = arith.constant 0 : i32
    %c0_i32_0 = arith.constant 0 : i32
    %c0_i32_1 = arith.constant 0 : i32
    return %arg0, %c0_i32, %c0_i32_0 : i32, i32, i32
  }
  func.func @transform_6(%arg0: i32, %arg1: memref<128xi32, #tpu.memory_space<smem>>) -> (i32, i32, i32) {
    %c0_i32 = arith.constant 0 : i32
    %c0_i32_0 = arith.constant 0 : i32
    %c0_i32_1 = arith.constant 0 : i32
    return %arg0, %c0_i32, %c0_i32_0 : i32, i32, i32
  }
  func.func @transform_7(%arg0: i32, %arg1: memref<128xi32, #tpu.memory_space<smem>>) -> (i32, i32, i32) {
    %c0_i32 = arith.constant 0 : i32
    %c0_i32_0 = arith.constant 0 : i32
    %c0_i32_1 = arith.constant 0 : i32
    return %arg0, %c0_i32, %c0_i32_0 : i32, i32, i32
  }
  func.func @transform_8(%arg0: i32, %arg1: memref<128xi32, #tpu.memory_space<smem>>) -> (i32, i32, i32) {
    %c0_i32 = arith.constant 0 : i32
    %c0_i32_0 = arith.constant 0 : i32
    %c0_i32_1 = arith.constant 0 : i32
    return %arg0, %c0_i32, %c0_i32_0 : i32, i32, i32
  }
  func.func @transform_9(%arg0: i32, %arg1: memref<128xi32, #tpu.memory_space<smem>>) -> (i32, i32, i32) {
    %c0_i32 = arith.constant 0 : i32
    %c0_i32_0 = arith.constant 0 : i32
    %c0_i32_1 = arith.constant 0 : i32
    return %arg0, %c0_i32, %c0_i32_0 : i32, i32, i32
  }
  func.func @transform_10(%arg0: i32, %arg1: memref<128xi32, #tpu.memory_space<smem>>) -> (i32, i32, i32) {
    %c0_i32 = arith.constant 0 : i32
    %c0_i32_0 = arith.constant 0 : i32
    %c0_i32_1 = arith.constant 0 : i32
    return %arg0, %c0_i32, %c0_i32_0 : i32, i32, i32
  }
  func.func @transform_11(%arg0: i32, %arg1: memref<128xi32, #tpu.memory_space<smem>>) -> (i32, i32, i32) {
    %c0_i32 = arith.constant 0 : i32
    %c0_i32_0 = arith.constant 0 : i32
    %c0_i32_1 = arith.constant 0 : i32
    return %arg0, %c0_i32, %c0_i32_0 : i32, i32, i32
  }
  func.func @transform_12(%arg0: i32, %arg1: memref<128xi32, #tpu.memory_space<smem>>) -> (i32, i32, i32) {
    %c0_i32 = arith.constant 0 : i32
    %c0_i32_0 = arith.constant 0 : i32
    %c0_i32_1 = arith.constant 0 : i32
    return %arg0, %c0_i32, %c0_i32_0 : i32, i32, i32
  }
  func.func @transform_13(%arg0: i32, %arg1: memref<128xi32, #tpu.memory_space<smem>>) -> (i32, i32, i32) {
    %c0_i32 = arith.constant 0 : i32
    %c0_i32_0 = arith.constant 0 : i32
    %c0_i32_1 = arith.constant 0 : i32
    return %arg0, %c0_i32, %c0_i32_0 : i32, i32, i32
  }
  func.func @transform_14(%arg0: i32, %arg1: memref<128xi32, #tpu.memory_space<smem>>) -> (i32, i32, i32) {
    %c0_i32 = arith.constant 0 : i32
    %c0_i32_0 = arith.constant 0 : i32
    %c0_i32_1 = arith.constant 0 : i32
    return %arg0, %c0_i32, %c0_i32_0 : i32, i32, i32
  }
  func.func @transform_15(%arg0: i32, %arg1: memref<128xi32, #tpu.memory_space<smem>>) -> (i32, i32, i32) {
    %c0_i32 = arith.constant 0 : i32
    %c0_i32_0 = arith.constant 0 : i32
    %c0_i32_1 = arith.constant 0 : i32
    return %arg0, %c0_i32, %c0_i32_0 : i32, i32, i32
  }
  func.func @transform_16(%arg0: i32, %arg1: memref<128xi32, #tpu.memory_space<smem>>) -> (i32, i32) {
    %c0_i32 = arith.constant 0 : i32
    %c0_i32_0 = arith.constant 0 : i32
    %c0_i32_1 = arith.constant 0 : i32
    return %c0_i32, %c0_i32_0 : i32, i32
  }
}

</mosaic_0001>

<llo_original>
// kernel: tpu_custom_call.1
$region0: #{tpu_custom_call.1}
  #allocation0 [shape = 'u32[]', space=smem, size = 0x4, offset = 0x4, fixed_abs, tag = 'smem constant byte address 0x4 - core index']
  #allocation1 [shape = 'u32[144,128]{1,0:T(1,128)}', space=vmem, size = 0x12000, scoped, tag = 'internal scratch']
  #allocation2 [shape = 's32[1]{0}', space=sflag, size = 0x4, scoped, tag = 'scoped memory for tpu_custom_call.1']
  #allocation3 [shape = 'u8[512]{0}', space=smem, size = 0x200, scoped, tag = 'prefetched SMEM operand 0']
  %s0 = inlined_call_operand.hbm [shape: s32[128], index: 0, kind: input, shape index: {}]
  %s1 = inlined_call_operand.hbm [shape: f32[32,128], index: 1, kind: input, shape index: {}]
  %s2 = inlined_call_operand.vmem [shape: f32[128,1], index: 2, kind: input, shape index: {}]
  %s3 = inlined_call_operand.vmem [shape: f32[128,128], index: 3, kind: input, shape index: {}]
  %s4 = inlined_call_operand.hbm [shape: f32[128,128], index: 4, kind: input, shape index: {}]
  %s5 = inlined_call_operand.vmem [shape: f32[3,1,128], index: 5, kind: input, shape index: {}]
  %s6 = inlined_call_operand.vmem [shape: f32[3,1,128], index: 6, kind: input, shape index: {}]
  %s7 = inlined_call_operand.hbm [shape: bf16[3,128,384], index: 7, kind: input, shape index: {}]
  %s8 = inlined_call_operand.vmem [shape: f32[3,1,384], index: 8, kind: input, shape index: {}]
  %s9 = inlined_call_operand.hbm [shape: bf16[3,128,128], index: 9, kind: input, shape index: {}]
  %s10 = inlined_call_operand.vmem [shape: f32[3,1,128], index: 10, kind: input, shape index: {}]
  %s11 = inlined_call_operand.vmem [shape: f32[3,1,128], index: 11, kind: input, shape index: {}]
  %s12 = inlined_call_operand.vmem [shape: f32[3,1,128], index: 12, kind: input, shape index: {}]
  %s13 = inlined_call_operand.hbm [shape: bf16[3,128,256], index: 13, kind: input, shape index: {}]
  %s14 = inlined_call_operand.vmem [shape: f32[3,1,256], index: 14, kind: input, shape index: {}]
  %s15 = inlined_call_operand.hbm [shape: bf16[3,256,128], index: 15, kind: input, shape index: {}]
  %s16 = inlined_call_operand.vmem [shape: f32[3,1,128], index: 16, kind: input, shape index: {}]
  %s17 = inlined_call_operand.hbm [shape: f32[128,128], index: 17, kind: output, shape index: {}]
  %s18 = sld [smem:[#allocation0]]
  $region132: #{tpu_custom_call.1} parent=0
    _
  %s20 = ssub.s32 1, %s18
  %s21 = scalar_select 0, %s20, %s18
  %23 = dma.hbm_to_smem %s0, 16, [#allocation3], [#allocation2]
  %24 = dma.done [#allocation2], 16
  %25 = sfence
  $region1: #{tpu_custom_call.1} parent=0
    #allocation4 [shape = 'u8[16384]{0}', space=vmem, size = 0x4000, scoped, tag = 'input window, operand 1, single buffered']
    #allocation5 [shape = 's32[2]{0}', space=sflag, size = 0x8, scoped, tag = 'scoped memory for tpu_custom_call.1']
    #allocation6 [shape = 's32[2]{0}', space=sflag, size = 0x8, scoped, tag = 'scoped memory for tpu_custom_call.1']
    #allocation7 [shape = 'u8[65536]{0}', space=vmem, size = 0x10000, scoped, tag = 'input window, operand 4, single buffered']
    #allocation8 [shape = 's32[1]{0}', space=sflag, size = 0x4, scoped, tag = 'scoped memory for tpu_custom_call.1']
    #allocation9 [shape = 'u8[196608]{0}', space=vmem, size = 0x30000, scoped, tag = 'input window, operand 7']
    #allocation10 [shape = 'u8[65536]{0}', space=vmem, size = 0x10000, scoped, tag = 'input window, operand 9']
    #allocation11 [shape = 'u8[131072]{0}', space=vmem, size = 0x20000, scoped, tag = 'input window, operand 13']
    #allocation12 [shape = 'u8[131072]{0}', space=vmem, size = 0x20000, scoped, tag = 'input window, operand 15']
    #allocation13 [shape = 'u8[65536]{0}', space=vmem, size = 0x10000, scoped, tag = 'output window, operand 0, single buffered']
    %26 = vsyncpa [#allocation5], 0
    %27 = vsyncpa [#allocation8], 0
    %28 = vsyncpa [#allocation6], 0
    loop: start=0, step=1, limit=5
    $region2: #{tpu_custom_call.1} parent=1 // loop_pre_header
      _
    $region3: #{tpu_custom_call.1} parent=1 // loop_header
      %s30 = sphi 0, %s34
      %p31 = scmp.ge.s32.totalorder %s30, 5
      %s38 = sphi 0, %s38
      %s40 = sphi 0, %s38
      %s41 = sphi 0, %s40
      %s55 = sphi 0, %s41
      %s59 = sphi 0, %s59
      %s61 = sphi 0, %s59
      %s62 = sphi 0, %s61
      %s76 = sphi 0, %s62
      %s80 = sphi 0, %s80
      %s82 = sphi 0, %s80
      %s83 = sphi 0, %s82
      %s97 = sphi 0, %s83
      %s101 = sphi 0, %s101
      %s103 = sphi 0, %s101
      %s104 = sphi 0, %s103
      %s118 = sphi 0, %s104
      %s124 = sphi 0, %s126
      %s127 = sphi 0, %s124
      %s128 = sphi 0, %s127
      %s144 = sphi 0, %s128
      %s150 = sphi 0, %s152
      %s153 = sphi 0, %s150
      %s154 = sphi 0, %s153
      %s170 = sphi 0, %s154
      %s176 = sphi 0, %s178
      %s179 = sphi 0, %s176
      %s180 = sphi 0, %s179
      %s196 = sphi 0, %s180
      %s202 = sphi 0, %s204
      %s205 = sphi 0, %s202
      %s206 = sphi 0, %s205
      %s222 = sphi 0, %s206
      %s228 = sphi 0, %s230
      %s231 = sphi 0, %s228
      %s232 = sphi 0, %s231
      %s248 = sphi 0, %s232
      %s254 = sphi 0, %s256
      %s257 = sphi 0, %s254
      %s258 = sphi 0, %s257
      %s274 = sphi 0, %s258
      %s280 = sphi 0, %s282
      %s283 = sphi 0, %s280
      %s284 = sphi 0, %s283
      %s300 = sphi 0, %s284
      %s306 = sphi 0, %s308
      %s309 = sphi 0, %s306
      %s310 = sphi 0, %s309
      %s326 = sphi 0, %s310
      %s332 = sphi 0, %s334
      %s335 = sphi 0, %s332
      %s336 = sphi 0, %s335
      %s352 = sphi 0, %s336
      %s358 = sphi 0, %s360
      %s361 = sphi 0, %s358
      %s362 = sphi 0, %s361
      %s378 = sphi 0, %s362
      %s384 = sphi 0, %s386
      %s387 = sphi 0, %s384
      %s388 = sphi 0, %s387
      %s404 = sphi 0, %s388
      %s410 = sphi 0, %s412
      %s413 = sphi 0, %s410
      %s414 = sphi 0, %s413
      %s430 = sphi 0, %s414
      %s434 = sphi 0, %s434
      %s436 = sphi 0, %s434
      %s437 = sphi 0, %s436
      %s451 = sphi 0, %s437
    $region4: #{tpu_custom_call.1} parent=1 // loop_header_branch
      %33 = sbr.rel (%p31) target = $region8
    $region5: #{tpu_custom_call.1} parent=1 // loop_body
      %s35 = ssub.s32 %s30, 1
      %s36 = ssub.s32 %s30, 2
      %s37 = sadd.s32 %s30, 1
      %s39 = sadd.s32 %s38, 1
      %p42 = scmp.eq.s32.totalorder %s30, 2
      %p43 = scmp.ne.s32.totalorder %s38, %s40
      %p44 = scmp.eq.s32.totalorder %s30, 0
      %p45 = por %p43, %p44
      %p46 = scmp.ne.s32.totalorder %s38, %s40
      %p47 = scmp.eq.s32.totalorder %s35, 2
      %p48 = por %p46, %p47
      %p49 = scmp.ne.s32.totalorder %s40, %s41
      %p50 = scmp.eq.s32.totalorder %s35, 0
      %p51 = por %p49, %p50
      %p52 = scmp.ne.s32.totalorder %s40, %s41
      %p53 = scmp.eq.s32.totalorder %s36, 2
      %p54 = por %p52, %p53
      %p56 = scmp.ne.s32.totalorder %s41, %s55
      %p57 = scmp.eq.s32.totalorder %s36, 0
      %p58 = por %p56, %p57
      %s60 = sadd.s32 %s59, 1
      %p63 = scmp.eq.s32.totalorder %s30, 2
      %p64 = scmp.ne.s32.totalorder %s59, %s61
      %p65 = scmp.eq.s32.totalorder %s30, 0
      %p66 = por %p64, %p65
      %p67 = scmp.ne.s32.totalorder %s59, %s61
      %p68 = scmp.eq.s32.totalorder %s35, 2
      %p69 = por %p67, %p68
      %p70 = scmp.ne.s32.totalorder %s61, %s62
      %p71 = scmp.eq.s32.totalorder %s35, 0
      %p72 = por %p70, %p71
      %p73 = scmp.ne.s32.totalorder %s61, %s62
      %p74 = scmp.eq.s32.totalorder %s36, 2
      %p75 = por %p73, %p74
      %p77 = scmp.ne.s32.totalorder %s62, %s76
      %p78 = scmp.eq.s32.totalorder %s36, 0
      %p79 = por %p77, %p78
      %s81 = sadd.s32 %s80, 1
      %p84 = scmp.eq.s32.totalorder %s30, 2
      %p85 = scmp.ne.s32.totalorder %s80, %s82
      %p86 = scmp.eq.s32.totalorder %s30, 0
      %p87 = por %p85, %p86
      %p88 = scmp.ne.s32.totalorder %s80, %s82
      %p89 = scmp.eq.s32.totalorder %s35, 2
      %p90 = por %p88, %p89
      %p91 = scmp.ne.s32.totalorder %s82, %s83
      %p92 = scmp.eq.s32.totalorder %s35, 0
      %p93 = por %p91, %p92
      %p94 = scmp.ne.s32.totalorder %s82, %s83
      %p95 = scmp.eq.s32.totalorder %s36, 2
      %p96 = por %p94, %p95
      %p98 = scmp.ne.s32.totalorder %s83, %s97
      %p99 = scmp.eq.s32.totalorder %s36, 0
      %p100 = por %p98, %p99
      %s102 = sadd.s32 %s101, 1
      %p105 = scmp.eq.s32.totalorder %s30, 2
      %p106 = scmp.ne.s32.totalorder %s101, %s103
      %p107 = scmp.eq.s32.totalorder %s30, 0
      %p108 = por %p106, %p107
      %p109 = scmp.ne.s32.totalorder %s101, %s103
      %p110 = scmp.eq.s32.totalorder %s35, 2
      %p111 = por %p109, %p110
      %p112 = scmp.ne.s32.totalorder %s103, %s104
      %p113 = scmp.eq.s32.totalorder %s35, 0
      %p114 = por %p112, %p113
      %p115 = scmp.ne.s32.totalorder %s103, %s104
      %p116 = scmp.eq.s32.totalorder %s36, 2
      %p117 = por %p115, %p116
      %p119 = scmp.ne.s32.totalorder %s104, %s118
      %p120 = scmp.eq.s32.totalorder %s36, 0
      %p121 = por %p119, %p120
      %s122 = ssub.s32 %s30, %s37
      %p123 = scmp.eq.s32.totalorder %s122, 0
      %s125 = sadd.s32 %s124, 1
      %s126 = scalar_select %p123, %s124, %s125
      %p129 = pneg %p123
      %p130 = scmp.eq.s32.totalorder %s30, 2
      %p131 = por %p129, %p130
      %p132 = scmp.ne.s32.totalorder %s124, %s127
      %p133 = scmp.eq.s32.totalorder %s30, 0
      %p134 = por %p132, %p133
      %p135 = scmp.ne.s32.totalorder %s124, %s127
      %p136 = scmp.eq.s32.totalorder %s35, 2
      %p137 = por %p135, %p136
      %p138 = scmp.ne.s32.totalorder %s127, %s128
      %p139 = scmp.eq.s32.totalorder %s35, 0
      %p140 = por %p138, %p139
      %p141 = scmp.ne.s32.totalorder %s127, %s128
      %p142 = scmp.eq.s32.totalorder %s36, 2
      %p143 = por %p141, %p142
      %p145 = scmp.ne.s32.totalorder %s128, %s144
      %p146 = scmp.eq.s32.totalorder %s36, 0
      %p147 = por %p145, %p146
      %s148 = ssub.s32 %s30, %s37
      %p149 = scmp.eq.s32.totalorder %s148, 0
      %s151 = sadd.s32 %s150, 1
      %s152 = scalar_select %p149, %s150, %s151
      %p155 = pneg %p149
      %p156 = scmp.eq.s32.totalorder %s30, 2
      %p157 = por %p155, %p156
      %p158 = scmp.ne.s32.totalorder %s150, %s153
      %p159 = scmp.eq.s32.totalorder %s30, 0
      %p160 = por %p158, %p159
      %p161 = scmp.ne.s32.totalorder %s150, %s153
      %p162 = scmp.eq.s32.totalorder %s35, 2
      %p163 = por %p161, %p162
      %p164 = scmp.ne.s32.totalorder %s153, %s154
      %p165 = scmp.eq.s32.totalorder %s35, 0
      %p166 = por %p164, %p165
      %p167 = scmp.ne.s32.totalorder %s153, %s154
      %p168 = scmp.eq.s32.totalorder %s36, 2
      %p169 = por %p167, %p168
      %p171 = scmp.ne.s32.totalorder %s154, %s170
      %p172 = scmp.eq.s32.totalorder %s36, 0
      %p173 = por %p171, %p172
      %s174 = ssub.s32 %s30, %s37
      %p175 = scmp.eq.s32.totalorder %s174, 0
      %s177 = sadd.s32 %s176, 1
      %s178 = scalar_select %p175, %s176, %s177
      %p181 = pneg %p175
      %p182 = scmp.eq.s32.totalorder %s30, 2
      %p183 = por %p181, %p182
      %p184 = scmp.ne.s32.totalorder %s176, %s179
      %p185 = scmp.eq.s32.totalorder %s30, 0
      %p186 = por %p184, %p185
      %p187 = scmp.ne.s32.totalorder %s176, %s179
      %p188 = scmp.eq.s32.totalorder %s35, 2
      %p189 = por %p187, %p188
      %p190 = scmp.ne.s32.totalorder %s179, %s180
      %p191 = scmp.eq.s32.totalorder %s35, 0
      %p192 = por %p190, %p191
      %p193 = scmp.ne.s32.totalorder %s179, %s180
      %p194 = scmp.eq.s32.totalorder %s36, 2
      %p195 = por %p193, %p194
      %p197 = scmp.ne.s32.totalorder %s180, %s196
      %p198 = scmp.eq.s32.totalorder %s36, 0
      %p199 = por %p197, %p198
      %s200 = ssub.s32 %s30, %s37
      %p201 = scmp.eq.s32.totalorder %s200, 0
      %s203 = sadd.s32 %s202, 1
      %s204 = scalar_select %p201, %s202, %s203
      %p207 = pneg %p201
      %p208 = scmp.eq.s32.totalorder %s30, 2
      %p209 = por %p207, %p208
      %p210 = scmp.ne.s32.totalorder %s202, %s205
      %p211 = scmp.eq.s32.totalorder %s30, 0
      %p212 = por %p210, %p211
      %p213 = scmp.ne.s32.totalorder %s202, %s205
      %p214 = scmp.eq.s32.totalorder %s35, 2
      %p215 = por %p213, %p214
      %p216 = scmp.ne.s32.totalorder %s205, %s206
      %p217 = scmp.eq.s32.totalorder %s35, 0
      %p218 = por %p216, %p217
      %p219 = scmp.ne.s32.totalorder %s205, %s206
      %p220 = scmp.eq.s32.totalorder %s36, 2
      %p221 = por %p219, %p220
      %p223 = scmp.ne.s32.totalorder %s206, %s222
      %p224 = scmp.eq.s32.totalorder %s36, 0
      %p225 = por %p223, %p224
      %s226 = ssub.s32 %s30, %s37
      %p227 = scmp.eq.s32.totalorder %s226, 0
      %s229 = sadd.s32 %s228, 1
      %s230 = scalar_select %p227, %s228, %s229
      %p233 = pneg %p227
      %p234 = scmp.eq.s32.totalorder %s30, 2
      %p235 = por %p233, %p234
      %p236 = scmp.ne.s32.totalorder %s228, %s231
      %p237 = scmp.eq.s32.totalorder %s30, 0
      %p238 = por %p236, %p237
      %p239 = scmp.ne.s32.totalorder %s228, %s231
      %p240 = scmp.eq.s32.totalorder %s35, 2
      %p241 = por %p239, %p240
      %p242 = scmp.ne.s32.totalorder %s231, %s232
      %p243 = scmp.eq.s32.totalorder %s35, 0
      %p244 = por %p242, %p243
      %p245 = scmp.ne.s32.totalorder %s231, %s232
      %p246 = scmp.eq.s32.totalorder %s36, 2
      %p247 = por %p245, %p246
      %p249 = scmp.ne.s32.totalorder %s232, %s248
      %p250 = scmp.eq.s32.totalorder %s36, 0
      %p251 = por %p249, %p250
      %s252 = ssub.s32 %s30, %s37
      %p253 = scmp.eq.s32.totalorder %s252, 0
      %s255 = sadd.s32 %s254, 1
      %s256 = scalar_select %p253, %s254, %s255
      %p259 = pneg %p253
      %p260 = scmp.eq.s32.totalorder %s30, 2
      %p261 = por %p259, %p260
      %p262 = scmp.ne.s32.totalorder %s254, %s257
      %p263 = scmp.eq.s32.totalorder %s30, 0
      %p264 = por %p262, %p263
      %p265 = scmp.ne.s32.totalorder %s254, %s257
      %p266 = scmp.eq.s32.totalorder %s35, 2
      %p267 = por %p265, %p266
      %p268 = scmp.ne.s32.totalorder %s257, %s258
      %p269 = scmp.eq.s32.totalorder %s35, 0
      %p270 = por %p268, %p269
      %p271 = scmp.ne.s32.totalorder %s257, %s258
      %p272 = scmp.eq.s32.totalorder %s36, 2
      %p273 = por %p271, %p272
      %p275 = scmp.ne.s32.totalorder %s258, %s274
      %p276 = scmp.eq.s32.totalorder %s36, 0
      %p277 = por %p275, %p276
      %s278 = ssub.s32 %s30, %s37
      %p279 = scmp.eq.s32.totalorder %s278, 0
      %s281 = sadd.s32 %s280, 1
      %s282 = scalar_select %p279, %s280, %s281
      %p285 = pneg %p279
      %p286 = scmp.eq.s32.totalorder %s30, 2
      %p287 = por %p285, %p286
      %p288 = scmp.ne.s32.totalorder %s280, %s283
      %p289 = scmp.eq.s32.totalorder %s30, 0
      %p290 = por %p288, %p289
      %p291 = scmp.ne.s32.totalorder %s280, %s283
      %p292 = scmp.eq.s32.totalorder %s35, 2
      %p293 = por %p291, %p292
      %p294 = scmp.ne.s32.totalorder %s283, %s284
      %p295 = scmp.eq.s32.totalorder %s35, 0
      %p296 = por %p294, %p295
      %p297 = scmp.ne.s32.totalorder %s283, %s284
      %p298 = scmp.eq.s32.totalorder %s36, 2
      %p299 = por %p297, %p298
      %p301 = scmp.ne.s32.totalorder %s284, %s300
      %p302 = scmp.eq.s32.totalorder %s36, 0
      %p303 = por %p301, %p302
      %s304 = ssub.s32 %s30, %s37
      %p305 = scmp.eq.s32.totalorder %s304, 0
      %s307 = sadd.s32 %s306, 1
      %s308 = scalar_select %p305, %s306, %s307
      %p311 = pneg %p305
      %p312 = scmp.eq.s32.totalorder %s30, 2
      %p313 = por %p311, %p312
      %p314 = scmp.ne.s32.totalorder %s306, %s309
      %p315 = scmp.eq.s32.totalorder %s30, 0
      %p316 = por %p314, %p315
      %p317 = scmp.ne.s32.totalorder %s306, %s309
      %p318 = scmp.eq.s32.totalorder %s35, 2
      %p319 = por %p317, %p318
      %p320 = scmp.ne.s32.totalorder %s309, %s310
      %p321 = scmp.eq.s32.totalorder %s35, 0
      %p322 = por %p320, %p321
      %p323 = scmp.ne.s32.totalorder %s309, %s310
      %p324 = scmp.eq.s32.totalorder %s36, 2
      %p325 = por %p323, %p324
      %p327 = scmp.ne.s32.totalorder %s310, %s326
      %p328 = scmp.eq.s32.totalorder %s36, 0
      %p329 = por %p327, %p328
      %s330 = ssub.s32 %s30, %s37
      %p331 = scmp.eq.s32.totalorder %s330, 0
      %s333 = sadd.s32 %s332, 1
      %s334 = scalar_select %p331, %s332, %s333
      %p337 = pneg %p331
      %p338 = scmp.eq.s32.totalorder %s30, 2
      %p339 = por %p337, %p338
      %p340 = scmp.ne.s32.totalorder %s332, %s335
      %p341 = scmp.eq.s32.totalorder %s30, 0
      %p342 = por %p340, %p341
      %p343 = scmp.ne.s32.totalorder %s332, %s335
      %p344 = scmp.eq.s32.totalorder %s35, 2
      %p345 = por %p343, %p344
      %p346 = scmp.ne.s32.totalorder %s335, %s336
      %p347 = scmp.eq.s32.totalorder %s35, 0
      %p348 = por %p346, %p347
      %p349 = scmp.ne.s32.totalorder %s335, %s336
      %p350 = scmp.eq.s32.totalorder %s36, 2
      %p351 = por %p349, %p350
      %p353 = scmp.ne.s32.totalorder %s336, %s352
      %p354 = scmp.eq.s32.totalorder %s36, 0
      %p355 = por %p353, %p354
      %s356 = ssub.s32 %s30, %s37
      %p357 = scmp.eq.s32.totalorder %s356, 0
      %s359 = sadd.s32 %s358, 1
      %s360 = scalar_select %p357, %s358, %s359
      %p363 = pneg %p357
      %p364 = scmp.eq.s32.totalorder %s30, 2
      %p365 = por %p363, %p364
      %p366 = scmp.ne.s32.totalorder %s358, %s361
      %p367 = scmp.eq.s32.totalorder %s30, 0
      %p368 = por %p366, %p367
      %p369 = scmp.ne.s32.totalorder %s358, %s361
      %p370 = scmp.eq.s32.totalorder %s35, 2
      %p371 = por %p369, %p370
      %p372 = scmp.ne.s32.totalorder %s361, %s362
      %p373 = scmp.eq.s32.totalorder %s35, 0
      %p374 = por %p372, %p373
      %p375 = scmp.ne.s32.totalorder %s361, %s362
      %p376 = scmp.eq.s32.totalorder %s36, 2
      %p377 = por %p375, %p376
      %p379 = scmp.ne.s32.totalorder %s362, %s378
      %p380 = scmp.eq.s32.totalorder %s36, 0
      %p381 = por %p379, %p380
      %s382 = ssub.s32 %s30, %s37
      %p383 = scmp.eq.s32.totalorder %s382, 0
      %s385 = sadd.s32 %s384, 1
      %s386 = scalar_select %p383, %s384, %s385
      %p389 = pneg %p383
      %p390 = scmp.eq.s32.totalorder %s30, 2
      %p391 = por %p389, %p390
      %p392 = scmp.ne.s32.totalorder %s384, %s387
      %p393 = scmp.eq.s32.totalorder %s30, 0
      %p394 = por %p392, %p393
      %p395 = scmp.ne.s32.totalorder %s384, %s387
      %p396 = scmp.eq.s32.totalorder %s35, 2
      %p397 = por %p395, %p396
      %p398 = scmp.ne.s32.totalorder %s387, %s388
      %p399 = scmp.eq.s32.totalorder %s35, 0
      %p400 = por %p398, %p399
      %p401 = scmp.ne.s32.totalorder %s387, %s388
      %p402 = scmp.eq.s32.totalorder %s36, 2
      %p403 = por %p401, %p402
      %p405 = scmp.ne.s32.totalorder %s388, %s404
      %p406 = scmp.eq.s32.totalorder %s36, 0
      %p407 = por %p405, %p406
      %s408 = ssub.s32 %s30, %s37
      %p409 = scmp.eq.s32.totalorder %s408, 0
      %s411 = sadd.s32 %s410, 1
      %s412 = scalar_select %p409, %s410, %s411
      %p415 = pneg %p409
      %p416 = scmp.eq.s32.totalorder %s30, 2
      %p417 = por %p415, %p416
      %p418 = scmp.ne.s32.totalorder %s410, %s413
      %p419 = scmp.eq.s32.totalorder %s30, 0
      %p420 = por %p418, %p419
      %p421 = scmp.ne.s32.totalorder %s410, %s413
      %p422 = scmp.eq.s32.totalorder %s35, 2
      %p423 = por %p421, %p422
      %p424 = scmp.ne.s32.totalorder %s413, %s414
      %p425 = scmp.eq.s32.totalorder %s35, 0
      %p426 = por %p424, %p425
      %p427 = scmp.ne.s32.totalorder %s413, %s414
      %p428 = scmp.eq.s32.totalorder %s36, 2
      %p429 = por %p427, %p428
      %p431 = scmp.ne.s32.totalorder %s414, %s430
      %p432 = scmp.eq.s32.totalorder %s36, 0
      %p433 = por %p431, %p432
      %s435 = sadd.s32 %s434, 1
      %p438 = scmp.eq.s32.totalorder %s30, 2
      %p439 = scmp.ne.s32.totalorder %s434, %s436
      %p440 = scmp.eq.s32.totalorder %s30, 0
      %p441 = por %p439, %p440
      %p442 = scmp.ne.s32.totalorder %s434, %s436
      %p443 = scmp.eq.s32.totalorder %s35, 2
      %p444 = por %p442, %p443
      %p445 = scmp.ne.s32.totalorder %s436, %s437
      %p446 = scmp.eq.s32.totalorder %s35, 0
      %p447 = por %p445, %p446
      %p448 = scmp.ne.s32.totalorder %s436, %s437
      %p449 = scmp.eq.s32.totalorder %s36, 2
      %p450 = por %p448, %p449
      %p452 = scmp.ne.s32.totalorder %s437, %s451
      %p453 = scmp.eq.s32.totalorder %s36, 0
      %p454 = por %p452, %p453
      %p455 = scmp.le.s32.totalorder 1, %s30
      %p456 = scmp.lt.s32.totalorder %s30, 4
      %p457 = pnand %p455, %p456
      %p458 = pneg %p457
      // Predicated region
      $region9: #{tpu_custom_call.1} parent=5 // pred_check
        _
      $region10: #{tpu_custom_call.1} parent=5 // pred_check_branch
        %460 = sbr.rel (%p457) target = $region12
      $region11: #{tpu_custom_call.1} parent=5 // pred_region
        %s461 = ssub.s32 %s30, 1
        // Predicated region
        $region13: #{tpu_custom_call.1} parent=11 // pred_check
          %p462 = pneg %p51
        $region14: #{tpu_custom_call.1} parent=11 // pred_check_branch
          %464 = sbr.rel (%p462) target = $region16
        $region15: #{tpu_custom_call.1} parent=11 // pred_region
          %s466 = ssub.s32 512, 512
          %467 = vsyncadd [#allocation5], %s466
          %s468 = sshll.u32 [#allocation4], 4
          %s469 = int_to_ptr.vmem [resolvable:$true] %s468
          %474 = dma.hbm_to_vmem [thread:$0]  %s1, 512, %s469, [#allocation5], 128, 128, 8
        $region16: #{tpu_custom_call.1} parent=11 // pred_fallthru
          _
        // Predicated region
        $region17: #{tpu_custom_call.1} parent=11 // pred_check
          %p475 = pneg %p72
        $region18: #{tpu_custom_call.1} parent=11 // pred_check_branch
          %477 = sbr.rel (%p475) target = $region20
        $region19: #{tpu_custom_call.1} parent=11 // pred_region
          _
        $region20: #{tpu_custom_call.1} parent=11 // pred_fallthru
          _
        // Predicated region
        $region21: #{tpu_custom_call.1} parent=11 // pred_check
          %p478 = pneg %p93
        $region22: #{tpu_custom_call.1} parent=11 // pred_check_branch
          %480 = sbr.rel (%p478) target = $region24
        $region23: #{tpu_custom_call.1} parent=11 // pred_region
          _
        $region24: #{tpu_custom_call.1} parent=11 // pred_fallthru
          _
        // Predicated region
        $region25: #{tpu_custom_call.1} parent=11 // pred_check
          %p481 = pneg %p114
        $region26: #{tpu_custom_call.1} parent=11 // pred_check_branch
          %483 = sbr.rel (%p481) target = $region28
        $region27: #{tpu_custom_call.1} parent=11 // pred_region
          %s485 = ssub.s32 2048, 2048
          %486 = vsyncadd [#allocation8], %s485
          %s487 = sshll.u32 [#allocation7], 4
          %s488 = int_to_ptr.vmem [resolvable:$true] %s487
          %493 = dma.hbm_to_vmem [thread:$0]  %s4, 2048, %s488, [#allocation8], 128, 128, 8
        $region28: #{tpu_custom_call.1} parent=11 // pred_fallthru
          _
      $region12: #{tpu_custom_call.1} parent=5 // pred_fallthru
        _
      %p494 = scmp.lt.s32.totalorder %s30, 3
      // Predicated region
      $region29: #{tpu_custom_call.1} parent=5 // pred_check
        %p495 = pneg %p494
      $region30: #{tpu_custom_call.1} parent=5 // pred_check_branch
        %497 = sbr.rel (%p495) target = $region32
      $region31: #{tpu_custom_call.1} parent=5 // pred_region
        // Predicated region
        $region33: #{tpu_custom_call.1} parent=31 // pred_check
          %p498 = pneg %p134
        $region34: #{tpu_custom_call.1} parent=31 // pred_check_branch
          %500 = sbr.rel (%p498) target = $region36
        $region35: #{tpu_custom_call.1} parent=31 // pred_region
          %p501 = scmp.lt.s32.totalorder %s30, 2
          %s502 = scalar_select %p501, %s30, 2
          %s503 = scalar_lea.vmem %s5, %s502
        $region36: #{tpu_custom_call.1} parent=31 // pred_fallthru
          _
        // Predicated region
        $region37: #{tpu_custom_call.1} parent=31 // pred_check
          %p504 = pneg %p160
        $region38: #{tpu_custom_call.1} parent=31 // pred_check_branch
          %506 = sbr.rel (%p504) target = $region40
        $region39: #{tpu_custom_call.1} parent=31 // pred_region
          %p507 = scmp.lt.s32.totalorder %s30, 2
          %s508 = scalar_select %p507, %s30, 2
          %s509 = scalar_lea.vmem %s6, %s508
        $region40: #{tpu_custom_call.1} parent=31 // pred_fallthru
          _
        // Predicated region
        $region41: #{tpu_custom_call.1} parent=31 // pred_check
          %p510 = pneg %p186
        $region42: #{tpu_custom_call.1} parent=31 // pred_check_branch
          %512 = sbr.rel (%p510) target = $region44
        $region43: #{tpu_custom_call.1} parent=31 // pred_region
          %s513 = sand.u32 %s30, 1
          %s514 = scalar_lea.sflag [#allocation5], %s513
          %s515 = sand.u32 %s176, 1
          %s516 = smul.addr %s515, 192
          %s517 = scalar_lea.vmem [#allocation9], %s516
          %s519 = ssub.s32 3072, 3072
          %520 = vsyncadd %s514, %s519
          %s521 = smul.addr %s30, 48
          %s522 = smul.addr %s521, 64
          %s523 = scalar_lea.hbm %s7, %s522
          %s524 = sshll.u32 %s517, 4
          %s525 = int_to_ptr.vmem [resolvable:$true] %s524
          %530 = dma.hbm_to_vmem [thread:$0]  %s523, 3072, %s525, %s514, 192, 192, 12
        $region44: #{tpu_custom_call.1} parent=31 // pred_fallthru
          _
        // Predicated region
        $region45: #{tpu_custom_call.1} parent=31 // pred_check
          %p531 = pneg %p212
        $region46: #{tpu_custom_call.1} parent=31 // pred_check_branch
          %533 = sbr.rel (%p531) target = $region48
        $region47: #{tpu_custom_call.1} parent=31 // pred_region
          %p534 = scmp.lt.s32.totalorder %s30, 2
          %s535 = scalar_select %p534, %s30, 2
          %s536 = smul.addr %s535, 3
          %s537 = scalar_lea.vmem %s8, %s536
        $region48: #{tpu_custom_call.1} parent=31 // pred_fallthru
          _
        // Predicated region
        $region49: #{tpu_custom_call.1} parent=31 // pred_check
          %p538 = pneg %p238
        $region50: #{tpu_custom_call.1} parent=31 // pred_check_branch
          %540 = sbr.rel (%p538) target = $region52
        $region51: #{tpu_custom_call.1} parent=31 // pred_region
          %s541 = sand.u32 %s30, 1
          %s542 = scalar_lea.sflag [#allocation5], %s541
          %s543 = sand.u32 %s228, 1
          %s544 = smul.addr %s543, 64
          %s545 = scalar_lea.vmem [#allocation10], %s544
          %s547 = ssub.s32 1024, 1024
          %548 = vsyncadd %s542, %s547
          %s549 = smul.addr %s30, 16
          %s550 = smul.addr %s549, 64
          %s551 = scalar_lea.hbm %s9, %s550
          %s552 = sshll.u32 %s545, 4
          %s553 = int_to_ptr.vmem [resolvable:$true] %s552
          %558 = dma.hbm_to_vmem [thread:$0]  %s551, 1024, %s553, %s542, 64, 64, 4
        $region52: #{tpu_custom_call.1} parent=31 // pred_fallthru
          _
        // Predicated region
        $region53: #{tpu_custom_call.1} parent=31 // pred_check
          %p559 = pneg %p264
        $region54: #{tpu_custom_call.1} parent=31 // pred_check_branch
          %561 = sbr.rel (%p559) target = $region56
        $region55: #{tpu_custom_call.1} parent=31 // pred_region
          %p562 = scmp.lt.s32.totalorder %s30, 2
          %s563 = scalar_select %p562, %s30, 2
          %s564 = scalar_lea.vmem %s10, %s563
        $region56: #{tpu_custom_call.1} parent=31 // pred_fallthru
          _
        // Predicated region
        $region57: #{tpu_custom_call.1} parent=31 // pred_check
          %p565 = pneg %p290
        $region58: #{tpu_custom_call.1} parent=31 // pred_check_branch
          %567 = sbr.rel (%p565) target = $region60
        $region59: #{tpu_custom_call.1} parent=31 // pred_region
          %p568 = scmp.lt.s32.totalorder %s30, 2
          %s569 = scalar_select %p568, %s30, 2
          %s570 = scalar_lea.vmem %s11, %s569
        $region60: #{tpu_custom_call.1} parent=31 // pred_fallthru
          _
        // Predicated region
        $region61: #{tpu_custom_call.1} parent=31 // pred_check
          %p571 = pneg %p316
        $region62: #{tpu_custom_call.1} parent=31 // pred_check_branch
          %573 = sbr.rel (%p571) target = $region64
        $region63: #{tpu_custom_call.1} parent=31 // pred_region
          %p574 = scmp.lt.s32.totalorder %s30, 2
          %s575 = scalar_select %p574, %s30, 2
          %s576 = scalar_lea.vmem %s12, %s575
        $region64: #{tpu_custom_call.1} parent=31 // pred_fallthru
          _
        // Predicated region
        $region65: #{tpu_custom_call.1} parent=31 // pred_check
          %p577 = pneg %p342
        $region66: #{tpu_custom_call.1} parent=31 // pred_check_branch
          %579 = sbr.rel (%p577) target = $region68
        $region67: #{tpu_custom_call.1} parent=31 // pred_region
          %s580 = sand.u32 %s30, 1
          %s581 = scalar_lea.sflag [#allocation5], %s580
          %s582 = sand.u32 %s332, 1
          %s583 = smul.addr %s582, 128
          %s584 = scalar_lea.vmem [#allocation11], %s583
          %s586 = ssub.s32 2048, 2048
          %587 = vsyncadd %s581, %s586
          %s588 = smul.addr %s30, 32
          %s589 = smul.addr %s588, 64
          %s590 = scalar_lea.hbm %s13, %s589
          %s591 = sshll.u32 %s584, 4
          %s592 = int_to_ptr.vmem [resolvable:$true] %s591
          %597 = dma.hbm_to_vmem [thread:$0]  %s590, 2048, %s592, %s581, 128, 128, 8
        $region68: #{tpu_custom_call.1} parent=31 // pred_fallthru
          _
        // Predicated region
        $region69: #{tpu_custom_call.1} parent=31 // pred_check
          %p598 = pneg %p368
        $region70: #{tpu_custom_call.1} parent=31 // pred_check_branch
          %600 = sbr.rel (%p598) target = $region72
        $region71: #{tpu_custom_call.1} parent=31 // pred_region
          %p601 = scmp.lt.s32.totalorder %s30, 2
          %s602 = scalar_select %p601, %s30, 2
          %s603 = smul.addr %s602, 2
          %s604 = scalar_lea.vmem %s14, %s603
        $region72: #{tpu_custom_call.1} parent=31 // pred_fallthru
          _
        // Predicated region
        $region73: #{tpu_custom_call.1} parent=31 // pred_check
          %p605 = pneg %p394
        $region74: #{tpu_custom_call.1} parent=31 // pred_check_branch
          %607 = sbr.rel (%p605) target = $region76
        $region75: #{tpu_custom_call.1} parent=31 // pred_region
          %s608 = sand.u32 %s30, 1
          %s609 = scalar_lea.sflag [#allocation5], %s608
          %s610 = sand.u32 %s384, 1
          %s611 = smul.addr %s610, 128
          %s612 = scalar_lea.vmem [#allocation12], %s611
          %s614 = ssub.s32 2048, 2048
          %615 = vsyncadd %s609, %s614
          %s616 = smul.addr %s30, 32
          %s617 = smul.addr %s616, 64
          %s618 = scalar_lea.hbm %s15, %s617
          %s619 = sshll.u32 %s612, 4
          %s620 = int_to_ptr.vmem [resolvable:$true] %s619
          %625 = dma.hbm_to_vmem [thread:$0]  %s618, 2048, %s620, %s609, 64, 64, 4
        $region76: #{tpu_custom_call.1} parent=31 // pred_fallthru
          _
        // Predicated region
        $region77: #{tpu_custom_call.1} parent=31 // pred_check
          %p626 = pneg %p420
        $region78: #{tpu_custom_call.1} parent=31 // pred_check_branch
          %628 = sbr.rel (%p626) target = $region80
        $region79: #{tpu_custom_call.1} parent=31 // pred_region
          %p629 = scmp.lt.s32.totalorder %s30, 2
          %s630 = scalar_select %p629, %s30, 2
          %s631 = scalar_lea.vmem %s16, %s630
        $region80: #{tpu_custom_call.1} parent=31 // pred_fallthru
          _
      $region32: #{tpu_custom_call.1} parent=5 // pred_fallthru
        _
      %p632 = scmp.le.s32.totalorder 1, %s30
      %p633 = scmp.lt.s32.totalorder %s30, 4
      %p634 = pnand %p632, %p633
      %p635 = pneg %p634
      // Predicated region
      $region81: #{tpu_custom_call.1} parent=5 // pred_check
        _
      $region82: #{tpu_custom_call.1} parent=5 // pred_check_branch
        %637 = sbr.rel (%p634) target = $region84
      $region83: #{tpu_custom_call.1} parent=5 // pred_region
        %s638 = ssub.s32 %s30, 1
        // Predicated region
        $region85: #{tpu_custom_call.1} parent=83 // pred_check
          %p639 = pneg %p51
        $region86: #{tpu_custom_call.1} parent=83 // pred_check_branch
          %641 = sbr.rel (%p639) target = $region88
        $region87: #{tpu_custom_call.1} parent=83 // pred_region
          %642 = dma.done [#allocation5], 512
        $region88: #{tpu_custom_call.1} parent=83 // pred_fallthru
          _
        // Predicated region
        $region89: #{tpu_custom_call.1} parent=83 // pred_check
          %p643 = pneg %p114
        $region90: #{tpu_custom_call.1} parent=83 // pred_check_branch
          %645 = sbr.rel (%p643) target = $region92
        $region91: #{tpu_custom_call.1} parent=83 // pred_region
          %646 = dma.done [#allocation8], 2048
        $region92: #{tpu_custom_call.1} parent=83 // pred_fallthru
          _
        %s647 = sand.u32 %s35, 1
        %s648 = scalar_lea.sflag [#allocation5], %s647
        %s649 = sand.u32 %s179, 1
        %s650 = smul.addr %s649, 192
        %s651 = scalar_lea.vmem [#allocation9], %s650
        // Predicated region
        $region93: #{tpu_custom_call.1} parent=83 // pred_check
          %p652 = pneg %p192
        $region94: #{tpu_custom_call.1} parent=83 // pred_check_branch
          %654 = sbr.rel (%p652) target = $region96
        $region95: #{tpu_custom_call.1} parent=83 // pred_region
          %655 = dma.done %s648, 3072
        $region96: #{tpu_custom_call.1} parent=83 // pred_fallthru
          _
        %s656 = sand.u32 %s35, 1
        %s657 = scalar_lea.sflag [#allocation5], %s656
        %s658 = sand.u32 %s231, 1
        %s659 = smul.addr %s658, 64
        %s660 = scalar_lea.vmem [#allocation10], %s659
        // Predicated region
        $region97: #{tpu_custom_call.1} parent=83 // pred_check
          %p661 = pneg %p244
        $region98: #{tpu_custom_call.1} parent=83 // pred_check_branch
          %663 = sbr.rel (%p661) target = $region100
        $region99: #{tpu_custom_call.1} parent=83 // pred_region
          %664 = dma.done %s657, 1024
        $region100: #{tpu_custom_call.1} parent=83 // pred_fallthru
          _
        %s665 = sand.u32 %s35, 1
        %s666 = scalar_lea.sflag [#allocation5], %s665
        %s667 = sand.u32 %s335, 1
        %s668 = smul.addr %s667, 128
        %s669 = scalar_lea.vmem [#allocation11], %s668
        // Predicated region
        $region101: #{tpu_custom_call.1} parent=83 // pred_check
          %p670 = pneg %p348
        $region102: #{tpu_custom_call.1} parent=83 // pred_check_branch
          %672 = sbr.rel (%p670) target = $region104
        $region103: #{tpu_custom_call.1} parent=83 // pred_region
          %673 = dma.done %s666, 2048
        $region104: #{tpu_custom_call.1} parent=83 // pred_fallthru
          _
        %s674 = sand.u32 %s35, 1
        %s675 = scalar_lea.sflag [#allocation5], %s674
        %s676 = sand.u32 %s387, 1
        %s677 = smul.addr %s676, 128
        %s678 = scalar_lea.vmem [#allocation12], %s677
        // Predicated region
        $region105: #{tpu_custom_call.1} parent=83 // pred_check
          %p679 = pneg %p400
        $region106: #{tpu_custom_call.1} parent=83 // pred_check_branch
          %681 = sbr.rel (%p679) target = $region108
        $region107: #{tpu_custom_call.1} parent=83 // pred_region
          %682 = dma.done %s675, 2048
        $region108: #{tpu_custom_call.1} parent=83 // pred_fallthru
          _
        %p683 = pneg %p51
        %p684 = pneg %p48
        %p685 = pneg %p72
        %p686 = pneg %p69
        %p687 = pneg %p93
        %p688 = pneg %p90
        %p689 = pneg %p114
        %p690 = pneg %p111
        %p691 = scmp.lt.s32.totalorder %s35, 2
        %s692 = scalar_select %p691, %s35, 2
        %s693 = scalar_lea.vmem %s5, %s692
        %p694 = pneg %p140
        %p695 = pneg %p137
        %p696 = scmp.lt.s32.totalorder %s35, 2
        %s697 = scalar_select %p696, %s35, 2
        %s698 = scalar_lea.vmem %s6, %s697
        %p699 = pneg %p166
        %p700 = pneg %p163
        %s701 = sand.u32 %s35, 1
        %s702 = scalar_lea.sflag [#allocation5], %s701
        %s703 = sand.u32 %s179, 1
        %s704 = smul.addr %s703, 192
        %s705 = scalar_lea.vmem [#allocation9], %s704
        %p706 = pneg %p192
        %p707 = pneg %p189
        %p708 = scmp.lt.s32.totalorder %s35, 2
        %s709 = scalar_select %p708, %s35, 2
        %s710 = smul.addr %s709, 3
        %s711 = scalar_lea.vmem %s8, %s710
        %p712 = pneg %p218
        %p713 = pneg %p215
        %s714 = sand.u32 %s35, 1
        %s715 = scalar_lea.sflag [#allocation5], %s714
        %s716 = sand.u32 %s231, 1
        %s717 = smul.addr %s716, 64
        %s718 = scalar_lea.vmem [#allocation10], %s717
        %p719 = pneg %p244
        %p720 = pneg %p241
        %p721 = scmp.lt.s32.totalorder %s35, 2
        %s722 = scalar_select %p721, %s35, 2
        %s723 = scalar_lea.vmem %s10, %s722
        %p724 = pneg %p270
        %p725 = pneg %p267
        %p726 = scmp.lt.s32.totalorder %s35, 2
        %s727 = scalar_select %p726, %s35, 2
        %s728 = scalar_lea.vmem %s11, %s727
        %p729 = pneg %p296
        %p730 = pneg %p293
        %p731 = scmp.lt.s32.totalorder %s35, 2
        %s732 = scalar_select %p731, %s35, 2
        %s733 = scalar_lea.vmem %s12, %s732
        %p734 = pneg %p322
        %p735 = pneg %p319
        %s736 = sand.u32 %s35, 1
        %s737 = scalar_lea.sflag [#allocation5], %s736
        %s738 = sand.u32 %s335, 1
        %s739 = smul.addr %s738, 128
        %s740 = scalar_lea.vmem [#allocation11], %s739
        %p741 = pneg %p348
        %p742 = pneg %p345
        %p743 = scmp.lt.s32.totalorder %s35, 2
        %s744 = scalar_select %p743, %s35, 2
        %s745 = smul.addr %s744, 2
        %s746 = scalar_lea.vmem %s14, %s745
        %p747 = pneg %p374
        %p748 = pneg %p371
        %s749 = sand.u32 %s35, 1
        %s750 = scalar_lea.sflag [#allocation5], %s749
        %s751 = sand.u32 %s387, 1
        %s752 = smul.addr %s751, 128
        %s753 = scalar_lea.vmem [#allocation12], %s752
        %p754 = pneg %p400
        %p755 = pneg %p397
        %p756 = scmp.lt.s32.totalorder %s35, 2
        %s757 = scalar_select %p756, %s35, 2
        %s758 = scalar_lea.vmem %s16, %s757
        %p759 = pneg %p426
        %p760 = pneg %p423
        %p761 = pneg %p447
        %p762 = pneg %p444
        %p763 = scmp.lt.s32.totalorder %s35, 2
        %s764 = scalar_select %p763, %s35, 2
        %s765 = scalar_lea.vmem %s5, %s764
        %p766 = scmp.lt.s32.totalorder %s35, 2
        %s767 = scalar_select %p766, %s35, 2
        %s768 = scalar_lea.vmem %s6, %s767
        %p769 = scmp.lt.s32.totalorder %s35, 2
        %s770 = scalar_select %p769, %s35, 2
        %s771 = smul.addr %s770, 3
        %s772 = scalar_lea.vmem %s8, %s771
        %p773 = scmp.lt.s32.totalorder %s35, 2
        %s774 = scalar_select %p773, %s35, 2
        %s775 = scalar_lea.vmem %s10, %s774
        %p776 = scmp.lt.s32.totalorder %s35, 2
        %s777 = scalar_select %p776, %s35, 2
        %s778 = scalar_lea.vmem %s11, %s777
        %p779 = scmp.lt.s32.totalorder %s35, 2
        %s780 = scalar_select %p779, %s35, 2
        %s781 = scalar_lea.vmem %s12, %s780
        %p782 = scmp.lt.s32.totalorder %s35, 2
        %s783 = scalar_select %p782, %s35, 2
        %s784 = smul.addr %s783, 2
        %s785 = scalar_lea.vmem %s14, %s784
        %p786 = scmp.lt.s32.totalorder %s35, 2
        %s787 = scalar_select %p786, %s35, 2
        %s788 = scalar_lea.vmem %s16, %s787
        %p790 = scmp.eq.s32.totalorder %s35, 0
        // Predicated region
        $region109: #{tpu_custom_call.1} parent=83 // pred_check
          %p791 = pneg %p790
        $region110: #{tpu_custom_call.1} parent=83 // pred_check_branch
          %793 = sbr.rel (%p791) target = $region112
        $region111: #{tpu_custom_call.1} parent=83 // pred_region
          loop: start=0, step=1, limit=128
          $region113: #{tpu_custom_call.1} parent=111 // loop_pre_header
            _
          $region114: #{tpu_custom_call.1} parent=111 // loop_header
            %s795 = sphi 0, %s799
            %p796 = scmp.ge.s32.totalorder %s795, 128
          $region115: #{tpu_custom_call.1} parent=111 // loop_header_branch
            %798 = sbr.rel (%p796) target = $region119
          $region116: #{tpu_custom_call.1} parent=111 // loop_body
            %s800 = sld [smem:[#allocation3 + %s795]]
            %s801 = scalar_lea.vmem [#allocation4], %s800
            %v802 = vld [vmem:[%s801] sm:$0x1]
            %s803 = scalar_lea.vmem [#allocation13], %s795
            %804 = vst [vmem:[%s803] sm:$0x1] %v802
          $region117: #{tpu_custom_call.1} parent=111 // loop_footer
            %s799 = sadd.s32 1, %s795
          $region118: #{tpu_custom_call.1} parent=111 // loop_footer_branch
            %794 = sbr.rel target = $region114
          $region119: #{tpu_custom_call.1} parent=111 // loop_exit
            _
        $region112: #{tpu_custom_call.1} parent=83 // pred_fallthru
          _
        %v805 = vld [vmem:[#allocation13] sm:$0xff]
        %v806 = vld [vmem:[#allocation13 + $0x8] sm:$0xff]
        %v807 = vld [vmem:[#allocation13 + $0x10] sm:$0xff]
        %v808 = vld [vmem:[#allocation13 + $0x18] sm:$0xff]
        %v809 = vld [vmem:[#allocation13 + $0x20] sm:$0xff]
        %v810 = vld [vmem:[#allocation13 + $0x28] sm:$0xff]
        %v811 = vld [vmem:[#allocation13 + $0x30] sm:$0xff]
        %v812 = vld [vmem:[#allocation13 + $0x38] sm:$0xff]
        %v813 = vld [vmem:[#allocation13 + $0x40] sm:$0xff]
        %v814 = vld [vmem:[#allocation13 + $0x48] sm:$0xff]
        %v815 = vld [vmem:[#allocation13 + $0x50] sm:$0xff]
        %v816 = vld [vmem:[#allocation13 + $0x58] sm:$0xff]
        %v817 = vld [vmem:[#allocation13 + $0x60] sm:$0xff]
        %v818 = vld [vmem:[#allocation13 + $0x68] sm:$0xff]
        %v819 = vld [vmem:[#allocation13 + $0x70] sm:$0xff]
        %v820 = vld [vmem:[#allocation13 + $0x78] sm:$0xff]
        %v821 = vld [vmem:[%s2] sm:$0xff]
        %v822 = vld [vmem:[%s2 + $0x8] sm:$0xff]
        %v823 = vld [vmem:[%s2 + $0x10] sm:$0xff]
        %v824 = vld [vmem:[%s2 + $0x18] sm:$0xff]
        %v825 = vld [vmem:[%s2 + $0x20] sm:$0xff]
        %v826 = vld [vmem:[%s2 + $0x28] sm:$0xff]
        %v827 = vld [vmem:[%s2 + $0x30] sm:$0xff]
        %v828 = vld [vmem:[%s2 + $0x38] sm:$0xff]
        %v829 = vld [vmem:[%s2 + $0x40] sm:$0xff]
        %v830 = vld [vmem:[%s2 + $0x48] sm:$0xff]
        %v831 = vld [vmem:[%s2 + $0x50] sm:$0xff]
        %v832 = vld [vmem:[%s2 + $0x58] sm:$0xff]
        %v833 = vld [vmem:[%s2 + $0x60] sm:$0xff]
        %v834 = vld [vmem:[%s2 + $0x68] sm:$0xff]
        %v835 = vld [vmem:[%s2 + $0x70] sm:$0xff]
        %v836 = vld [vmem:[%s2 + $0x78] sm:$0xff]
        %v837 = vld [vmem:[%s3] sm:$0xff]
        %v838 = vld [vmem:[%s3 + $0x8] sm:$0xff]
        %v839 = vld [vmem:[%s3 + $0x10] sm:$0xff]
        %v840 = vld [vmem:[%s3 + $0x18] sm:$0xff]
        %v841 = vld [vmem:[%s3 + $0x20] sm:$0xff]
        %v842 = vld [vmem:[%s3 + $0x28] sm:$0xff]
        %v843 = vld [vmem:[%s3 + $0x30] sm:$0xff]
        %v844 = vld [vmem:[%s3 + $0x38] sm:$0xff]
        %v845 = vld [vmem:[%s3 + $0x40] sm:$0xff]
        %v846 = vld [vmem:[%s3 + $0x48] sm:$0xff]
        %v847 = vld [vmem:[%s3 + $0x50] sm:$0xff]
        %v848 = vld [vmem:[%s3 + $0x58] sm:$0xff]
        %v849 = vld [vmem:[%s3 + $0x60] sm:$0xff]
        %v850 = vld [vmem:[%s3 + $0x68] sm:$0xff]
        %v851 = vld [vmem:[%s3 + $0x70] sm:$0xff]
        %v852 = vld [vmem:[%s3 + $0x78] sm:$0xff]
        %v853 = vld [vmem:[#allocation7] sm:$0xff]
        %v854 = vld [vmem:[#allocation7 + $0x8] sm:$0xff]
        %v855 = vld [vmem:[#allocation7 + $0x10] sm:$0xff]
        %v856 = vld [vmem:[#allocation7 + $0x18] sm:$0xff]
        %v857 = vld [vmem:[#allocation7 + $0x20] sm:$0xff]
        %v858 = vld [vmem:[#allocation7 + $0x28] sm:$0xff]
        %v859 = vld [vmem:[#allocation7 + $0x30] sm:$0xff]
        %v860 = vld [vmem:[#allocation7 + $0x38] sm:$0xff]
        %v861 = vld [vmem:[#allocation7 + $0x40] sm:$0xff]
        %v862 = vld [vmem:[#allocation7 + $0x48] sm:$0xff]
        %v863 = vld [vmem:[#allocation7 + $0x50] sm:$0xff]
        %v864 = vld [vmem:[#allocation7 + $0x58] sm:$0xff]
        %v865 = vld [vmem:[#allocation7 + $0x60] sm:$0xff]
        %v866 = vld [vmem:[#allocation7 + $0x68] sm:$0xff]
        %v867 = vld [vmem:[#allocation7 + $0x70] sm:$0xff]
        %v868 = vld [vmem:[#allocation7 + $0x78] sm:$0xff]
        %v869 = vld [vmem:[%s765] sm:$0x1]
        %v870 = vld [vmem:[%s768] sm:$0x1]
        %871 = vadd.xlane.f32.xlu0 %v805
        %v872 = vpop.xlane.xlu0 %871
        %873 = vadd.xlane.f32.xlu0 %v806
        %v874 = vpop.xlane.xlu0 %873
        %875 = vadd.xlane.f32.xlu0 %v807
        %v876 = vpop.xlane.xlu0 %875
        %877 = vadd.xlane.f32.xlu0 %v808
        %v878 = vpop.xlane.xlu0 %877
        %879 = vadd.xlane.f32.xlu0 %v809
        %v880 = vpop.xlane.xlu0 %879
        %881 = vadd.xlane.f32.xlu0 %v810
        %v882 = vpop.xlane.xlu0 %881
        %883 = vadd.xlane.f32.xlu0 %v811
        %v884 = vpop.xlane.xlu0 %883
        %885 = vadd.xlane.f32.xlu0 %v812
        %v886 = vpop.xlane.xlu0 %885
        %887 = vadd.xlane.f32.xlu0 %v813
        %v888 = vpop.xlane.xlu0 %887
        %889 = vadd.xlane.f32.xlu0 %v814
        %v890 = vpop.xlane.xlu0 %889
        %891 = vadd.xlane.f32.xlu0 %v815
        %v892 = vpop.xlane.xlu0 %891
        %893 = vadd.xlane.f32.xlu0 %v816
        %v894 = vpop.xlane.xlu0 %893
        %895 = vadd.xlane.f32.xlu0 %v817
        %v896 = vpop.xlane.xlu0 %895
        %897 = vadd.xlane.f32.xlu0 %v818
        %v898 = vpop.xlane.xlu0 %897
        %899 = vadd.xlane.f32.xlu0 %v819
        %v900 = vpop.xlane.xlu0 %899
        %901 = vadd.xlane.f32.xlu0 %v820
        %v902 = vpop.xlane.xlu0 %901
        %v903 = vrcp.pop 128.0
        %v904 = vmul.f32 %v872, %v903
        %v905 = vmul.f32 %v874, %v903
        %v906 = vmul.f32 %v876, %v903
        %v907 = vmul.f32 %v878, %v903
        %v908 = vmul.f32 %v880, %v903
        %v909 = vmul.f32 %v882, %v903
        %v910 = vmul.f32 %v884, %v903
        %v911 = vmul.f32 %v886, %v903
        %v912 = vmul.f32 %v888, %v903
        %v913 = vmul.f32 %v890, %v903
        %v914 = vmul.f32 %v892, %v903
        %v915 = vmul.f32 %v894, %v903
        %v916 = vmul.f32 %v896, %v903
        %v917 = vmul.f32 %v898, %v903
        %v918 = vmul.f32 %v900, %v903
        %v919 = vmul.f32 %v902, %v903
        %v920 = vsub.f32 %v805, %v904
        %v921 = vsub.f32 %v806, %v905
        %v922 = vsub.f32 %v807, %v906
        %v923 = vsub.f32 %v808, %v907
        %v924 = vsub.f32 %v809, %v908
        %v925 = vsub.f32 %v810, %v909
        %v926 = vsub.f32 %v811, %v910
        %v927 = vsub.f32 %v812, %v911
        %v928 = vsub.f32 %v813, %v912
        %v929 = vsub.f32 %v814, %v913
        %v930 = vsub.f32 %v815, %v914
        %v931 = vsub.f32 %v816, %v915
        %v932 = vsub.f32 %v817, %v916
        %v933 = vsub.f32 %v818, %v917
        %v934 = vsub.f32 %v819, %v918
        %v935 = vsub.f32 %v820, %v919
        %v936 = vmul.f32 %v920, %v920
        %v937 = vmul.f32 %v921, %v921
        %v938 = vmul.f32 %v922, %v922
        %v939 = vmul.f32 %v923, %v923
        %v940 = vmul.f32 %v924, %v924
        %v941 = vmul.f32 %v925, %v925
        %v942 = vmul.f32 %v926, %v926
        %v943 = vmul.f32 %v927, %v927
        %v944 = vmul.f32 %v928, %v928
        %v945 = vmul.f32 %v929, %v929
        %v946 = vmul.f32 %v930, %v930
        %v947 = vmul.f32 %v931, %v931
        %v948 = vmul.f32 %v932, %v932
        %v949 = vmul.f32 %v933, %v933
        %v950 = vmul.f32 %v934, %v934
        %v951 = vmul.f32 %v935, %v935
        %952 = vadd.xlane.f32.xlu0 %v936
        %v953 = vpop.xlane.xlu0 %952
        %954 = vadd.xlane.f32.xlu0 %v937
        %v955 = vpop.xlane.xlu0 %954
        %956 = vadd.xlane.f32.xlu0 %v938
        %v957 = vpop.xlane.xlu0 %956
        %958 = vadd.xlane.f32.xlu0 %v939
        %v959 = vpop.xlane.xlu0 %958
        %960 = vadd.xlane.f32.xlu0 %v940
        %v961 = vpop.xlane.xlu0 %960
        %962 = vadd.xlane.f32.xlu0 %v941
        %v963 = vpop.xlane.xlu0 %962
        %964 = vadd.xlane.f32.xlu0 %v942
        %v965 = vpop.xlane.xlu0 %964
        %966 = vadd.xlane.f32.xlu0 %v943
        %v967 = vpop.xlane.xlu0 %966
        %968 = vadd.xlane.f32.xlu0 %v944
        %v969 = vpop.xlane.xlu0 %968
        %970 = vadd.xlane.f32.xlu0 %v945
        %v971 = vpop.xlane.xlu0 %970
        %972 = vadd.xlane.f32.xlu0 %v946
        %v973 = vpop.xlane.xlu0 %972
        %974 = vadd.xlane.f32.xlu0 %v947
        %v975 = vpop.xlane.xlu0 %974
        %976 = vadd.xlane.f32.xlu0 %v948
        %v977 = vpop.xlane.xlu0 %976
        %978 = vadd.xlane.f32.xlu0 %v949
        %v979 = vpop.xlane.xlu0 %978
        %980 = vadd.xlane.f32.xlu0 %v950
        %v981 = vpop.xlane.xlu0 %980
        %982 = vadd.xlane.f32.xlu0 %v951
        %v983 = vpop.xlane.xlu0 %982
        %v984 = vmul.f32 %v953, %v903
        %v985 = vmul.f32 %v955, %v903
        %v986 = vmul.f32 %v957, %v903
        %v987 = vmul.f32 %v959, %v903
        %v988 = vmul.f32 %v961, %v903
        %v989 = vmul.f32 %v963, %v903
        %v990 = vmul.f32 %v965, %v903
        %v991 = vmul.f32 %v967, %v903
        %v992 = vmul.f32 %v969, %v903
        %v993 = vmul.f32 %v971, %v903
        %v994 = vmul.f32 %v973, %v903
        %v995 = vmul.f32 %v975, %v903
        %v996 = vmul.f32 %v977, %v903
        %v997 = vmul.f32 %v979, %v903
        %v998 = vmul.f32 %v981, %v903
        %v999 = vmul.f32 %v983, %v903
        %v1000 = vadd.f32 %v984, 1e-05
        %v1001 = vadd.f32 %v985, 1e-05
        %v1002 = vadd.f32 %v986, 1e-05
        %v1003 = vadd.f32 %v987, 1e-05
        %v1004 = vadd.f32 %v988, 1e-05
        %v1005 = vadd.f32 %v989, 1e-05
        %v1006 = vadd.f32 %v990, 1e-05
        %v1007 = vadd.f32 %v991, 1e-05
        %v1008 = vadd.f32 %v992, 1e-05
        %v1009 = vadd.f32 %v993, 1e-05
        %v1010 = vadd.f32 %v994, 1e-05
        %v1011 = vadd.f32 %v995, 1e-05
        %v1012 = vadd.f32 %v996, 1e-05
        %v1013 = vadd.f32 %v997, 1e-05
        %v1014 = vadd.f32 %v998, 1e-05
        %v1015 = vadd.f32 %v999, 1e-05
        %v1016 = vrsqrt.pop %v1000
        %v1017 = vrsqrt.pop %v1001
        %v1018 = vrsqrt.pop %v1002
        %v1019 = vrsqrt.pop %v1003
        %v1020 = vrsqrt.pop %v1004
        %v1021 = vrsqrt.pop %v1005
        %v1022 = vrsqrt.pop %v1006
        %v1023 = vrsqrt.pop %v1007
        %v1024 = vrsqrt.pop %v1008
        %v1025 = vrsqrt.pop %v1009
        %v1026 = vrsqrt.pop %v1010
        %v1027 = vrsqrt.pop %v1011
        %v1028 = vrsqrt.pop %v1012
        %v1029 = vrsqrt.pop %v1013
        %v1030 = vrsqrt.pop %v1014
        %v1031 = vrsqrt.pop %v1015
        %v1032 = vmul.f32 %v920, %v1016
        %v1033 = vmul.f32 %v921, %v1017
        %v1034 = vmul.f32 %v922, %v1018
        %v1035 = vmul.f32 %v923, %v1019
        %v1036 = vmul.f32 %v924, %v1020
        %v1037 = vmul.f32 %v925, %v1021
        %v1038 = vmul.f32 %v926, %v1022
        %v1039 = vmul.f32 %v927, %v1023
        %v1040 = vmul.f32 %v928, %v1024
        %v1041 = vmul.f32 %v929, %v1025
        %v1042 = vmul.f32 %v930, %v1026
        %v1043 = vmul.f32 %v931, %v1027
        %v1044 = vmul.f32 %v932, %v1028
        %v1045 = vmul.f32 %v933, %v1029
        %v1046 = vmul.f32 %v934, %v1030
        %v1047 = vmul.f32 %v935, %v1031
        %v1049 = vlaneseq
        %v1050 = vshrl.u32 %v1049, 7
        %v1051 = vsub.s32 0, %v1050
        %v1052 = vrot.slane %v869, %v1051
        %v1054 = vmul.f32 %v1032, %v1052
        %v1055 = vmul.f32 %v1033, %v1052
        %v1056 = vmul.f32 %v1034, %v1052
        %v1057 = vmul.f32 %v1035, %v1052
        %v1058 = vmul.f32 %v1036, %v1052
        %v1059 = vmul.f32 %v1037, %v1052
        %v1060 = vmul.f32 %v1038, %v1052
        %v1061 = vmul.f32 %v1039, %v1052
        %v1062 = vmul.f32 %v1040, %v1052
        %v1063 = vmul.f32 %v1041, %v1052
        %v1064 = vmul.f32 %v1042, %v1052
        %v1065 = vmul.f32 %v1043, %v1052
        %v1066 = vmul.f32 %v1044, %v1052
        %v1067 = vmul.f32 %v1045, %v1052
        %v1068 = vmul.f32 %v1046, %v1052
        %v1069 = vmul.f32 %v1047, %v1052
        %v1071 = vlaneseq
        %v1072 = vshrl.u32 %v1071, 7
        %v1073 = vsub.s32 0, %v1072
        %v1074 = vrot.slane %v870, %v1073
        %v1076 = vadd.f32 %v1054, %v1074
        %v1077 = vadd.f32 %v1055, %v1074
        %v1078 = vadd.f32 %v1056, %v1074
        %v1079 = vadd.f32 %v1057, %v1074
        %v1080 = vadd.f32 %v1058, %v1074
        %v1081 = vadd.f32 %v1059, %v1074
        %v1082 = vadd.f32 %v1060, %v1074
        %v1083 = vadd.f32 %v1061, %v1074
        %v1084 = vadd.f32 %v1062, %v1074
        %v1085 = vadd.f32 %v1063, %v1074
        %v1086 = vadd.f32 %v1064, %v1074
        %v1087 = vadd.f32 %v1065, %v1074
        %v1088 = vadd.f32 %v1066, %v1074
        %v1089 = vadd.f32 %v1067, %v1074
        %v1090 = vadd.f32 %v1068, %v1074
        %v1091 = vadd.f32 %v1069, %v1074
        %v1092 = vadd.f32 %v1076, %v853
        %v1093 = vadd.f32 %v1077, %v854
        %v1094 = vadd.f32 %v1078, %v855
        %v1095 = vadd.f32 %v1079, %v856
        %v1096 = vadd.f32 %v1080, %v857
        %v1097 = vadd.f32 %v1081, %v858
        %v1098 = vadd.f32 %v1082, %v859
        %v1099 = vadd.f32 %v1083, %v860
        %v1100 = vadd.f32 %v1084, %v861
        %v1101 = vadd.f32 %v1085, %v862
        %v1102 = vadd.f32 %v1086, %v863
        %v1103 = vadd.f32 %v1087, %v864
        %v1104 = vadd.f32 %v1088, %v865
        %v1105 = vadd.f32 %v1089, %v866
        %v1106 = vadd.f32 %v1090, %v867
        %v1107 = vadd.f32 %v1091, %v868
        %v1108 = vpack.c.bf16 %v1093, %v1092
        %v1109 = vpack.c.bf16 %v1095, %v1094
        %v1110 = vpack.c.bf16 %v1097, %v1096
        %v1111 = vpack.c.bf16 %v1099, %v1098
        %v1112 = vpack.c.bf16 %v1101, %v1100
        %v1113 = vpack.c.bf16 %v1103, %v1102
        %v1114 = vpack.c.bf16 %v1105, %v1104
        %v1115 = vpack.c.bf16 %v1107, %v1106
        %v1116 = vld [vmem:[%s651] sm:$0xff]
        %v1117 = vld [vmem:[%s651 + $0x8] sm:$0xf]
        %v1118 = vld [vmem:[%s651 + $0xc] sm:$0xff]
        %v1119 = vld [vmem:[%s651 + $0x14] sm:$0xf]
        %v1120 = vld [vmem:[%s651 + $0x18] sm:$0xff]
        %v1121 = vld [vmem:[%s651 + $0x20] sm:$0xf]
        %v1122 = vld [vmem:[%s651 + $0x24] sm:$0xff]
        %v1123 = vld [vmem:[%s651 + $0x2c] sm:$0xf]
        %v1124 = vld [vmem:[%s651 + $0x30] sm:$0xff]
        %v1125 = vld [vmem:[%s651 + $0x38] sm:$0xf]
        %v1126 = vld [vmem:[%s651 + $0x3c] sm:$0xff]
        %v1127 = vld [vmem:[%s651 + $0x44] sm:$0xf]
        %v1128 = vld [vmem:[%s651 + $0x48] sm:$0xff]
        %v1129 = vld [vmem:[%s651 + $0x50] sm:$0xf]
        %v1130 = vld [vmem:[%s651 + $0x54] sm:$0xff]
        %v1131 = vld [vmem:[%s651 + $0x5c] sm:$0xf]
        %v1132 = vld [vmem:[%s651 + $0x60] sm:$0xff]
        %v1133 = vld [vmem:[%s651 + $0x68] sm:$0xf]
        %v1134 = vld [vmem:[%s651 + $0x6c] sm:$0xff]
        %v1135 = vld [vmem:[%s651 + $0x74] sm:$0xf]
        %v1136 = vld [vmem:[%s651 + $0x78] sm:$0xff]
        %v1137 = vld [vmem:[%s651 + $0x80] sm:$0xf]
        %v1138 = vld [vmem:[%s651 + $0x84] sm:$0xff]
        %v1139 = vld [vmem:[%s651 + $0x8c] sm:$0xf]
        %v1140 = vld [vmem:[%s651 + $0x90] sm:$0xff]
        %v1141 = vld [vmem:[%s651 + $0x98] sm:$0xf]
        %v1142 = vld [vmem:[%s651 + $0x9c] sm:$0xff]
        %v1143 = vld [vmem:[%s651 + $0xa4] sm:$0xf]
        %v1144 = vld [vmem:[%s651 + $0xa8] sm:$0xff]
        %v1145 = vld [vmem:[%s651 + $0xb0] sm:$0xf]
        %v1146 = vld [vmem:[%s651 + $0xb4] sm:$0xff]
        %v1147 = vld [vmem:[%s651 + $0xbc] sm:$0xf]
        %v1148 = vld [vmem:[%s772] sm:$0x7]
        %v1150 = vlaneseq
        %v1151 = vshrl.u32 %v1150, 7
        %v1152 = vsub.s32 0, %v1151
        %v1153 = vrot.slane %v1148, %v1152
        %v1154 = vlaneseq
        %v1155 = vshrl.u32 %v1154, 7
        %v1156 = vsub.s32 1, %v1155
        %v1157 = vrot.slane %v1148, %v1156
        %v1158 = vlaneseq
        %v1159 = vshrl.u32 %v1158, 7
        %v1160 = vsub.s32 2, %v1159
        %v1161 = vrot.slane %v1148, %v1160
        %v1197 = vunpack.c.l.b16 %v1116
        %v1198 = vunpack.c.h.b16 %v1116
        %v1199 = vunpack.c.l.b16 %v1117
        %v1200 = vunpack.c.l.b16 %v1118
        %v1201 = vunpack.c.h.b16 %v1118
        %v1202 = vunpack.c.l.b16 %v1119
        %v1203 = vunpack.c.l.b16 %v1120
        %v1204 = vunpack.c.h.b16 %v1120
        %v1205 = vunpack.c.l.b16 %v1121
        %v1206 = vunpack.c.l.b16 %v1122
        %v1207 = vunpack.c.h.b16 %v1122
        %v1208 = vunpack.c.l.b16 %v1123
        %v1209 = vunpack.c.l.b16 %v1124
        %v1210 = vunpack.c.h.b16 %v1124
        %v1211 = vunpack.c.l.b16 %v1125
        %v1212 = vunpack.c.l.b16 %v1126
        %v1213 = vunpack.c.h.b16 %v1126
        %v1214 = vunpack.c.l.b16 %v1127
        %v1215 = vunpack.c.l.b16 %v1128
        %v1216 = vunpack.c.h.b16 %v1128
        %v1217 = vunpack.c.l.b16 %v1129
        %v1218 = vunpack.c.l.b16 %v1130
        %v1219 = vunpack.c.h.b16 %v1130
        %v1220 = vunpack.c.l.b16 %v1131
        %v1221 = vunpack.c.l.b16 %v1132
        %v1222 = vunpack.c.h.b16 %v1132
        %v1223 = vunpack.c.l.b16 %v1133
        %v1224 = vunpack.c.l.b16 %v1134
        %v1225 = vunpack.c.h.b16 %v1134
        %v1226 = vunpack.c.l.b16 %v1135
        %v1227 = vunpack.c.l.b16 %v1136
        %v1228 = vunpack.c.h.b16 %v1136
        %v1229 = vunpack.c.l.b16 %v1137
        %v1230 = vunpack.c.l.b16 %v1138
        %v1231 = vunpack.c.h.b16 %v1138
        %v1232 = vunpack.c.l.b16 %v1139
        %v1233 = vunpack.c.l.b16 %v1140
        %v1234 = vunpack.c.h.b16 %v1140
        %v1235 = vunpack.c.l.b16 %v1141
        %v1236 = vunpack.c.l.b16 %v1142
        %v1237 = vunpack.c.h.b16 %v1142
        %v1238 = vunpack.c.l.b16 %v1143
        %v1239 = vunpack.c.l.b16 %v1144
        %v1240 = vunpack.c.h.b16 %v1144
        %v1241 = vunpack.c.l.b16 %v1145
        %v1242 = vunpack.c.l.b16 %v1146
        %v1243 = vunpack.c.h.b16 %v1146
        %v1244 = vunpack.c.l.b16 %v1147
        %v1245 = vpack.c.b16 %v1200, %v1197
        %v1246 = vpack.c.b16 %v1201, %v1198
        %v1247 = vpack.c.b16 %v1202, %v1199
        %v1248 = vpack.c.b16 %v1206, %v1203
        %v1249 = vpack.c.b16 %v1207, %v1204
        %v1250 = vpack.c.b16 %v1208, %v1205
        %v1251 = vpack.c.b16 %v1212, %v1209
        %v1252 = vpack.c.b16 %v1213, %v1210
        %v1253 = vpack.c.b16 %v1214, %v1211
        %v1254 = vpack.c.b16 %v1218, %v1215
        %v1255 = vpack.c.b16 %v1219, %v1216
        %v1256 = vpack.c.b16 %v1220, %v1217
        %v1257 = vpack.c.b16 %v1224, %v1221
        %v1258 = vpack.c.b16 %v1225, %v1222
        %v1259 = vpack.c.b16 %v1226, %v1223
        %v1260 = vpack.c.b16 %v1230, %v1227
        %v1261 = vpack.c.b16 %v1231, %v1228
        %v1262 = vpack.c.b16 %v1232, %v1229
        %v1263 = vpack.c.b16 %v1236, %v1233
        %v1264 = vpack.c.b16 %v1237, %v1234
        %v1265 = vpack.c.b16 %v1238, %v1235
        %v1266 = vpack.c.b16 %v1242, %v1239
        %v1267 = vpack.c.b16 %v1243, %v1240
        %v1268 = vpack.c.b16 %v1244, %v1241
        %1293 = vmatprep.subr.bf16.mxu0 %v1246
        %1294 = vmatpush1.bf16.msra.mxu0 %v1245
        %1295 = vmatprep.subr.bf16.mxu0 %v1249
        %1296 = vmatpush1.bf16.msra.mxu0 %v1248
        %1297 = vmatprep.subr.bf16.mxu0 %v1252
        %1298 = vmatpush1.bf16.msra.mxu0 %v1251
        %1299 = vmatprep.subr.bf16.mxu0 %v1255
        %1300 = vmatpush1.bf16.msra.mxu0 %v1254
        %1301 = vmatprep.subr.bf16.mxu0 %v1258
        %1302 = vmatpush1.bf16.msra.mxu0 %v1257
        %1303 = vmatprep.subr.bf16.mxu0 %v1261
        %1304 = vmatpush1.bf16.msra.mxu0 %v1260
        %1305 = vmatprep.subr.bf16.mxu0 %v1264
        %1306 = vmatpush1.bf16.msra.mxu0 %v1263
        %1307 = vmatprep.subr.bf16.mxu0 %v1267
        %1308 = vmatpush1.bf16.msra.mxu0 %v1266
        %1309 = vmatprep.subr.bf16.mxu0 0
        %1310 = vmatpush1.bf16.msra.mxu0 0
        %1311 = vmatprep.subr.bf16.mxu0 0
        %1312 = vmatpush1.bf16.msra.mxu0 0
        %1313 = vmatprep.subr.bf16.mxu0 0
        %1314 = vmatpush1.bf16.msra.mxu0 0
        %1315 = vmatprep.subr.bf16.mxu0 0
        %1316 = vmatpush1.bf16.msra.mxu0 0
        %1317 = vmatprep.subr.bf16.mxu0 0
        %1318 = vmatpush1.bf16.msra.mxu0 0
        %1319 = vmatprep.subr.bf16.mxu0 0
        %1320 = vmatpush1.bf16.msra.mxu0 0
        %1321 = vmatprep.subr.bf16.mxu0 0
        %1322 = vmatpush1.bf16.msra.mxu0 0
        %1323 = vmatprep.subr.bf16.mxu0 0
        %1324 = vmatpush1.bf16.msra.mxu0 0
        %1325 = vmatprep.mubr.bf16.mxu0 0
        %1326 = vmatmul.mubr.bf16.gmra.mrb[0].mxu0 %v1108
        %v1327 = vpop.f32.mrb[0].mxu0
        %v1328 = vadd.f32 %v1153, %v1327
        %v1329 = vpop.f32.mrb[0].mxu0
        %v1330 = vadd.f32 %v1157, %v1329
        %v1331 = vpop.f32.mrb[0].mxu0
        %v1332 = vadd.f32 %v1153, %v1331
        %v1333 = vpop.f32.mrb[0].mxu0
        %v1334 = vadd.f32 %v1157, %v1333
        %1335 = vmatprep.mubr.bf16.mxu0 0
        %1336 = vmatmul.mubr.bf16.gmra.mrb[0].mxu0 %v1109
        %v1337 = vpop.f32.mrb[0].mxu0
        %v1338 = vadd.f32 %v1153, %v1337
        %v1339 = vpop.f32.mrb[0].mxu0
        %v1340 = vadd.f32 %v1157, %v1339
        %v1341 = vpop.f32.mrb[0].mxu0
        %v1342 = vadd.f32 %v1153, %v1341
        %v1343 = vpop.f32.mrb[0].mxu0
        %v1344 = vadd.f32 %v1157, %v1343
        %1345 = vmatprep.mubr.bf16.mxu0 0
        %1346 = vmatmul.mubr.bf16.gmra.mrb[0].mxu0 %v1110
        %v1347 = vpop.f32.mrb[0].mxu0
        %v1348 = vadd.f32 %v1153, %v1347
        %v1349 = vpop.f32.mrb[0].mxu0
        %v1350 = vadd.f32 %v1157, %v1349
        %v1351 = vpop.f32.mrb[0].mxu0
        %v1352 = vadd.f32 %v1153, %v1351
        %v1353 = vpop.f32.mrb[0].mxu0
        %v1354 = vadd.f32 %v1157, %v1353
        %1355 = vmatprep.mubr.bf16.mxu0 0
        %1356 = vmatmul.mubr.bf16.gmra.mrb[0].mxu0 %v1111
        %v1357 = vpop.f32.mrb[0].mxu0
        %v1358 = vadd.f32 %v1153, %v1357
        %v1359 = vpop.f32.mrb[0].mxu0
        %v1360 = vadd.f32 %v1157, %v1359
        %v1361 = vpop.f32.mrb[0].mxu0
        %v1362 = vadd.f32 %v1153, %v1361
        %v1363 = vpop.f32.mrb[0].mxu0
        %v1364 = vadd.f32 %v1157, %v1363
        %1365 = vmatprep.mubr.bf16.mxu0 0
        %1366 = vmatmul.mubr.bf16.gmra.mrb[0].mxu0 %v1112
        %v1367 = vpop.f32.mrb[0].mxu0
        %v1368 = vadd.f32 %v1153, %v1367
        %v1369 = vpop.f32.mrb[0].mxu0
        %v1370 = vadd.f32 %v1157, %v1369
        %v1371 = vpop.f32.mrb[0].mxu0
        %v1372 = vadd.f32 %v1153, %v1371
        %v1373 = vpop.f32.mrb[0].mxu0
        %v1374 = vadd.f32 %v1157, %v1373
        %1375 = vmatprep.mubr.bf16.mxu0 0
        %1376 = vmatmul.mubr.bf16.gmra.mrb[0].mxu0 %v1113
        %v1377 = vpop.f32.mrb[0].mxu0
        %v1378 = vadd.f32 %v1153, %v1377
        %v1379 = vpop.f32.mrb[0].mxu0
        %v1380 = vadd.f32 %v1157, %v1379
        %v1381 = vpop.f32.mrb[0].mxu0
        %v1382 = vadd.f32 %v1153, %v1381
        %v1383 = vpop.f32.mrb[0].mxu0
        %v1384 = vadd.f32 %v1157, %v1383
        %1385 = vmatprep.mubr.bf16.mxu0 0
        %1386 = vmatmul.mubr.bf16.gmra.mrb[0].mxu0 %v1114
        %v1387 = vpop.f32.mrb[0].mxu0
        %v1388 = vadd.f32 %v1153, %v1387
        %v1389 = vpop.f32.mrb[0].mxu0
        %v1390 = vadd.f32 %v1157, %v1389
        %v1391 = vpop.f32.mrb[0].mxu0
        %v1392 = vadd.f32 %v1153, %v1391
        %v1393 = vpop.f32.mrb[0].mxu0
        %v1394 = vadd.f32 %v1157, %v1393
        %1395 = vmatprep.mubr.bf16.mxu0 0
        %1396 = vmatmul.mubr.bf16.gmra.mrb[0].mxu0 %v1115
        %v1397 = vpop.f32.mrb[0].mxu0
        %v1398 = vadd.f32 %v1153, %v1397
        %v1399 = vpop.f32.mrb[0].mxu0
        %v1400 = vadd.f32 %v1157, %v1399
        %v1401 = vpop.f32.mrb[0].mxu0
        %v1402 = vadd.f32 %v1153, %v1401
        %v1403 = vpop.f32.mrb[0].mxu0
        %v1404 = vadd.f32 %v1157, %v1403
        %1405 = vdwg.mxu0
        %1406 = vmatprep.subr.bf16.mxu0 0
        %1407 = vmatpush1.bf16.msra.mxu0 %v1247
        %1408 = vmatprep.subr.bf16.mxu0 0
        %1409 = vmatpush1.bf16.msra.mxu0 %v1250
        %1410 = vmatprep.subr.bf16.mxu0 0
        %1411 = vmatpush1.bf16.msra.mxu0 %v1253
        %1412 = vmatprep.subr.bf16.mxu0 0
        %1413 = vmatpush1.bf16.msra.mxu0 %v1256
        %1414 = vmatprep.subr.bf16.mxu0 0
        %1415 = vmatpush1.bf16.msra.mxu0 %v1259
        %1416 = vmatprep.subr.bf16.mxu0 0
        %1417 = vmatpush1.bf16.msra.mxu0 %v1262
        %1418 = vmatprep.subr.bf16.mxu0 0
        %1419 = vmatpush1.bf16.msra.mxu0 %v1265
        %1420 = vmatprep.subr.bf16.mxu0 0
        %1421 = vmatpush1.bf16.msra.mxu0 %v1268
        %1422 = vmatprep.subr.bf16.mxu0 0
        %1423 = vmatpush1.bf16.msra.mxu0 0
        %1424 = vmatprep.subr.bf16.mxu0 0
        %1425 = vmatpush1.bf16.msra.mxu0 0
        %1426 = vmatprep.subr.bf16.mxu0 0
        %1427 = vmatpush1.bf16.msra.mxu0 0
        %1428 = vmatprep.subr.bf16.mxu0 0
        %1429 = vmatpush1.bf16.msra.mxu0 0
        %1430 = vmatprep.subr.bf16.mxu0 0
        %1431 = vmatpush1.bf16.msra.mxu0 0
        %1432 = vmatprep.subr.bf16.mxu0 0
        %1433 = vmatpush1.bf16.msra.mxu0 0
        %1434 = vmatprep.subr.bf16.mxu0 0
        %1435 = vmatpush1.bf16.msra.mxu0 0
        %1436 = vmatprep.subr.bf16.mxu0 0
        %1437 = vmatpush1.bf16.msra.mxu0 0
        %1438 = vmatprep.mubr.bf16.mxu0 0
        %1439 = vmatmul.mubr.bf16.gmra.mrb[0].mxu0 %v1108
        %v1440 = vpop.f32.mrb[0].mxu0
        %v1441 = vadd.f32 %v1161, %v1440
        %v1442 = vpop.f32.mrb[0].mxu0
        %v1443 = vpop.f32.mrb[0].mxu0
        %v1444 = vadd.f32 %v1161, %v1443
        %v1445 = vpop.f32.mrb[0].mxu0
        %1446 = vmatprep.mubr.bf16.mxu0 0
        %1447 = vmatmul.mubr.bf16.gmra.mrb[0].mxu0 %v1109
        %v1448 = vpop.f32.mrb[0].mxu0
        %v1449 = vadd.f32 %v1161, %v1448
        %v1450 = vpop.f32.mrb[0].mxu0
        %v1451 = vpop.f32.mrb[0].mxu0
        %v1452 = vadd.f32 %v1161, %v1451
        %v1453 = vpop.f32.mrb[0].mxu0
        %1454 = vmatprep.mubr.bf16.mxu0 0
        %1455 = vmatmul.mubr.bf16.gmra.mrb[0].mxu0 %v1110
        %v1456 = vpop.f32.mrb[0].mxu0
        %v1457 = vadd.f32 %v1161, %v1456
        %v1458 = vpop.f32.mrb[0].mxu0
        %v1459 = vpop.f32.mrb[0].mxu0
        %v1460 = vadd.f32 %v1161, %v1459
        %v1461 = vpop.f32.mrb[0].mxu0
        %1462 = vmatprep.mubr.bf16.mxu0 0
        %1463 = vmatmul.mubr.bf16.gmra.mrb[0].mxu0 %v1111
        %v1464 = vpop.f32.mrb[0].mxu0
        %v1465 = vadd.f32 %v1161, %v1464
        %v1466 = vpop.f32.mrb[0].mxu0
        %v1467 = vpop.f32.mrb[0].mxu0
        %v1468 = vadd.f32 %v1161, %v1467
        %v1469 = vpop.f32.mrb[0].mxu0
        %1470 = vmatprep.mubr.bf16.mxu0 0
        %1471 = vmatmul.mubr.bf16.gmra.mrb[0].mxu0 %v1112
        %v1472 = vpop.f32.mrb[0].mxu0
        %v1473 = vadd.f32 %v1161, %v1472
        %v1474 = vpop.f32.mrb[0].mxu0
        %v1475 = vpop.f32.mrb[0].mxu0
        %v1476 = vadd.f32 %v1161, %v1475
        %v1477 = vpop.f32.mrb[0].mxu0
        %1478 = vmatprep.mubr.bf16.mxu0 0
        %1479 = vmatmul.mubr.bf16.gmra.mrb[0].mxu0 %v1113
        %v1480 = vpop.f32.mrb[0].mxu0
        %v1481 = vadd.f32 %v1161, %v1480
        %v1482 = vpop.f32.mrb[0].mxu0
        %v1483 = vpop.f32.mrb[0].mxu0
        %v1484 = vadd.f32 %v1161, %v1483
        %v1485 = vpop.f32.mrb[0].mxu0
        %1486 = vmatprep.mubr.bf16.mxu0 0
        %1487 = vmatmul.mubr.bf16.gmra.mrb[0].mxu0 %v1114
        %v1488 = vpop.f32.mrb[0].mxu0
        %v1489 = vadd.f32 %v1161, %v1488
        %v1490 = vpop.f32.mrb[0].mxu0
        %v1491 = vpop.f32.mrb[0].mxu0
        %v1492 = vadd.f32 %v1161, %v1491
        %v1493 = vpop.f32.mrb[0].mxu0
        %1494 = vmatprep.mubr.bf16.mxu0 0
        %1495 = vmatmul.mubr.bf16.gmra.mrb[0].mxu0 %v1115
        %v1496 = vpop.f32.mrb[0].mxu0
        %v1497 = vadd.f32 %v1161, %v1496
        %v1498 = vpop.f32.mrb[0].mxu0
        %v1499 = vpop.f32.mrb[0].mxu0
        %v1500 = vadd.f32 %v1161, %v1499
        %v1501 = vpop.f32.mrb[0].mxu0
        %1502 = vdwg.mxu0
        %v1503 = vpack.c.bf16 %v1332, %v1328
        %v1504 = vpack.c.bf16 %v1334, %v1330
        %v1505 = vpack.c.bf16 %v1444, %v1441
        %v1506 = vpack.c.bf16 %v1342, %v1338
        %v1507 = vpack.c.bf16 %v1344, %v1340
        %v1508 = vpack.c.bf16 %v1452, %v1449
        %v1509 = vpack.c.bf16 %v1352, %v1348
        %v1510 = vpack.c.bf16 %v1354, %v1350
        %v1511 = vpack.c.bf16 %v1460, %v1457
        %v1512 = vpack.c.bf16 %v1362, %v1358
        %v1513 = vpack.c.bf16 %v1364, %v1360
        %v1514 = vpack.c.bf16 %v1468, %v1465
        %v1515 = vpack.c.bf16 %v1372, %v1368
        %v1516 = vpack.c.bf16 %v1374, %v1370
        %v1517 = vpack.c.bf16 %v1476, %v1473
        %v1518 = vpack.c.bf16 %v1382, %v1378
        %v1519 = vpack.c.bf16 %v1384, %v1380
        %v1520 = vpack.c.bf16 %v1484, %v1481
        %v1521 = vpack.c.bf16 %v1392, %v1388
        %v1522 = vpack.c.bf16 %v1394, %v1390
        %v1523 = vpack.c.bf16 %v1492, %v1489
        %v1524 = vpack.c.bf16 %v1402, %v1398
        %v1525 = vpack.c.bf16 %v1404, %v1400
        %v1526 = vpack.c.bf16 %v1500, %v1497
        %vm1527 = vcmask 261120
        %v1529 = vsel %vm1527, %v1503, 0
        %v1532 = vsel %vm1527, %v1506, 0
        %v1535 = vsel %vm1527, %v1509, 0
        %v1538 = vsel %vm1527, %v1512, 0
        %v1541 = vsel %vm1527, %v1515, 0
        %v1544 = vsel %vm1527, %v1518, 0
        %v1547 = vsel %vm1527, %v1521, 0
        %v1550 = vsel %vm1527, %v1524, 0
        %v1553 = vsel %vm1527, %v1504, 0
        %v1556 = vsel %vm1527, %v1507, 0
        %v1559 = vsel %vm1527, %v1510, 0
        %v1562 = vsel %vm1527, %v1513, 0
        %v1565 = vsel %vm1527, %v1516, 0
        %v1568 = vsel %vm1527, %v1519, 0
        %v1571 = vsel %vm1527, %v1522, 0
        %v1574 = vsel %vm1527, %v1525, 0
        %1576 = vmatprep.subr.bf16.mxu0 0
        %1577 = vmatpush1.bf16.xpose.msra.mxu0 %v1553
        %1578 = vmatprep.subr.bf16.mxu0 0
        %1579 = vmatpush1.bf16.xpose.msra.mxu0 %v1556
        %1580 = vmatprep.subr.bf16.mxu0 0
        %1581 = vmatpush1.bf16.xpose.msra.mxu0 %v1559
        %1582 = vmatprep.subr.bf16.mxu0 0
        %1583 = vmatpush1.bf16.xpose.msra.mxu0 %v1562
        %1584 = vmatprep.subr.bf16.mxu0 0
        %1585 = vmatpush1.bf16.xpose.msra.mxu0 %v1565
        %1586 = vmatprep.subr.bf16.mxu0 0
        %1587 = vmatpush1.bf16.xpose.msra.mxu0 %v1568
        %1588 = vmatprep.subr.bf16.mxu0 0
        %1589 = vmatpush1.bf16.xpose.msra.mxu0 %v1571
        %1590 = vmatprep.subr.bf16.mxu0 0
        %1591 = vmatpush1.bf16.xpose.msra.mxu0 %v1574
        %1592 = vmatprep.subr.bf16.mxu0 0
        %1593 = vmatpush1.bf16.xpose.msra.mxu0 0
        %1594 = vmatprep.subr.bf16.mxu0 0
        %1595 = vmatpush1.bf16.xpose.msra.mxu0 0
        %1596 = vmatprep.subr.bf16.mxu0 0
        %1597 = vmatpush1.bf16.xpose.msra.mxu0 0
        %1598 = vmatprep.subr.bf16.mxu0 0
        %1599 = vmatpush1.bf16.xpose.msra.mxu0 0
        %1600 = vmatprep.subr.bf16.mxu0 0
        %1601 = vmatpush1.bf16.xpose.msra.mxu0 0
        %1602 = vmatprep.subr.bf16.mxu0 0
        %1603 = vmatpush1.bf16.xpose.msra.mxu0 0
        %1604 = vmatprep.subr.bf16.mxu0 0
        %1605 = vmatpush1.bf16.xpose.msra.mxu0 0
        %1606 = vmatprep.subr.bf16.mxu0 0
        %1607 = vmatpush1.bf16.xpose.msra.mxu0 0
        %1608 = vmatprep.mubr.bf16.mxu0 0
        %1609 = vmatmul.mubr.bf16.gmra.mrb[0].mxu0 %v1529
        %v1610 = vpop.f32.mrb[0].mxu0
        %v1611 = vadd.f32 %v837, %v1610
        %v1612 = vpop.f32.mrb[0].mxu0
        %v1613 = vpop.f32.mrb[0].mxu0
        %v1614 = vadd.f32 %v838, %v1613
        %v1615 = vpop.f32.mrb[0].mxu0
        %1616 = vmatprep.mubr.bf16.mxu0 0
        %1617 = vmatmul.mubr.bf16.gmra.mrb[0].mxu0 %v1532
        %v1618 = vpop.f32.mrb[0].mxu0
        %v1619 = vadd.f32 %v839, %v1618
        %v1620 = vpop.f32.mrb[0].mxu0
        %v1621 = vpop.f32.mrb[0].mxu0
        %v1622 = vadd.f32 %v840, %v1621
        %v1623 = vpop.f32.mrb[0].mxu0
        %1624 = vmatprep.mubr.bf16.mxu0 0
        %1625 = vmatmul.mubr.bf16.gmra.mrb[0].mxu0 %v1535
        %v1626 = vpop.f32.mrb[0].mxu0
        %v1627 = vadd.f32 %v841, %v1626
        %v1628 = vpop.f32.mrb[0].mxu0
        %v1629 = vpop.f32.mrb[0].mxu0
        %v1630 = vadd.f32 %v842, %v1629
        %v1631 = vpop.f32.mrb[0].mxu0
        %1632 = vmatprep.mubr.bf16.mxu0 0
        %1633 = vmatmul.mubr.bf16.gmra.mrb[0].mxu0 %v1538
        %v1634 = vpop.f32.mrb[0].mxu0
        %v1635 = vadd.f32 %v843, %v1634
        %v1636 = vpop.f32.mrb[0].mxu0
        %v1637 = vpop.f32.mrb[0].mxu0
        %v1638 = vadd.f32 %v844, %v1637
        %v1639 = vpop.f32.mrb[0].mxu0
        %1640 = vmatprep.mubr.bf16.mxu0 0
        %1641 = vmatmul.mubr.bf16.gmra.mrb[0].mxu0 %v1541
        %v1642 = vpop.f32.mrb[0].mxu0
        %v1643 = vadd.f32 %v845, %v1642
        %v1644 = vpop.f32.mrb[0].mxu0
        %v1645 = vpop.f32.mrb[0].mxu0
        %v1646 = vadd.f32 %v846, %v1645
        %v1647 = vpop.f32.mrb[0].mxu0
        %1648 = vmatprep.mubr.bf16.mxu0 0
        %1649 = vmatmul.mubr.bf16.gmra.mrb[0].mxu0 %v1544
        %v1650 = vpop.f32.mrb[0].mxu0
        %v1651 = vadd.f32 %v847, %v1650
        %v1652 = vpop.f32.mrb[0].mxu0
        %v1653 = vpop.f32.mrb[0].mxu0
        %v1654 = vadd.f32 %v848, %v1653
        %v1655 = vpop.f32.mrb[0].mxu0
        %1656 = vmatprep.mubr.bf16.mxu0 0
        %1657 = vmatmul.mubr.bf16.gmra.mrb[0].mxu0 %v1547
        %v1658 = vpop.f32.mrb[0].mxu0
        %v1659 = vadd.f32 %v849, %v1658
        %v1660 = vpop.f32.mrb[0].mxu0
        %v1661 = vpop.f32.mrb[0].mxu0
        %v1662 = vadd.f32 %v850, %v1661
        %v1663 = vpop.f32.mrb[0].mxu0
        %1664 = vmatprep.mubr.bf16.mxu0 0
        %1665 = vmatmul.mubr.bf16.gmra.mrb[0].mxu0 %v1550
        %v1666 = vpop.f32.mrb[0].mxu0
        %v1667 = vadd.f32 %v851, %v1666
        %v1668 = vpop.f32.mrb[0].mxu0
        %v1669 = vpop.f32.mrb[0].mxu0
        %v1670 = vadd.f32 %v852, %v1669
        %v1671 = vpop.f32.mrb[0].mxu0
        %1672 = vdwg.mxu0
        %1673 = vmax.xlane.f32.xlu0 %v1611
        %v1674 = vpop.xlane.xlu0 %1673
        %1675 = vmax.xlane.f32.xlu0 %v1614
        %v1676 = vpop.xlane.xlu0 %1675
        %1677 = vmax.xlane.f32.xlu0 %v1619
        %v1678 = vpop.xlane.xlu0 %1677
        %1679 = vmax.xlane.f32.xlu0 %v1622
        %v1680 = vpop.xlane.xlu0 %1679
        %1681 = vmax.xlane.f32.xlu0 %v1627
        %v1682 = vpop.xlane.xlu0 %1681
        %1683 = vmax.xlane.f32.xlu0 %v1630
        %v1684 = vpop.xlane.xlu0 %1683
        %1685 = vmax.xlane.f32.xlu0 %v1635
        %v1686 = vpop.xlane.xlu0 %1685
        %1687 = vmax.xlane.f32.xlu0 %v1638
        %v1688 = vpop.xlane.xlu0 %1687
        %1689 = vmax.xlane.f32.xlu0 %v1643
        %v1690 = vpop.xlane.xlu0 %1689
        %1691 = vmax.xlane.f32.xlu0 %v1646
        %v1692 = vpop.xlane.xlu0 %1691
        %1693 = vmax.xlane.f32.xlu0 %v1651
        %v1694 = vpop.xlane.xlu0 %1693
        %1695 = vmax.xlane.f32.xlu0 %v1654
        %v1696 = vpop.xlane.xlu0 %1695
        %1697 = vmax.xlane.f32.xlu0 %v1659
        %v1698 = vpop.xlane.xlu0 %1697
        %1699 = vmax.xlane.f32.xlu0 %v1662
        %v1700 = vpop.xlane.xlu0 %1699
        %1701 = vmax.xlane.f32.xlu0 %v1667
        %v1702 = vpop.xlane.xlu0 %1701
        %1703 = vmax.xlane.f32.xlu0 %v1670
        %v1704 = vpop.xlane.xlu0 %1703
        %v1705 = vsub.f32 %v1611, %v1674
        %v1706 = vsub.f32 %v1614, %v1676
        %v1707 = vsub.f32 %v1619, %v1678
        %v1708 = vsub.f32 %v1622, %v1680
        %v1709 = vsub.f32 %v1627, %v1682
        %v1710 = vsub.f32 %v1630, %v1684
        %v1711 = vsub.f32 %v1635, %v1686
        %v1712 = vsub.f32 %v1638, %v1688
        %v1713 = vsub.f32 %v1643, %v1690
        %v1714 = vsub.f32 %v1646, %v1692
        %v1715 = vsub.f32 %v1651, %v1694
        %v1716 = vsub.f32 %v1654, %v1696
        %v1717 = vsub.f32 %v1659, %v1698
        %v1718 = vsub.f32 %v1662, %v1700
        %v1719 = vsub.f32 %v1667, %v1702
        %v1720 = vsub.f32 %v1670, %v1704
        %v1721 = vmul.f32 %v1705, 1.442695
        %v1722 = vpow.pop %v1721
        %v1723 = vmul.f32 %v1706, 1.442695
        %v1724 = vpow.pop %v1723
        %v1725 = vmul.f32 %v1707, 1.442695
        %v1726 = vpow.pop %v1725
        %v1727 = vmul.f32 %v1708, 1.442695
        %v1728 = vpow.pop %v1727
        %v1729 = vmul.f32 %v1709, 1.442695
        %v1730 = vpow.pop %v1729
        %v1731 = vmul.f32 %v1710, 1.442695
        %v1732 = vpow.pop %v1731
        %v1733 = vmul.f32 %v1711, 1.442695
        %v1734 = vpow.pop %v1733
        %v1735 = vmul.f32 %v1712, 1.442695
        %v1736 = vpow.pop %v1735
        %v1737 = vmul.f32 %v1713, 1.442695
        %v1738 = vpow.pop %v1737
        %v1739 = vmul.f32 %v1714, 1.442695
        %v1740 = vpow.pop %v1739
        %v1741 = vmul.f32 %v1715, 1.442695
        %v1742 = vpow.pop %v1741
        %v1743 = vmul.f32 %v1716, 1.442695
        %v1744 = vpow.pop %v1743
        %v1745 = vmul.f32 %v1717, 1.442695
        %v1746 = vpow.pop %v1745
        %v1747 = vmul.f32 %v1718, 1.442695
        %v1748 = vpow.pop %v1747
        %v1749 = vmul.f32 %v1719, 1.442695
        %v1750 = vpow.pop %v1749
        %v1751 = vmul.f32 %v1720, 1.442695
        %v1752 = vpow.pop %v1751
        %1753 = vadd.xlane.f32.xlu0 %v1722
        %v1754 = vpop.xlane.xlu0 %1753
        %1755 = vadd.xlane.f32.xlu0 %v1724
        %v1756 = vpop.xlane.xlu0 %1755
        %1757 = vadd.xlane.f32.xlu0 %v1726
        %v1758 = vpop.xlane.xlu0 %1757
        %1759 = vadd.xlane.f32.xlu0 %v1728
        %v1760 = vpop.xlane.xlu0 %1759
        %1761 = vadd.xlane.f32.xlu0 %v1730
        %v1762 = vpop.xlane.xlu0 %1761
        %1763 = vadd.xlane.f32.xlu0 %v1732
        %v1764 = vpop.xlane.xlu0 %1763
        %1765 = vadd.xlane.f32.xlu0 %v1734
        %v1766 = vpop.xlane.xlu0 %1765
        %1767 = vadd.xlane.f32.xlu0 %v1736
        %v1768 = vpop.xlane.xlu0 %1767
        %1769 = vadd.xlane.f32.xlu0 %v1738
        %v1770 = vpop.xlane.xlu0 %1769
        %1771 = vadd.xlane.f32.xlu0 %v1740
        %v1772 = vpop.xlane.xlu0 %1771
        %1773 = vadd.xlane.f32.xlu0 %v1742
        %v1774 = vpop.xlane.xlu0 %1773
        %1775 = vadd.xlane.f32.xlu0 %v1744
        %v1776 = vpop.xlane.xlu0 %1775
        %1777 = vadd.xlane.f32.xlu0 %v1746
        %v1778 = vpop.xlane.xlu0 %1777
        %1779 = vadd.xlane.f32.xlu0 %v1748
        %v1780 = vpop.xlane.xlu0 %1779
        %1781 = vadd.xlane.f32.xlu0 %v1750
        %v1782 = vpop.xlane.xlu0 %1781
        %1783 = vadd.xlane.f32.xlu0 %v1752
        %v1784 = vpop.xlane.xlu0 %1783
        %v1785 = vrcp.pop %v1754
        %v1786 = vrcp.pop %v1756
        %v1787 = vrcp.pop %v1758
        %v1788 = vrcp.pop %v1760
        %v1789 = vrcp.pop %v1762
        %v1790 = vrcp.pop %v1764
        %v1791 = vrcp.pop %v1766
        %v1792 = vrcp.pop %v1768
        %v1793 = vrcp.pop %v1770
        %v1794 = vrcp.pop %v1772
        %v1795 = vrcp.pop %v1774
        %v1796 = vrcp.pop %v1776
        %v1797 = vrcp.pop %v1778
        %v1798 = vrcp.pop %v1780
        %v1799 = vrcp.pop %v1782
        %v1800 = vrcp.pop %v1784
        %v1801 = vmul.f32 %v1722, %v1785
        %v1802 = vmul.f32 %v1724, %v1786
        %v1803 = vmul.f32 %v1726, %v1787
        %v1804 = vmul.f32 %v1728, %v1788
        %v1805 = vmul.f32 %v1730, %v1789
        %v1806 = vmul.f32 %v1732, %v1790
        %v1807 = vmul.f32 %v1734, %v1791
        %v1808 = vmul.f32 %v1736, %v1792
        %v1809 = vmul.f32 %v1738, %v1793
        %v1810 = vmul.f32 %v1740, %v1794
        %v1811 = vmul.f32 %v1742, %v1795
        %v1812 = vmul.f32 %v1744, %v1796
        %v1813 = vmul.f32 %v1746, %v1797
        %v1814 = vmul.f32 %v1748, %v1798
        %v1815 = vmul.f32 %v1750, %v1799
        %v1816 = vmul.f32 %v1752, %v1800
        %v1817 = vpack.c.bf16 %v1802, %v1801
        %v1818 = vpack.c.bf16 %v1804, %v1803
        %v1819 = vpack.c.bf16 %v1806, %v1805
        %v1820 = vpack.c.bf16 %v1808, %v1807
        %v1821 = vpack.c.bf16 %v1810, %v1809
        %v1822 = vpack.c.bf16 %v1812, %v1811
        %v1823 = vpack.c.bf16 %v1814, %v1813
        %v1824 = vpack.c.bf16 %v1816, %v1815
        %1825 = vmatprep.subr.bf16.mxu0 0
        %1826 = vmatpush1.bf16.msra.mxu0 %v1505
        %1827 = vmatprep.subr.bf16.mxu0 0
        %1828 = vmatpush1.bf16.msra.mxu0 %v1508
        %1829 = vmatprep.subr.bf16.mxu0 0
        %1830 = vmatpush1.bf16.msra.mxu0 %v1511
        %1831 = vmatprep.subr.bf16.mxu0 0
        %1832 = vmatpush1.bf16.msra.mxu0 %v1514
        %1833 = vmatprep.subr.bf16.mxu0 0
        %1834 = vmatpush1.bf16.msra.mxu0 %v1517
        %1835 = vmatprep.subr.bf16.mxu0 0
        %1836 = vmatpush1.bf16.msra.mxu0 %v1520
        %1837 = vmatprep.subr.bf16.mxu0 0
        %1838 = vmatpush1.bf16.msra.mxu0 %v1523
        %1839 = vmatprep.subr.bf16.mxu0 0
        %1840 = vmatpush1.bf16.msra.mxu0 %v1526
        %1841 = vmatprep.subr.bf16.mxu0 0
        %1842 = vmatpush1.bf16.msra.mxu0 0
        %1843 = vmatprep.subr.bf16.mxu0 0
        %1844 = vmatpush1.bf16.msra.mxu0 0
        %1845 = vmatprep.subr.bf16.mxu0 0
        %1846 = vmatpush1.bf16.msra.mxu0 0
        %1847 = vmatprep.subr.bf16.mxu0 0
        %1848 = vmatpush1.bf16.msra.mxu0 0
        %1849 = vmatprep.subr.bf16.mxu0 0
        %1850 = vmatpush1.bf16.msra.mxu0 0
        %1851 = vmatprep.subr.bf16.mxu0 0
        %1852 = vmatpush1.bf16.msra.mxu0 0
        %1853 = vmatprep.subr.bf16.mxu0 0
        %1854 = vmatpush1.bf16.msra.mxu0 0
        %1855 = vmatprep.subr.bf16.mxu0 0
        %1856 = vmatpush1.bf16.msra.mxu0 0
        %1857 = vmatprep.mubr.bf16.mxu0 0
        %1858 = vmatmul.mubr.bf16.gmra.mrb[0].mxu0 %v1817
        %v1859 = vpop.f32.mrb[0].mxu0
        %v1860 = vadd.f32 0.0, %v1859
        %v1861 = vpop.f32.mrb[0].mxu0
        %v1862 = vpop.f32.mrb[0].mxu0
        %v1863 = vadd.f32 0.0, %v1862
        %v1864 = vpop.f32.mrb[0].mxu0
        %1865 = vmatprep.mubr.bf16.mxu0 0
        %1866 = vmatmul.mubr.bf16.gmra.mrb[0].mxu0 %v1818
        %v1867 = vpop.f32.mrb[0].mxu0
        %v1868 = vadd.f32 0.0, %v1867
        %v1869 = vpop.f32.mrb[0].mxu0
        %v1870 = vpop.f32.mrb[0].mxu0
        %v1871 = vadd.f32 0.0, %v1870
        %v1872 = vpop.f32.mrb[0].mxu0
        %1873 = vmatprep.mubr.bf16.mxu0 0
        %1874 = vmatmul.mubr.bf16.gmra.mrb[0].mxu0 %v1819
        %v1875 = vpop.f32.mrb[0].mxu0
        %v1876 = vadd.f32 0.0, %v1875
        %v1877 = vpop.f32.mrb[0].mxu0
        %v1878 = vpop.f32.mrb[0].mxu0
        %v1879 = vadd.f32 0.0, %v1878
        %v1880 = vpop.f32.mrb[0].mxu0
        %1881 = vmatprep.mubr.bf16.mxu0 0
        %1882 = vmatmul.mubr.bf16.gmra.mrb[0].mxu0 %v1820
        %v1883 = vpop.f32.mrb[0].mxu0
        %v1884 = vadd.f32 0.0, %v1883
        %v1885 = vpop.f32.mrb[0].mxu0
        %v1886 = vpop.f32.mrb[0].mxu0
        %v1887 = vadd.f32 0.0, %v1886
        %v1888 = vpop.f32.mrb[0].mxu0
        %1889 = vmatprep.mubr.bf16.mxu0 0
        %1890 = vmatmul.mubr.bf16.gmra.mrb[0].mxu0 %v1821
        %v1891 = vpop.f32.mrb[0].mxu0
        %v1892 = vadd.f32 0.0, %v1891
        %v1893 = vpop.f32.mrb[0].mxu0
        %v1894 = vpop.f32.mrb[0].mxu0
        %v1895 = vadd.f32 0.0, %v1894
        %v1896 = vpop.f32.mrb[0].mxu0
        %1897 = vmatprep.mubr.bf16.mxu0 0
        %1898 = vmatmul.mubr.bf16.gmra.mrb[0].mxu0 %v1822
        %v1899 = vpop.f32.mrb[0].mxu0
        %v1900 = vadd.f32 0.0, %v1899
        %v1901 = vpop.f32.mrb[0].mxu0
        %v1902 = vpop.f32.mrb[0].mxu0
        %v1903 = vadd.f32 0.0, %v1902
        %v1904 = vpop.f32.mrb[0].mxu0
        %1905 = vmatprep.mubr.bf16.mxu0 0
        %1906 = vmatmul.mubr.bf16.gmra.mrb[0].mxu0 %v1823
        %v1907 = vpop.f32.mrb[0].mxu0
        %v1908 = vadd.f32 0.0, %v1907
        %v1909 = vpop.f32.mrb[0].mxu0
        %v1910 = vpop.f32.mrb[0].mxu0
        %v1911 = vadd.f32 0.0, %v1910
        %v1912 = vpop.f32.mrb[0].mxu0
        %1913 = vmatprep.mubr.bf16.mxu0 0
        %1914 = vmatmul.mubr.bf16.gmra.mrb[0].mxu0 %v1824
        %v1915 = vpop.f32.mrb[0].mxu0
        %v1916 = vadd.f32 0.0, %v1915
        %v1917 = vpop.f32.mrb[0].mxu0
        %v1918 = vpop.f32.mrb[0].mxu0
        %v1919 = vadd.f32 0.0, %v1918
        %v1920 = vpop.f32.mrb[0].mxu0
        %1921 = vdwg.mxu0
        %1930 = vrot.lane.b32.xlu0 %v1503, 96
        %v1931 = vpop.permute.xlu0 %1930
        %1932 = vrot.lane.b32.xlu0 %v1506, 96
        %v1933 = vpop.permute.xlu0 %1932
        %1934 = vrot.lane.b32.xlu0 %v1509, 96
        %v1935 = vpop.permute.xlu0 %1934
        %1936 = vrot.lane.b32.xlu0 %v1512, 96
        %v1937 = vpop.permute.xlu0 %1936
        %1938 = vrot.lane.b32.xlu0 %v1515, 96
        %v1939 = vpop.permute.xlu0 %1938
        %1940 = vrot.lane.b32.xlu0 %v1518, 96
        %v1941 = vpop.permute.xlu0 %1940
        %1942 = vrot.lane.b32.xlu0 %v1521, 96
        %v1943 = vpop.permute.xlu0 %1942
        %1944 = vrot.lane.b32.xlu0 %v1524, 96
        %v1945 = vpop.permute.xlu0 %1944
        %1954 = vrot.lane.b32.xlu0 %v1504, 96
        %v1955 = vpop.permute.xlu0 %1954
        %1956 = vrot.lane.b32.xlu0 %v1507, 96
        %v1957 = vpop.permute.xlu0 %1956
        %1958 = vrot.lane.b32.xlu0 %v1510, 96
        %v1959 = vpop.permute.xlu0 %1958
        %1960 = vrot.lane.b32.xlu0 %v1513, 96
        %v1961 = vpop.permute.xlu0 %1960
        %1962 = vrot.lane.b32.xlu0 %v1516, 96
        %v1963 = vpop.permute.xlu0 %1962
        %1964 = vrot.lane.b32.xlu0 %v1519, 96
        %v1965 = vpop.permute.xlu0 %1964
        %1966 = vrot.lane.b32.xlu0 %v1522, 96
        %v1967 = vpop.permute.xlu0 %1966
        %1968 = vrot.lane.b32.xlu0 %v1525, 96
        %v1969 = vpop.permute.xlu0 %1968
        %v1971 = vsel %vm1527, %v1931, 0
        %v1974 = vsel %vm1527, %v1933, 0
        %v1977 = vsel %vm1527, %v1935, 0
        %v1980 = vsel %vm1527, %v1937, 0
        %v1983 = vsel %vm1527, %v1939, 0
        %v1986 = vsel %vm1527, %v1941, 0
        %v1989 = vsel %vm1527, %v1943, 0
        %v1992 = vsel %vm1527, %v1945, 0
        %v1995 = vsel %vm1527, %v1955, 0
        %v1998 = vsel %vm1527, %v1957, 0
        %v2001 = vsel %vm1527, %v1959, 0
        %v2004 = vsel %vm1527, %v1961, 0
        %v2007 = vsel %vm1527, %v1963, 0
        %v2010 = vsel %vm1527, %v1965, 0
        %v2013 = vsel %vm1527, %v1967, 0
        %v2016 = vsel %vm1527, %v1969, 0
        %2018 = vmatprep.subr.bf16.mxu0 0
        %2019 = vmatpush1.bf16.xpose.msra.mxu0 %v1995
        %2020 = vmatprep.subr.bf16.mxu0 0
        %2021 = vmatpush1.bf16.xpose.msra.mxu0 %v1998
        %2022 = vmatprep.subr.bf16.mxu0 0
        %2023 = vmatpush1.bf16.xpose.msra.mxu0 %v2001
        %2024 = vmatprep.subr.bf16.mxu0 0
        %2025 = vmatpush1.bf16.xpose.msra.mxu0 %v2004
        %2026 = vmatprep.subr.bf16.mxu0 0
        %2027 = vmatpush1.bf16.xpose.msra.mxu0 %v2007
        %2028 = vmatprep.subr.bf16.mxu0 0
        %2029 = vmatpush1.bf16.xpose.msra.mxu0 %v2010
        %2030 = vmatprep.subr.bf16.mxu0 0
        %2031 = vmatpush1.bf16.xpose.msra.mxu0 %v2013
        %2032 = vmatprep.subr.bf16.mxu0 0
        %2033 = vmatpush1.bf16.xpose.msra.mxu0 %v2016
        %2034 = vmatprep.subr.bf16.mxu0 0
        %2035 = vmatpush1.bf16.xpose.msra.mxu0 0
        %2036 = vmatprep.subr.bf16.mxu0 0
        %2037 = vmatpush1.bf16.xpose.msra.mxu0 0
        %2038 = vmatprep.subr.bf16.mxu0 0
        %2039 = vmatpush1.bf16.xpose.msra.mxu0 0
        %2040 = vmatprep.subr.bf16.mxu0 0
        %2041 = vmatpush1.bf16.xpose.msra.mxu0 0
        %2042 = vmatprep.subr.bf16.mxu0 0
        %2043 = vmatpush1.bf16.xpose.msra.mxu0 0
        %2044 = vmatprep.subr.bf16.mxu0 0
        %2045 = vmatpush1.bf16.xpose.msra.mxu0 0
        %2046 = vmatprep.subr.bf16.mxu0 0
        %2047 = vmatpush1.bf16.xpose.msra.mxu0 0
        %2048 = vmatprep.subr.bf16.mxu0 0
        %2049 = vmatpush1.bf16.xpose.msra.mxu0 0
        %2050 = vmatprep.mubr.bf16.mxu0 0
        %2051 = vmatmul.mubr.bf16.gmra.mrb[0].mxu0 %v1971
        %v2052 = vpop.f32.mrb[0].mxu0
        %v2053 = vadd.f32 %v837, %v2052
        %v2054 = vpop.f32.mrb[0].mxu0
        %v2055 = vpop.f32.mrb[0].mxu0
        %v2056 = vadd.f32 %v838, %v2055
        %v2057 = vpop.f32.mrb[0].mxu0
        %2058 = vmatprep.mubr.bf16.mxu0 0
        %2059 = vmatmul.mubr.bf16.gmra.mrb[0].mxu0 %v1974
        %v2060 = vpop.f32.mrb[0].mxu0
        %v2061 = vadd.f32 %v839, %v2060
        %v2062 = vpop.f32.mrb[0].mxu0
        %v2063 = vpop.f32.mrb[0].mxu0
        %v2064 = vadd.f32 %v840, %v2063
        %v2065 = vpop.f32.mrb[0].mxu0
        %2066 = vmatprep.mubr.bf16.mxu0 0
        %2067 = vmatmul.mubr.bf16.gmra.mrb[0].mxu0 %v1977
        %v2068 = vpop.f32.mrb[0].mxu0
        %v2069 = vadd.f32 %v841, %v2068
        %v2070 = vpop.f32.mrb[0].mxu0
        %v2071 = vpop.f32.mrb[0].mxu0
        %v2072 = vadd.f32 %v842, %v2071
        %v2073 = vpop.f32.mrb[0].mxu0
        %2074 = vmatprep.mubr.bf16.mxu0 0
        %2075 = vmatmul.mubr.bf16.gmra.mrb[0].mxu0 %v1980
        %v2076 = vpop.f32.mrb[0].mxu0
        %v2077 = vadd.f32 %v843, %v2076
        %v2078 = vpop.f32.mrb[0].mxu0
        %v2079 = vpop.f32.mrb[0].mxu0
        %v2080 = vadd.f32 %v844, %v2079
        %v2081 = vpop.f32.mrb[0].mxu0
        %2082 = vmatprep.mubr.bf16.mxu0 0
        %2083 = vmatmul.mubr.bf16.gmra.mrb[0].mxu0 %v1983
        %v2084 = vpop.f32.mrb[0].mxu0
        %v2085 = vadd.f32 %v845, %v2084
        %v2086 = vpop.f32.mrb[0].mxu0
        %v2087 = vpop.f32.mrb[0].mxu0
        %v2088 = vadd.f32 %v846, %v2087
        %v2089 = vpop.f32.mrb[0].mxu0
        %2090 = vmatprep.mubr.bf16.mxu0 0
        %2091 = vmatmul.mubr.bf16.gmra.mrb[0].mxu0 %v1986
        %v2092 = vpop.f32.mrb[0].mxu0
        %v2093 = vadd.f32 %v847, %v2092
        %v2094 = vpop.f32.mrb[0].mxu0
        %v2095 = vpop.f32.mrb[0].mxu0
        %v2096 = vadd.f32 %v848, %v2095
        %v2097 = vpop.f32.mrb[0].mxu0
        %2098 = vmatprep.mubr.bf16.mxu0 0
        %2099 = vmatmul.mubr.bf16.gmra.mrb[0].mxu0 %v1989
        %v2100 = vpop.f32.mrb[0].mxu0
        %v2101 = vadd.f32 %v849, %v2100
        %v2102 = vpop.f32.mrb[0].mxu0
        %v2103 = vpop.f32.mrb[0].mxu0
        %v2104 = vadd.f32 %v850, %v2103
        %v2105 = vpop.f32.mrb[0].mxu0
        %2106 = vmatprep.mubr.bf16.mxu0 0
        %2107 = vmatmul.mubr.bf16.gmra.mrb[0].mxu0 %v1992
        %v2108 = vpop.f32.mrb[0].mxu0
        %v2109 = vadd.f32 %v851, %v2108
        %v2110 = vpop.f32.mrb[0].mxu0
        %v2111 = vpop.f32.mrb[0].mxu0
        %v2112 = vadd.f32 %v852, %v2111
        %v2113 = vpop.f32.mrb[0].mxu0
        %2114 = vdwg.mxu0
        %2115 = vmax.xlane.f32.xlu0 %v2053
        %v2116 = vpop.xlane.xlu0 %2115
        %2117 = vmax.xlane.f32.xlu0 %v2056
        %v2118 = vpop.xlane.xlu0 %2117
        %2119 = vmax.xlane.f32.xlu0 %v2061
        %v2120 = vpop.xlane.xlu0 %2119
        %2121 = vmax.xlane.f32.xlu0 %v2064
        %v2122 = vpop.xlane.xlu0 %2121
        %2123 = vmax.xlane.f32.xlu0 %v2069
        %v2124 = vpop.xlane.xlu0 %2123
        %2125 = vmax.xlane.f32.xlu0 %v2072
        %v2126 = vpop.xlane.xlu0 %2125
        %2127 = vmax.xlane.f32.xlu0 %v2077
        %v2128 = vpop.xlane.xlu0 %2127
        %2129 = vmax.xlane.f32.xlu0 %v2080
        %v2130 = vpop.xlane.xlu0 %2129
        %2131 = vmax.xlane.f32.xlu0 %v2085
        %v2132 = vpop.xlane.xlu0 %2131
        %2133 = vmax.xlane.f32.xlu0 %v2088
        %v2134 = vpop.xlane.xlu0 %2133
        %2135 = vmax.xlane.f32.xlu0 %v2093
        %v2136 = vpop.xlane.xlu0 %2135
        %2137 = vmax.xlane.f32.xlu0 %v2096
        %v2138 = vpop.xlane.xlu0 %2137
        %2139 = vmax.xlane.f32.xlu0 %v2101
        %v2140 = vpop.xlane.xlu0 %2139
        %2141 = vmax.xlane.f32.xlu0 %v2104
        %v2142 = vpop.xlane.xlu0 %2141
        %2143 = vmax.xlane.f32.xlu0 %v2109
        %v2144 = vpop.xlane.xlu0 %2143
        %2145 = vmax.xlane.f32.xlu0 %v2112
        %v2146 = vpop.xlane.xlu0 %2145
        %v2147 = vsub.f32 %v2053, %v2116
        %v2148 = vsub.f32 %v2056, %v2118
        %v2149 = vsub.f32 %v2061, %v2120
        %v2150 = vsub.f32 %v2064, %v2122
        %v2151 = vsub.f32 %v2069, %v2124
        %v2152 = vsub.f32 %v2072, %v2126
        %v2153 = vsub.f32 %v2077, %v2128
        %v2154 = vsub.f32 %v2080, %v2130
        %v2155 = vsub.f32 %v2085, %v2132
        %v2156 = vsub.f32 %v2088, %v2134
        %v2157 = vsub.f32 %v2093, %v2136
        %v2158 = vsub.f32 %v2096, %v2138
        %v2159 = vsub.f32 %v2101, %v2140
        %v2160 = vsub.f32 %v2104, %v2142
        %v2161 = vsub.f32 %v2109, %v2144
        %v2162 = vsub.f32 %v2112, %v2146
        %v2163 = vmul.f32 %v2147, 1.442695
        %v2164 = vpow.pop %v2163
        %v2165 = vmul.f32 %v2148, 1.442695
        %v2166 = vpow.pop %v2165
        %v2167 = vmul.f32 %v2149, 1.442695
        %v2168 = vpow.pop %v2167
        %v2169 = vmul.f32 %v2150, 1.442695
        %v2170 = vpow.pop %v2169
        %v2171 = vmul.f32 %v2151, 1.442695
        %v2172 = vpow.pop %v2171
        %v2173 = vmul.f32 %v2152, 1.442695
        %v2174 = vpow.pop %v2173
        %v2175 = vmul.f32 %v2153, 1.442695
        %v2176 = vpow.pop %v2175
        %v2177 = vmul.f32 %v2154, 1.442695
        %v2178 = vpow.pop %v2177
        %v2179 = vmul.f32 %v2155, 1.442695
        %v2180 = vpow.pop %v2179
        %v2181 = vmul.f32 %v2156, 1.442695
        %v2182 = vpow.pop %v2181
        %v2183 = vmul.f32 %v2157, 1.442695
        %v2184 = vpow.pop %v2183
        %v2185 = vmul.f32 %v2158, 1.442695
        %v2186 = vpow.pop %v2185
        %v2187 = vmul.f32 %v2159, 1.442695
        %v2188 = vpow.pop %v2187
        %v2189 = vmul.f32 %v2160, 1.442695
        %v2190 = vpow.pop %v2189
        %v2191 = vmul.f32 %v2161, 1.442695
        %v2192 = vpow.pop %v2191
        %v2193 = vmul.f32 %v2162, 1.442695
        %v2194 = vpow.pop %v2193
        %2195 = vadd.xlane.f32.xlu0 %v2164
        %v2196 = vpop.xlane.xlu0 %2195
        %2197 = vadd.xlane.f32.xlu0 %v2166
        %v2198 = vpop.xlane.xlu0 %2197
        %2199 = vadd.xlane.f32.xlu0 %v2168
        %v2200 = vpop.xlane.xlu0 %2199
        %2201 = vadd.xlane.f32.xlu0 %v2170
        %v2202 = vpop.xlane.xlu0 %2201
        %2203 = vadd.xlane.f32.xlu0 %v2172
        %v2204 = vpop.xlane.xlu0 %2203
        %2205 = vadd.xlane.f32.xlu0 %v2174
        %v2206 = vpop.xlane.xlu0 %2205
        %2207 = vadd.xlane.f32.xlu0 %v2176
        %v2208 = vpop.xlane.xlu0 %2207
        %2209 = vadd.xlane.f32.xlu0 %v2178
        %v2210 = vpop.xlane.xlu0 %2209
        %2211 = vadd.xlane.f32.xlu0 %v2180
        %v2212 = vpop.xlane.xlu0 %2211
        %2213 = vadd.xlane.f32.xlu0 %v2182
        %v2214 = vpop.xlane.xlu0 %2213
        %2215 = vadd.xlane.f32.xlu0 %v2184
        %v2216 = vpop.xlane.xlu0 %2215
        %2217 = vadd.xlane.f32.xlu0 %v2186
        %v2218 = vpop.xlane.xlu0 %2217
        %2219 = vadd.xlane.f32.xlu0 %v2188
        %v2220 = vpop.xlane.xlu0 %2219
        %2221 = vadd.xlane.f32.xlu0 %v2190
        %v2222 = vpop.xlane.xlu0 %2221
        %2223 = vadd.xlane.f32.xlu0 %v2192
        %v2224 = vpop.xlane.xlu0 %2223
        %2225 = vadd.xlane.f32.xlu0 %v2194
        %v2226 = vpop.xlane.xlu0 %2225
        %v2227 = vrcp.pop %v2196
        %v2228 = vrcp.pop %v2198
        %v2229 = vrcp.pop %v2200
        %v2230 = vrcp.pop %v2202
        %v2231 = vrcp.pop %v2204
        %v2232 = vrcp.pop %v2206
        %v2233 = vrcp.pop %v2208
        %v2234 = vrcp.pop %v2210
        %v2235 = vrcp.pop %v2212
        %v2236 = vrcp.pop %v2214
        %v2237 = vrcp.pop %v2216
        %v2238 = vrcp.pop %v2218
        %v2239 = vrcp.pop %v2220
        %v2240 = vrcp.pop %v2222
        %v2241 = vrcp.pop %v2224
        %v2242 = vrcp.pop %v2226
        %v2243 = vmul.f32 %v2164, %v2227
        %v2244 = vmul.f32 %v2166, %v2228
        %v2245 = vmul.f32 %v2168, %v2229
        %v2246 = vmul.f32 %v2170, %v2230
        %v2247 = vmul.f32 %v2172, %v2231
        %v2248 = vmul.f32 %v2174, %v2232
        %v2249 = vmul.f32 %v2176, %v2233
        %v2250 = vmul.f32 %v2178, %v2234
        %v2251 = vmul.f32 %v2180, %v2235
        %v2252 = vmul.f32 %v2182, %v2236
        %v2253 = vmul.f32 %v2184, %v2237
        %v2254 = vmul.f32 %v2186, %v2238
        %v2255 = vmul.f32 %v2188, %v2239
        %v2256 = vmul.f32 %v2190, %v2240
        %v2257 = vmul.f32 %v2192, %v2241
        %v2258 = vmul.f32 %v2194, %v2242
        %v2259 = vpack.c.bf16 %v2244, %v2243
        %v2260 = vpack.c.bf16 %v2246, %v2245
        %v2261 = vpack.c.bf16 %v2248, %v2247
        %v2262 = vpack.c.bf16 %v2250, %v2249
        %v2263 = vpack.c.bf16 %v2252, %v2251
        %v2264 = vpack.c.bf16 %v2254, %v2253
        %v2265 = vpack.c.bf16 %v2256, %v2255
        %v2266 = vpack.c.bf16 %v2258, %v2257
        %2275 = vrot.lane.b32.xlu0 %v1505, 96
        %v2276 = vpop.permute.xlu0 %2275
        %2277 = vrot.lane.b32.xlu0 %v1508, 96
        %v2278 = vpop.permute.xlu0 %2277
        %2279 = vrot.lane.b32.xlu0 %v1511, 96
        %v2280 = vpop.permute.xlu0 %2279
        %2281 = vrot.lane.b32.xlu0 %v1514, 96
        %v2282 = vpop.permute.xlu0 %2281
        %2283 = vrot.lane.b32.xlu0 %v1517, 96
        %v2284 = vpop.permute.xlu0 %2283
        %2285 = vrot.lane.b32.xlu0 %v1520, 96
        %v2286 = vpop.permute.xlu0 %2285
        %2287 = vrot.lane.b32.xlu0 %v1523, 96
        %v2288 = vpop.permute.xlu0 %2287
        %2289 = vrot.lane.b32.xlu0 %v1526, 96
        %v2290 = vpop.permute.xlu0 %2289
        %2299 = vmatprep.subr.bf16.mxu0 0
        %2300 = vmatpush1.bf16.msra.mxu0 %v2276
        %2301 = vmatprep.subr.bf16.mxu0 0
        %2302 = vmatpush1.bf16.msra.mxu0 %v2278
        %2303 = vmatprep.subr.bf16.mxu0 0
        %2304 = vmatpush1.bf16.msra.mxu0 %v2280
        %2305 = vmatprep.subr.bf16.mxu0 0
        %2306 = vmatpush1.bf16.msra.mxu0 %v2282
        %2307 = vmatprep.subr.bf16.mxu0 0
        %2308 = vmatpush1.bf16.msra.mxu0 %v2284
        %2309 = vmatprep.subr.bf16.mxu0 0
        %2310 = vmatpush1.bf16.msra.mxu0 %v2286
        %2311 = vmatprep.subr.bf16.mxu0 0
        %2312 = vmatpush1.bf16.msra.mxu0 %v2288
        %2313 = vmatprep.subr.bf16.mxu0 0
        %2314 = vmatpush1.bf16.msra.mxu0 %v2290
        %2315 = vmatprep.subr.bf16.mxu0 0
        %2316 = vmatpush1.bf16.msra.mxu0 0
        %2317 = vmatprep.subr.bf16.mxu0 0
        %2318 = vmatpush1.bf16.msra.mxu0 0
        %2319 = vmatprep.subr.bf16.mxu0 0
        %2320 = vmatpush1.bf16.msra.mxu0 0
        %2321 = vmatprep.subr.bf16.mxu0 0
        %2322 = vmatpush1.bf16.msra.mxu0 0
        %2323 = vmatprep.subr.bf16.mxu0 0
        %2324 = vmatpush1.bf16.msra.mxu0 0
        %2325 = vmatprep.subr.bf16.mxu0 0
        %2326 = vmatpush1.bf16.msra.mxu0 0
        %2327 = vmatprep.subr.bf16.mxu0 0
        %2328 = vmatpush1.bf16.msra.mxu0 0
        %2329 = vmatprep.subr.bf16.mxu0 0
        %2330 = vmatpush1.bf16.msra.mxu0 0
        %2331 = vmatprep.mubr.bf16.mxu0 0
        %2332 = vmatmul.mubr.bf16.gmra.mrb[0].mxu0 %v2259
        %v2333 = vpop.f32.mrb[0].mxu0
        %v2334 = vadd.f32 0.0, %v2333
        %v2335 = vpop.f32.mrb[0].mxu0
        %v2336 = vpop.f32.mrb[0].mxu0
        %v2337 = vadd.f32 0.0, %v2336
        %v2338 = vpop.f32.mrb[0].mxu0
        %2339 = vmatprep.mubr.bf16.mxu0 0
        %2340 = vmatmul.mubr.bf16.gmra.mrb[0].mxu0 %v2260
        %v2341 = vpop.f32.mrb[0].mxu0
        %v2342 = vadd.f32 0.0, %v2341
        %v2343 = vpop.f32.mrb[0].mxu0
        %v2344 = vpop.f32.mrb[0].mxu0
        %v2345 = vadd.f32 0.0, %v2344
        %v2346 = vpop.f32.mrb[0].mxu0
        %2347 = vmatprep.mubr.bf16.mxu0 0
        %2348 = vmatmul.mubr.bf16.gmra.mrb[0].mxu0 %v2261
        %v2349 = vpop.f32.mrb[0].mxu0
        %v2350 = vadd.f32 0.0, %v2349
        %v2351 = vpop.f32.mrb[0].mxu0
        %v2352 = vpop.f32.mrb[0].mxu0
        %v2353 = vadd.f32 0.0, %v2352
        %v2354 = vpop.f32.mrb[0].mxu0
        %2355 = vmatprep.mubr.bf16.mxu0 0
        %2356 = vmatmul.mubr.bf16.gmra.mrb[0].mxu0 %v2262
        %v2357 = vpop.f32.mrb[0].mxu0
        %v2358 = vadd.f32 0.0, %v2357
        %v2359 = vpop.f32.mrb[0].mxu0
        %v2360 = vpop.f32.mrb[0].mxu0
        %v2361 = vadd.f32 0.0, %v2360
        %v2362 = vpop.f32.mrb[0].mxu0
        %2363 = vmatprep.mubr.bf16.mxu0 0
        %2364 = vmatmul.mubr.bf16.gmra.mrb[0].mxu0 %v2263
        %v2365 = vpop.f32.mrb[0].mxu0
        %v2366 = vadd.f32 0.0, %v2365
        %v2367 = vpop.f32.mrb[0].mxu0
        %v2368 = vpop.f32.mrb[0].mxu0
        %v2369 = vadd.f32 0.0, %v2368
        %v2370 = vpop.f32.mrb[0].mxu0
        %2371 = vmatprep.mubr.bf16.mxu0 0
        %2372 = vmatmul.mubr.bf16.gmra.mrb[0].mxu0 %v2264
        %v2373 = vpop.f32.mrb[0].mxu0
        %v2374 = vadd.f32 0.0, %v2373
        %v2375 = vpop.f32.mrb[0].mxu0
        %v2376 = vpop.f32.mrb[0].mxu0
        %v2377 = vadd.f32 0.0, %v2376
        %v2378 = vpop.f32.mrb[0].mxu0
        %2379 = vmatprep.mubr.bf16.mxu0 0
        %2380 = vmatmul.mubr.bf16.gmra.mrb[0].mxu0 %v2265
        %v2381 = vpop.f32.mrb[0].mxu0
        %v2382 = vadd.f32 0.0, %v2381
        %v2383 = vpop.f32.mrb[0].mxu0
        %v2384 = vpop.f32.mrb[0].mxu0
        %v2385 = vadd.f32 0.0, %v2384
        %v2386 = vpop.f32.mrb[0].mxu0
        %2387 = vmatprep.mubr.bf16.mxu0 0
        %2388 = vmatmul.mubr.bf16.gmra.mrb[0].mxu0 %v2266
        %v2389 = vpop.f32.mrb[0].mxu0
        %v2390 = vadd.f32 0.0, %v2389
        %v2391 = vpop.f32.mrb[0].mxu0
        %v2392 = vpop.f32.mrb[0].mxu0
        %v2393 = vadd.f32 0.0, %v2392
        %v2394 = vpop.f32.mrb[0].mxu0
        %2395 = vdwg.mxu0
        %2396 = vrot.lane.b32.xlu0 %v1503, 64
        %v2397 = vpop.permute.xlu0 %2396
        %2398 = vrot.lane.b32.xlu0 %v1506, 64
        %v2399 = vpop.permute.xlu0 %2398
        %2400 = vrot.lane.b32.xlu0 %v1509, 64
        %v2401 = vpop.permute.xlu0 %2400
        %2402 = vrot.lane.b32.xlu0 %v1512, 64
        %v2403 = vpop.permute.xlu0 %2402
        %2404 = vrot.lane.b32.xlu0 %v1515, 64
        %v2405 = vpop.permute.xlu0 %2404
        %2406 = vrot.lane.b32.xlu0 %v1518, 64
        %v2407 = vpop.permute.xlu0 %2406
        %2408 = vrot.lane.b32.xlu0 %v1521, 64
        %v2409 = vpop.permute.xlu0 %2408
        %2410 = vrot.lane.b32.xlu0 %v1524, 64
        %v2411 = vpop.permute.xlu0 %2410
        %2412 = vrot.lane.b32.xlu0 %v1504, 64
        %v2413 = vpop.permute.xlu0 %2412
        %2414 = vrot.lane.b32.xlu0 %v1507, 64
        %v2415 = vpop.permute.xlu0 %2414
        %2416 = vrot.lane.b32.xlu0 %v1510, 64
        %v2417 = vpop.permute.xlu0 %2416
        %2418 = vrot.lane.b32.xlu0 %v1513, 64
        %v2419 = vpop.permute.xlu0 %2418
        %2420 = vrot.lane.b32.xlu0 %v1516, 64
        %v2421 = vpop.permute.xlu0 %2420
        %2422 = vrot.lane.b32.xlu0 %v1519, 64
        %v2423 = vpop.permute.xlu0 %2422
        %2424 = vrot.lane.b32.xlu0 %v1522, 64
        %v2425 = vpop.permute.xlu0 %2424
        %2426 = vrot.lane.b32.xlu0 %v1525, 64
        %v2427 = vpop.permute.xlu0 %2426
        %v2429 = vsel %vm1527, %v2397, 0
        %v2432 = vsel %vm1527, %v2399, 0
        %v2435 = vsel %vm1527, %v2401, 0
        %v2438 = vsel %vm1527, %v2403, 0
        %v2441 = vsel %vm1527, %v2405, 0
        %v2444 = vsel %vm1527, %v2407, 0
        %v2447 = vsel %vm1527, %v2409, 0
        %v2450 = vsel %vm1527, %v2411, 0
        %v2453 = vsel %vm1527, %v2413, 0
        %v2456 = vsel %vm1527, %v2415, 0
        %v2459 = vsel %vm1527, %v2417, 0
        %v2462 = vsel %vm1527, %v2419, 0
        %v2465 = vsel %vm1527, %v2421, 0
        %v2468 = vsel %vm1527, %v2423, 0
        %v2471 = vsel %vm1527, %v2425, 0
        %v2474 = vsel %vm1527, %v2427, 0
        %2476 = vmatprep.subr.bf16.mxu0 0
        %2477 = vmatpush1.bf16.xpose.msra.mxu0 %v2453
        %2478 = vmatprep.subr.bf16.mxu0 0
        %2479 = vmatpush1.bf16.xpose.msra.mxu0 %v2456
        %2480 = vmatprep.subr.bf16.mxu0 0
        %2481 = vmatpush1.bf16.xpose.msra.mxu0 %v2459
        %2482 = vmatprep.subr.bf16.mxu0 0
        %2483 = vmatpush1.bf16.xpose.msra.mxu0 %v2462
        %2484 = vmatprep.subr.bf16.mxu0 0
        %2485 = vmatpush1.bf16.xpose.msra.mxu0 %v2465
        %2486 = vmatprep.subr.bf16.mxu0 0
        %2487 = vmatpush1.bf16.xpose.msra.mxu0 %v2468
        %2488 = vmatprep.subr.bf16.mxu0 0
        %2489 = vmatpush1.bf16.xpose.msra.mxu0 %v2471
        %2490 = vmatprep.subr.bf16.mxu0 0
        %2491 = vmatpush1.bf16.xpose.msra.mxu0 %v2474
        %2492 = vmatprep.subr.bf16.mxu0 0
        %2493 = vmatpush1.bf16.xpose.msra.mxu0 0
        %2494 = vmatprep.subr.bf16.mxu0 0
        %2495 = vmatpush1.bf16.xpose.msra.mxu0 0
        %2496 = vmatprep.subr.bf16.mxu0 0
        %2497 = vmatpush1.bf16.xpose.msra.mxu0 0
        %2498 = vmatprep.subr.bf16.mxu0 0
        %2499 = vmatpush1.bf16.xpose.msra.mxu0 0
        %2500 = vmatprep.subr.bf16.mxu0 0
        %2501 = vmatpush1.bf16.xpose.msra.mxu0 0
        %2502 = vmatprep.subr.bf16.mxu0 0
        %2503 = vmatpush1.bf16.xpose.msra.mxu0 0
        %2504 = vmatprep.subr.bf16.mxu0 0
        %2505 = vmatpush1.bf16.xpose.msra.mxu0 0
        %2506 = vmatprep.subr.bf16.mxu0 0
        %2507 = vmatpush1.bf16.xpose.msra.mxu0 0
        %2508 = vmatprep.mubr.bf16.mxu0 0
        %2509 = vmatmul.mubr.bf16.gmra.mrb[0].mxu0 %v2429
        %v2510 = vpop.f32.mrb[0].mxu0
        %v2511 = vadd.f32 %v837, %v2510
        %v2512 = vpop.f32.mrb[0].mxu0
        %v2513 = vpop.f32.mrb[0].mxu0
        %v2514 = vadd.f32 %v838, %v2513
        %v2515 = vpop.f32.mrb[0].mxu0
        %2516 = vmatprep.mubr.bf16.mxu0 0
        %2517 = vmatmul.mubr.bf16.gmra.mrb[0].mxu0 %v2432
        %v2518 = vpop.f32.mrb[0].mxu0
        %v2519 = vadd.f32 %v839, %v2518
        %v2520 = vpop.f32.mrb[0].mxu0
        %v2521 = vpop.f32.mrb[0].mxu0
        %v2522 = vadd.f32 %v840, %v2521
        %v2523 = vpop.f32.mrb[0].mxu0
        %2524 = vmatprep.mubr.bf16.mxu0 0
        %2525 = vmatmul.mubr.bf16.gmra.mrb[0].mxu0 %v2435
        %v2526 = vpop.f32.mrb[0].mxu0
        %v2527 = vadd.f32 %v841, %v2526
        %v2528 = vpop.f32.mrb[0].mxu0
        %v2529 = vpop.f32.mrb[0].mxu0
        %v2530 = vadd.f32 %v842, %v2529
        %v2531 = vpop.f32.mrb[0].mxu0
        %2532 = vmatprep.mubr.bf16.mxu0 0
        %2533 = vmatmul.mubr.bf16.gmra.mrb[0].mxu0 %v2438
        %v2534 = vpop.f32.mrb[0].mxu0
        %v2535 = vadd.f32 %v843, %v2534
        %v2536 = vpop.f32.mrb[0].mxu0
        %v2537 = vpop.f32.mrb[0].mxu0
        %v2538 = vadd.f32 %v844, %v2537
        %v2539 = vpop.f32.mrb[0].mxu0
        %2540 = vmatprep.mubr.bf16.mxu0 0
        %2541 = vmatmul.mubr.bf16.gmra.mrb[0].mxu0 %v2441
        %v2542 = vpop.f32.mrb[0].mxu0
        %v2543 = vadd.f32 %v845, %v2542
        %v2544 = vpop.f32.mrb[0].mxu0
        %v2545 = vpop.f32.mrb[0].mxu0
        %v2546 = vadd.f32 %v846, %v2545
        %v2547 = vpop.f32.mrb[0].mxu0
        %2548 = vmatprep.mubr.bf16.mxu0 0
        %2549 = vmatmul.mubr.bf16.gmra.mrb[0].mxu0 %v2444
        %v2550 = vpop.f32.mrb[0].mxu0
        %v2551 = vadd.f32 %v847, %v2550
        %v2552 = vpop.f32.mrb[0].mxu0
        %v2553 = vpop.f32.mrb[0].mxu0
        %v2554 = vadd.f32 %v848, %v2553
        %v2555 = vpop.f32.mrb[0].mxu0
        %2556 = vmatprep.mubr.bf16.mxu0 0
        %2557 = vmatmul.mubr.bf16.gmra.mrb[0].mxu0 %v2447
        %v2558 = vpop.f32.mrb[0].mxu0
        %v2559 = vadd.f32 %v849, %v2558
        %v2560 = vpop.f32.mrb[0].mxu0
        %v2561 = vpop.f32.mrb[0].mxu0
        %v2562 = vadd.f32 %v850, %v2561
        %v2563 = vpop.f32.mrb[0].mxu0
        %2564 = vmatprep.mubr.bf16.mxu0 0
        %2565 = vmatmul.mubr.bf16.gmra.mrb[0].mxu0 %v2450
        %v2566 = vpop.f32.mrb[0].mxu0
        %v2567 = vadd.f32 %v851, %v2566
        %v2568 = vpop.f32.mrb[0].mxu0
        %v2569 = vpop.f32.mrb[0].mxu0
        %v2570 = vadd.f32 %v852, %v2569
        %v2571 = vpop.f32.mrb[0].mxu0
        %2572 = vdwg.mxu0
        %2573 = vmax.xlane.f32.xlu0 %v2511
        %v2574 = vpop.xlane.xlu0 %2573
        %2575 = vmax.xlane.f32.xlu0 %v2514
        %v2576 = vpop.xlane.xlu0 %2575
        %2577 = vmax.xlane.f32.xlu0 %v2519
        %v2578 = vpop.xlane.xlu0 %2577
        %2579 = vmax.xlane.f32.xlu0 %v2522
        %v2580 = vpop.xlane.xlu0 %2579
        %2581 = vmax.xlane.f32.xlu0 %v2527
        %v2582 = vpop.xlane.xlu0 %2581
        %2583 = vmax.xlane.f32.xlu0 %v2530
        %v2584 = vpop.xlane.xlu0 %2583
        %2585 = vmax.xlane.f32.xlu0 %v2535
        %v2586 = vpop.xlane.xlu0 %2585
        %2587 = vmax.xlane.f32.xlu0 %v2538
        %v2588 = vpop.xlane.xlu0 %2587
        %2589 = vmax.xlane.f32.xlu0 %v2543
        %v2590 = vpop.xlane.xlu0 %2589
        %2591 = vmax.xlane.f32.xlu0 %v2546
        %v2592 = vpop.xlane.xlu0 %2591
        %2593 = vmax.xlane.f32.xlu0 %v2551
        %v2594 = vpop.xlane.xlu0 %2593
        %2595 = vmax.xlane.f32.xlu0 %v2554
        %v2596 = vpop.xlane.xlu0 %2595
        %2597 = vmax.xlane.f32.xlu0 %v2559
        %v2598 = vpop.xlane.xlu0 %2597
        %2599 = vmax.xlane.f32.xlu0 %v2562
        %v2600 = vpop.xlane.xlu0 %2599
        %2601 = vmax.xlane.f32.xlu0 %v2567
        %v2602 = vpop.xlane.xlu0 %2601
        %2603 = vmax.xlane.f32.xlu0 %v2570
        %v2604 = vpop.xlane.xlu0 %2603
        %v2605 = vsub.f32 %v2511, %v2574
        %v2606 = vsub.f32 %v2514, %v2576
        %v2607 = vsub.f32 %v2519, %v2578
        %v2608 = vsub.f32 %v2522, %v2580
        %v2609 = vsub.f32 %v2527, %v2582
        %v2610 = vsub.f32 %v2530, %v2584
        %v2611 = vsub.f32 %v2535, %v2586
        %v2612 = vsub.f32 %v2538, %v2588
        %v2613 = vsub.f32 %v2543, %v2590
        %v2614 = vsub.f32 %v2546, %v2592
        %v2615 = vsub.f32 %v2551, %v2594
        %v2616 = vsub.f32 %v2554, %v2596
        %v2617 = vsub.f32 %v2559, %v2598
        %v2618 = vsub.f32 %v2562, %v2600
        %v2619 = vsub.f32 %v2567, %v2602
        %v2620 = vsub.f32 %v2570, %v2604
        %v2621 = vmul.f32 %v2605, 1.442695
        %v2622 = vpow.pop %v2621
        %v2623 = vmul.f32 %v2606, 1.442695
        %v2624 = vpow.pop %v2623
        %v2625 = vmul.f32 %v2607, 1.442695
        %v2626 = vpow.pop %v2625
        %v2627 = vmul.f32 %v2608, 1.442695
        %v2628 = vpow.pop %v2627
        %v2629 = vmul.f32 %v2609, 1.442695
        %v2630 = vpow.pop %v2629
        %v2631 = vmul.f32 %v2610, 1.442695
        %v2632 = vpow.pop %v2631
        %v2633 = vmul.f32 %v2611, 1.442695
        %v2634 = vpow.pop %v2633
        %v2635 = vmul.f32 %v2612, 1.442695
        %v2636 = vpow.pop %v2635
        %v2637 = vmul.f32 %v2613, 1.442695
        %v2638 = vpow.pop %v2637
        %v2639 = vmul.f32 %v2614, 1.442695
        %v2640 = vpow.pop %v2639
        %v2641 = vmul.f32 %v2615, 1.442695
        %v2642 = vpow.pop %v2641
        %v2643 = vmul.f32 %v2616, 1.442695
        %v2644 = vpow.pop %v2643
        %v2645 = vmul.f32 %v2617, 1.442695
        %v2646 = vpow.pop %v2645
        %v2647 = vmul.f32 %v2618, 1.442695
        %v2648 = vpow.pop %v2647
        %v2649 = vmul.f32 %v2619, 1.442695
        %v2650 = vpow.pop %v2649
        %v2651 = vmul.f32 %v2620, 1.442695
        %v2652 = vpow.pop %v2651
        %2653 = vadd.xlane.f32.xlu0 %v2622
        %v2654 = vpop.xlane.xlu0 %2653
        %2655 = vadd.xlane.f32.xlu0 %v2624
        %v2656 = vpop.xlane.xlu0 %2655
        %2657 = vadd.xlane.f32.xlu0 %v2626
        %v2658 = vpop.xlane.xlu0 %2657
        %2659 = vadd.xlane.f32.xlu0 %v2628
        %v2660 = vpop.xlane.xlu0 %2659
        %2661 = vadd.xlane.f32.xlu0 %v2630
        %v2662 = vpop.xlane.xlu0 %2661
        %2663 = vadd.xlane.f32.xlu0 %v2632
        %v2664 = vpop.xlane.xlu0 %2663
        %2665 = vadd.xlane.f32.xlu0 %v2634
        %v2666 = vpop.xlane.xlu0 %2665
        %2667 = vadd.xlane.f32.xlu0 %v2636
        %v2668 = vpop.xlane.xlu0 %2667
        %2669 = vadd.xlane.f32.xlu0 %v2638
        %v2670 = vpop.xlane.xlu0 %2669
        %2671 = vadd.xlane.f32.xlu0 %v2640
        %v2672 = vpop.xlane.xlu0 %2671
        %2673 = vadd.xlane.f32.xlu0 %v2642
        %v2674 = vpop.xlane.xlu0 %2673
        %2675 = vadd.xlane.f32.xlu0 %v2644
        %v2676 = vpop.xlane.xlu0 %2675
        %2677 = vadd.xlane.f32.xlu0 %v2646
        %v2678 = vpop.xlane.xlu0 %2677
        %2679 = vadd.xlane.f32.xlu0 %v2648
        %v2680 = vpop.xlane.xlu0 %2679
        %2681 = vadd.xlane.f32.xlu0 %v2650
        %v2682 = vpop.xlane.xlu0 %2681
        %2683 = vadd.xlane.f32.xlu0 %v2652
        %v2684 = vpop.xlane.xlu0 %2683
        %v2685 = vrcp.pop %v2654
        %v2686 = vrcp.pop %v2656
        %v2687 = vrcp.pop %v2658
        %v2688 = vrcp.pop %v2660
        %v2689 = vrcp.pop %v2662
        %v2690 = vrcp.pop %v2664
        %v2691 = vrcp.pop %v2666
        %v2692 = vrcp.pop %v2668
        %v2693 = vrcp.pop %v2670
        %v2694 = vrcp.pop %v2672
        %v2695 = vrcp.pop %v2674
        %v2696 = vrcp.pop %v2676
        %v2697 = vrcp.pop %v2678
        %v2698 = vrcp.pop %v2680
        %v2699 = vrcp.pop %v2682
        %v2700 = vrcp.pop %v2684
        %v2701 = vmul.f32 %v2622, %v2685
        %v2702 = vmul.f32 %v2624, %v2686
        %v2703 = vmul.f32 %v2626, %v2687
        %v2704 = vmul.f32 %v2628, %v2688
        %v2705 = vmul.f32 %v2630, %v2689
        %v2706 = vmul.f32 %v2632, %v2690
        %v2707 = vmul.f32 %v2634, %v2691
        %v2708 = vmul.f32 %v2636, %v2692
        %v2709 = vmul.f32 %v2638, %v2693
        %v2710 = vmul.f32 %v2640, %v2694
        %v2711 = vmul.f32 %v2642, %v2695
        %v2712 = vmul.f32 %v2644, %v2696
        %v2713 = vmul.f32 %v2646, %v2697
        %v2714 = vmul.f32 %v2648, %v2698
        %v2715 = vmul.f32 %v2650, %v2699
        %v2716 = vmul.f32 %v2652, %v2700
        %v2717 = vpack.c.bf16 %v2702, %v2701
        %v2718 = vpack.c.bf16 %v2704, %v2703
        %v2719 = vpack.c.bf16 %v2706, %v2705
        %v2720 = vpack.c.bf16 %v2708, %v2707
        %v2721 = vpack.c.bf16 %v2710, %v2709
        %v2722 = vpack.c.bf16 %v2712, %v2711
        %v2723 = vpack.c.bf16 %v2714, %v2713
        %v2724 = vpack.c.bf16 %v2716, %v2715
        %2725 = vrot.lane.b32.xlu0 %v1505, 64
        %v2726 = vpop.permute.xlu0 %2725
        %2727 = vrot.lane.b32.xlu0 %v1508, 64
        %v2728 = vpop.permute.xlu0 %2727
        %2729 = vrot.lane.b32.xlu0 %v1511, 64
        %v2730 = vpop.permute.xlu0 %2729
        %2731 = vrot.lane.b32.xlu0 %v1514, 64
        %v2732 = vpop.permute.xlu0 %2731
        %2733 = vrot.lane.b32.xlu0 %v1517, 64
        %v2734 = vpop.permute.xlu0 %2733
        %2735 = vrot.lane.b32.xlu0 %v1520, 64
        %v2736 = vpop.permute.xlu0 %2735
        %2737 = vrot.lane.b32.xlu0 %v1523, 64
        %v2738 = vpop.permute.xlu0 %2737
        %2739 = vrot.lane.b32.xlu0 %v1526, 64
        %v2740 = vpop.permute.xlu0 %2739
        %2749 = vmatprep.subr.bf16.mxu0 0
        %2750 = vmatpush1.bf16.msra.mxu0 %v2726
        %2751 = vmatprep.subr.bf16.mxu0 0
        %2752 = vmatpush1.bf16.msra.mxu0 %v2728
        %2753 = vmatprep.subr.bf16.mxu0 0
        %2754 = vmatpush1.bf16.msra.mxu0 %v2730
        %2755 = vmatprep.subr.bf16.mxu0 0
        %2756 = vmatpush1.bf16.msra.mxu0 %v2732
        %2757 = vmatprep.subr.bf16.mxu0 0
        %2758 = vmatpush1.bf16.msra.mxu0 %v2734
        %2759 = vmatprep.subr.bf16.mxu0 0
        %2760 = vmatpush1.bf16.msra.mxu0 %v2736
        %2761 = vmatprep.subr.bf16.mxu0 0
        %2762 = vmatpush1.bf16.msra.mxu0 %v2738
        %2763 = vmatprep.subr.bf16.mxu0 0
        %2764 = vmatpush1.bf16.msra.mxu0 %v2740
        %2765 = vmatprep.subr.bf16.mxu0 0
        %2766 = vmatpush1.bf16.msra.mxu0 0
        %2767 = vmatprep.subr.bf16.mxu0 0
        %2768 = vmatpush1.bf16.msra.mxu0 0
        %2769 = vmatprep.subr.bf16.mxu0 0
        %2770 = vmatpush1.bf16.msra.mxu0 0
        %2771 = vmatprep.subr.bf16.mxu0 0
        %2772 = vmatpush1.bf16.msra.mxu0 0
        %2773 = vmatprep.subr.bf16.mxu0 0
        %2774 = vmatpush1.bf16.msra.mxu0 0
        %2775 = vmatprep.subr.bf16.mxu0 0
        %2776 = vmatpush1.bf16.msra.mxu0 0
        %2777 = vmatprep.subr.bf16.mxu0 0
        %2778 = vmatpush1.bf16.msra.mxu0 0
        %2779 = vmatprep.subr.bf16.mxu0 0
        %2780 = vmatpush1.bf16.msra.mxu0 0
        %2781 = vmatprep.mubr.bf16.mxu0 0
        %2782 = vmatmul.mubr.bf16.gmra.mrb[0].mxu0 %v2717
        %v2783 = vpop.f32.mrb[0].mxu0
        %v2784 = vadd.f32 0.0, %v2783
        %v2785 = vpop.f32.mrb[0].mxu0
        %v2786 = vpop.f32.mrb[0].mxu0
        %v2787 = vadd.f32 0.0, %v2786
        %v2788 = vpop.f32.mrb[0].mxu0
        %2789 = vmatprep.mubr.bf16.mxu0 0
        %2790 = vmatmul.mubr.bf16.gmra.mrb[0].mxu0 %v2718
        %v2791 = vpop.f32.mrb[0].mxu0
        %v2792 = vadd.f32 0.0, %v2791
        %v2793 = vpop.f32.mrb[0].mxu0
        %v2794 = vpop.f32.mrb[0].mxu0
        %v2795 = vadd.f32 0.0, %v2794
        %v2796 = vpop.f32.mrb[0].mxu0
        %2797 = vmatprep.mubr.bf16.mxu0 0
        %2798 = vmatmul.mubr.bf16.gmra.mrb[0].mxu0 %v2719
        %v2799 = vpop.f32.mrb[0].mxu0
        %v2800 = vadd.f32 0.0, %v2799
        %v2801 = vpop.f32.mrb[0].mxu0
        %v2802 = vpop.f32.mrb[0].mxu0
        %v2803 = vadd.f32 0.0, %v2802
        %v2804 = vpop.f32.mrb[0].mxu0
        %2805 = vmatprep.mubr.bf16.mxu0 0
        %2806 = vmatmul.mubr.bf16.gmra.mrb[0].mxu0 %v2720
        %v2807 = vpop.f32.mrb[0].mxu0
        %v2808 = vadd.f32 0.0, %v2807
        %v2809 = vpop.f32.mrb[0].mxu0
        %v2810 = vpop.f32.mrb[0].mxu0
        %v2811 = vadd.f32 0.0, %v2810
        %v2812 = vpop.f32.mrb[0].mxu0
        %2813 = vmatprep.mubr.bf16.mxu0 0
        %2814 = vmatmul.mubr.bf16.gmra.mrb[0].mxu0 %v2721
        %v2815 = vpop.f32.mrb[0].mxu0
        %v2816 = vadd.f32 0.0, %v2815
        %v2817 = vpop.f32.mrb[0].mxu0
        %v2818 = vpop.f32.mrb[0].mxu0
        %v2819 = vadd.f32 0.0, %v2818
        %v2820 = vpop.f32.mrb[0].mxu0
        %2821 = vmatprep.mubr.bf16.mxu0 0
        %2822 = vmatmul.mubr.bf16.gmra.mrb[0].mxu0 %v2722
        %v2823 = vpop.f32.mrb[0].mxu0
        %v2824 = vadd.f32 0.0, %v2823
        %v2825 = vpop.f32.mrb[0].mxu0
        %v2826 = vpop.f32.mrb[0].mxu0
        %v2827 = vadd.f32 0.0, %v2826
        %v2828 = vpop.f32.mrb[0].mxu0
        %2829 = vmatprep.mubr.bf16.mxu0 0
        %2830 = vmatmul.mubr.bf16.gmra.mrb[0].mxu0 %v2723
        %v2831 = vpop.f32.mrb[0].mxu0
        %v2832 = vadd.f32 0.0, %v2831
        %v2833 = vpop.f32.mrb[0].mxu0
        %v2834 = vpop.f32.mrb[0].mxu0
        %v2835 = vadd.f32 0.0, %v2834
        %v2836 = vpop.f32.mrb[0].mxu0
        %2837 = vmatprep.mubr.bf16.mxu0 0
        %2838 = vmatmul.mubr.bf16.gmra.mrb[0].mxu0 %v2724
        %v2839 = vpop.f32.mrb[0].mxu0
        %v2840 = vadd.f32 0.0, %v2839
        %v2841 = vpop.f32.mrb[0].mxu0
        %v2842 = vpop.f32.mrb[0].mxu0
        %v2843 = vadd.f32 0.0, %v2842
        %v2844 = vpop.f32.mrb[0].mxu0
        %2845 = vdwg.mxu0
        %2846 = vrot.lane.b32.xlu0 %v1503, 32
        %v2847 = vpop.permute.xlu0 %2846
        %2848 = vrot.lane.b32.xlu0 %v1506, 32
        %v2849 = vpop.permute.xlu0 %2848
        %2850 = vrot.lane.b32.xlu0 %v1509, 32
        %v2851 = vpop.permute.xlu0 %2850
        %2852 = vrot.lane.b32.xlu0 %v1512, 32
        %v2853 = vpop.permute.xlu0 %2852
        %2854 = vrot.lane.b32.xlu0 %v1515, 32
        %v2855 = vpop.permute.xlu0 %2854
        %2856 = vrot.lane.b32.xlu0 %v1518, 32
        %v2857 = vpop.permute.xlu0 %2856
        %2858 = vrot.lane.b32.xlu0 %v1521, 32
        %v2859 = vpop.permute.xlu0 %2858
        %2860 = vrot.lane.b32.xlu0 %v1524, 32
        %v2861 = vpop.permute.xlu0 %2860
        %2862 = vrot.lane.b32.xlu0 %v1504, 32
        %v2863 = vpop.permute.xlu0 %2862
        %2864 = vrot.lane.b32.xlu0 %v1507, 32
        %v2865 = vpop.permute.xlu0 %2864
        %2866 = vrot.lane.b32.xlu0 %v1510, 32
        %v2867 = vpop.permute.xlu0 %2866
        %2868 = vrot.lane.b32.xlu0 %v1513, 32
        %v2869 = vpop.permute.xlu0 %2868
        %2870 = vrot.lane.b32.xlu0 %v1516, 32
        %v2871 = vpop.permute.xlu0 %2870
        %2872 = vrot.lane.b32.xlu0 %v1519, 32
        %v2873 = vpop.permute.xlu0 %2872
        %2874 = vrot.lane.b32.xlu0 %v1522, 32
        %v2875 = vpop.permute.xlu0 %2874
        %2876 = vrot.lane.b32.xlu0 %v1525, 32
        %v2877 = vpop.permute.xlu0 %2876
        %v2879 = vsel %vm1527, %v2847, 0
        %v2882 = vsel %vm1527, %v2849, 0
        %v2885 = vsel %vm1527, %v2851, 0
        %v2888 = vsel %vm1527, %v2853, 0
        %v2891 = vsel %vm1527, %v2855, 0
        %v2894 = vsel %vm1527, %v2857, 0
        %v2897 = vsel %vm1527, %v2859, 0
        %v2900 = vsel %vm1527, %v2861, 0
        %v2903 = vsel %vm1527, %v2863, 0
        %v2906 = vsel %vm1527, %v2865, 0
        %v2909 = vsel %vm1527, %v2867, 0
        %v2912 = vsel %vm1527, %v2869, 0
        %v2915 = vsel %vm1527, %v2871, 0
        %v2918 = vsel %vm1527, %v2873, 0
        %v2921 = vsel %vm1527, %v2875, 0
        %v2924 = vsel %vm1527, %v2877, 0
        %2926 = vmatprep.subr.bf16.mxu0 0
        %2927 = vmatpush1.bf16.xpose.msra.mxu0 %v2903
        %2928 = vmatprep.subr.bf16.mxu0 0
        %2929 = vmatpush1.bf16.xpose.msra.mxu0 %v2906
        %2930 = vmatprep.subr.bf16.mxu0 0
        %2931 = vmatpush1.bf16.xpose.msra.mxu0 %v2909
        %2932 = vmatprep.subr.bf16.mxu0 0
        %2933 = vmatpush1.bf16.xpose.msra.mxu0 %v2912
        %2934 = vmatprep.subr.bf16.mxu0 0
        %2935 = vmatpush1.bf16.xpose.msra.mxu0 %v2915
        %2936 = vmatprep.subr.bf16.mxu0 0
        %2937 = vmatpush1.bf16.xpose.msra.mxu0 %v2918
        %2938 = vmatprep.subr.bf16.mxu0 0
        %2939 = vmatpush1.bf16.xpose.msra.mxu0 %v2921
        %2940 = vmatprep.subr.bf16.mxu0 0
        %2941 = vmatpush1.bf16.xpose.msra.mxu0 %v2924
        %2942 = vmatprep.subr.bf16.mxu0 0
        %2943 = vmatpush1.bf16.xpose.msra.mxu0 0
        %2944 = vmatprep.subr.bf16.mxu0 0
        %2945 = vmatpush1.bf16.xpose.msra.mxu0 0
        %2946 = vmatprep.subr.bf16.mxu0 0
        %2947 = vmatpush1.bf16.xpose.msra.mxu0 0
        %2948 = vmatprep.subr.bf16.mxu0 0
        %2949 = vmatpush1.bf16.xpose.msra.mxu0 0
        %2950 = vmatprep.subr.bf16.mxu0 0
        %2951 = vmatpush1.bf16.xpose.msra.mxu0 0
        %2952 = vmatprep.subr.bf16.mxu0 0
        %2953 = vmatpush1.bf16.xpose.msra.mxu0 0
        %2954 = vmatprep.subr.bf16.mxu0 0
        %2955 = vmatpush1.bf16.xpose.msra.mxu0 0
        %2956 = vmatprep.subr.bf16.mxu0 0
        %2957 = vmatpush1.bf16.xpose.msra.mxu0 0
        %2958 = vmatprep.mubr.bf16.mxu0 0
        %2959 = vmatmul.mubr.bf16.gmra.mrb[0].mxu0 %v2879
        %v2960 = vpop.f32.mrb[0].mxu0
        %v2961 = vadd.f32 %v837, %v2960
        %v2962 = vpop.f32.mrb[0].mxu0
        %v2963 = vpop.f32.mrb[0].mxu0
        %v2964 = vadd.f32 %v838, %v2963
        %v2965 = vpop.f32.mrb[0].mxu0
        %2966 = vmatprep.mubr.bf16.mxu0 0
        %2967 = vmatmul.mubr.bf16.gmra.mrb[0].mxu0 %v2882
        %v2968 = vpop.f32.mrb[0].mxu0
        %v2969 = vadd.f32 %v839, %v2968
        %v2970 = vpop.f32.mrb[0].mxu0
        %v2971 = vpop.f32.mrb[0].mxu0
        %v2972 = vadd.f32 %v840, %v2971
        %v2973 = vpop.f32.mrb[0].mxu0
        %2974 = vmatprep.mubr.bf16.mxu0 0
        %2975 = vmatmul.mubr.bf16.gmra.mrb[0].mxu0 %v2885
        %v2976 = vpop.f32.mrb[0].mxu0
        %v2977 = vadd.f32 %v841, %v2976
        %v2978 = vpop.f32.mrb[0].mxu0
        %v2979 = vpop.f32.mrb[0].mxu0
        %v2980 = vadd.f32 %v842, %v2979
        %v2981 = vpop.f32.mrb[0].mxu0
        %2982 = vmatprep.mubr.bf16.mxu0 0
        %2983 = vmatmul.mubr.bf16.gmra.mrb[0].mxu0 %v2888
        %v2984 = vpop.f32.mrb[0].mxu0
        %v2985 = vadd.f32 %v843, %v2984
        %v2986 = vpop.f32.mrb[0].mxu0
        %v2987 = vpop.f32.mrb[0].mxu0
        %v2988 = vadd.f32 %v844, %v2987
        %v2989 = vpop.f32.mrb[0].mxu0
        %2990 = vmatprep.mubr.bf16.mxu0 0
        %2991 = vmatmul.mubr.bf16.gmra.mrb[0].mxu0 %v2891
        %v2992 = vpop.f32.mrb[0].mxu0
        %v2993 = vadd.f32 %v845, %v2992
        %v2994 = vpop.f32.mrb[0].mxu0
        %v2995 = vpop.f32.mrb[0].mxu0
        %v2996 = vadd.f32 %v846, %v2995
        %v2997 = vpop.f32.mrb[0].mxu0
        %2998 = vmatprep.mubr.bf16.mxu0 0
        %2999 = vmatmul.mubr.bf16.gmra.mrb[0].mxu0 %v2894
        %v3000 = vpop.f32.mrb[0].mxu0
        %v3001 = vadd.f32 %v847, %v3000
        %v3002 = vpop.f32.mrb[0].mxu0
        %v3003 = vpop.f32.mrb[0].mxu0
        %v3004 = vadd.f32 %v848, %v3003
        %v3005 = vpop.f32.mrb[0].mxu0
        %3006 = vmatprep.mubr.bf16.mxu0 0
        %3007 = vmatmul.mubr.bf16.gmra.mrb[0].mxu0 %v2897
        %v3008 = vpop.f32.mrb[0].mxu0
        %v3009 = vadd.f32 %v849, %v3008
        %v3010 = vpop.f32.mrb[0].mxu0
        %v3011 = vpop.f32.mrb[0].mxu0
        %v3012 = vadd.f32 %v850, %v3011
        %v3013 = vpop.f32.mrb[0].mxu0
        %3014 = vmatprep.mubr.bf16.mxu0 0
        %3015 = vmatmul.mubr.bf16.gmra.mrb[0].mxu0 %v2900
        %v3016 = vpop.f32.mrb[0].mxu0
        %v3017 = vadd.f32 %v851, %v3016
        %v3018 = vpop.f32.mrb[0].mxu0
        %v3019 = vpop.f32.mrb[0].mxu0
        %v3020 = vadd.f32 %v852, %v3019
        %v3021 = vpop.f32.mrb[0].mxu0
        %3022 = vdwg.mxu0
        %3023 = vmax.xlane.f32.xlu0 %v2961
        %v3024 = vpop.xlane.xlu0 %3023
        %3025 = vmax.xlane.f32.xlu0 %v2964
        %v3026 = vpop.xlane.xlu0 %3025
        %3027 = vmax.xlane.f32.xlu0 %v2969
        %v3028 = vpop.xlane.xlu0 %3027
        %3029 = vmax.xlane.f32.xlu0 %v2972
        %v3030 = vpop.xlane.xlu0 %3029
        %3031 = vmax.xlane.f32.xlu0 %v2977
        %v3032 = vpop.xlane.xlu0 %3031
        %3033 = vmax.xlane.f32.xlu0 %v2980
        %v3034 = vpop.xlane.xlu0 %3033
        %3035 = vmax.xlane.f32.xlu0 %v2985
        %v3036 = vpop.xlane.xlu0 %3035
        %3037 = vmax.xlane.f32.xlu0 %v2988
        %v3038 = vpop.xlane.xlu0 %3037
        %3039 = vmax.xlane.f32.xlu0 %v2993
        %v3040 = vpop.xlane.xlu0 %3039
        %3041 = vmax.xlane.f32.xlu0 %v2996
        %v3042 = vpop.xlane.xlu0 %3041
        %3043 = vmax.xlane.f32.xlu0 %v3001
        %v3044 = vpop.xlane.xlu0 %3043
        %3045 = vmax.xlane.f32.xlu0 %v3004
        %v3046 = vpop.xlane.xlu0 %3045
        %3047 = vmax.xlane.f32.xlu0 %v3009
        %v3048 = vpop.xlane.xlu0 %3047
        %3049 = vmax.xlane.f32.xlu0 %v3012
        %v3050 = vpop.xlane.xlu0 %3049
        %3051 = vmax.xlane.f32.xlu0 %v3017
        %v3052 = vpop.xlane.xlu0 %3051
        %3053 = vmax.xlane.f32.xlu0 %v3020
        %v3054 = vpop.xlane.xlu0 %3053
        %v3055 = vsub.f32 %v2961, %v3024
        %v3056 = vsub.f32 %v2964, %v3026
        %v3057 = vsub.f32 %v2969, %v3028
        %v3058 = vsub.f32 %v2972, %v3030
        %v3059 = vsub.f32 %v2977, %v3032
        %v3060 = vsub.f32 %v2980, %v3034
        %v3061 = vsub.f32 %v2985, %v3036
        %v3062 = vsub.f32 %v2988, %v3038
        %v3063 = vsub.f32 %v2993, %v3040
        %v3064 = vsub.f32 %v2996, %v3042
        %v3065 = vsub.f32 %v3001, %v3044
        %v3066 = vsub.f32 %v3004, %v3046
        %v3067 = vsub.f32 %v3009, %v3048
        %v3068 = vsub.f32 %v3012, %v3050
        %v3069 = vsub.f32 %v3017, %v3052
        %v3070 = vsub.f32 %v3020, %v3054
        %v3071 = vmul.f32 %v3055, 1.442695
        %v3072 = vpow.pop %v3071
        %v3073 = vmul.f32 %v3056, 1.442695
        %v3074 = vpow.pop %v3073
        %v3075 = vmul.f32 %v3057, 1.442695
        %v3076 = vpow.pop %v3075
        %v3077 = vmul.f32 %v3058, 1.442695
        %v3078 = vpow.pop %v3077
        %v3079 = vmul.f32 %v3059, 1.442695
        %v3080 = vpow.pop %v3079
        %v3081 = vmul.f32 %v3060, 1.442695
        %v3082 = vpow.pop %v3081
        %v3083 = vmul.f32 %v3061, 1.442695
        %v3084 = vpow.pop %v3083
        %v3085 = vmul.f32 %v3062, 1.442695
        %v3086 = vpow.pop %v3085
        %v3087 = vmul.f32 %v3063, 1.442695
        %v3088 = vpow.pop %v3087
        %v3089 = vmul.f32 %v3064, 1.442695
        %v3090 = vpow.pop %v3089
        %v3091 = vmul.f32 %v3065, 1.442695
        %v3092 = vpow.pop %v3091
        %v3093 = vmul.f32 %v3066, 1.442695
        %v3094 = vpow.pop %v3093
        %v3095 = vmul.f32 %v3067, 1.442695
        %v3096 = vpow.pop %v3095
        %v3097 = vmul.f32 %v3068, 1.442695
        %v3098 = vpow.pop %v3097
        %v3099 = vmul.f32 %v3069, 1.442695
        %v3100 = vpow.pop %v3099
        %v3101 = vmul.f32 %v3070, 1.442695
        %v3102 = vpow.pop %v3101
        %3103 = vadd.xlane.f32.xlu0 %v3072
        %v3104 = vpop.xlane.xlu0 %3103
        %3105 = vadd.xlane.f32.xlu0 %v3074
        %v3106 = vpop.xlane.xlu0 %3105
        %3107 = vadd.xlane.f32.xlu0 %v3076
        %v3108 = vpop.xlane.xlu0 %3107
        %3109 = vadd.xlane.f32.xlu0 %v3078
        %v3110 = vpop.xlane.xlu0 %3109
        %3111 = vadd.xlane.f32.xlu0 %v3080
        %v3112 = vpop.xlane.xlu0 %3111
        %3113 = vadd.xlane.f32.xlu0 %v3082
        %v3114 = vpop.xlane.xlu0 %3113
        %3115 = vadd.xlane.f32.xlu0 %v3084
        %v3116 = vpop.xlane.xlu0 %3115
        %3117 = vadd.xlane.f32.xlu0 %v3086
        %v3118 = vpop.xlane.xlu0 %3117
        %3119 = vadd.xlane.f32.xlu0 %v3088
        %v3120 = vpop.xlane.xlu0 %3119
        %3121 = vadd.xlane.f32.xlu0 %v3090
        %v3122 = vpop.xlane.xlu0 %3121
        %3123 = vadd.xlane.f32.xlu0 %v3092
        %v3124 = vpop.xlane.xlu0 %3123
        %3125 = vadd.xlane.f32.xlu0 %v3094
        %v3126 = vpop.xlane.xlu0 %3125
        %3127 = vadd.xlane.f32.xlu0 %v3096
        %v3128 = vpop.xlane.xlu0 %3127
        %3129 = vadd.xlane.f32.xlu0 %v3098
        %v3130 = vpop.xlane.xlu0 %3129
        %3131 = vadd.xlane.f32.xlu0 %v3100
        %v3132 = vpop.xlane.xlu0 %3131
        %3133 = vadd.xlane.f32.xlu0 %v3102
        %v3134 = vpop.xlane.xlu0 %3133
        %v3135 = vrcp.pop %v3104
        %v3136 = vrcp.pop %v3106
        %v3137 = vrcp.pop %v3108
        %v3138 = vrcp.pop %v3110
        %v3139 = vrcp.pop %v3112
        %v3140 = vrcp.pop %v3114
        %v3141 = vrcp.pop %v3116
        %v3142 = vrcp.pop %v3118
        %v3143 = vrcp.pop %v3120
        %v3144 = vrcp.pop %v3122
        %v3145 = vrcp.pop %v3124
        %v3146 = vrcp.pop %v3126
        %v3147 = vrcp.pop %v3128
        %v3148 = vrcp.pop %v3130
        %v3149 = vrcp.pop %v3132
        %v3150 = vrcp.pop %v3134
        %v3151 = vmul.f32 %v3072, %v3135
        %v3152 = vmul.f32 %v3074, %v3136
        %v3153 = vmul.f32 %v3076, %v3137
        %v3154 = vmul.f32 %v3078, %v3138
        %v3155 = vmul.f32 %v3080, %v3139
        %v3156 = vmul.f32 %v3082, %v3140
        %v3157 = vmul.f32 %v3084, %v3141
        %v3158 = vmul.f32 %v3086, %v3142
        %v3159 = vmul.f32 %v3088, %v3143
        %v3160 = vmul.f32 %v3090, %v3144
        %v3161 = vmul.f32 %v3092, %v3145
        %v3162 = vmul.f32 %v3094, %v3146
        %v3163 = vmul.f32 %v3096, %v3147
        %v3164 = vmul.f32 %v3098, %v3148
        %v3165 = vmul.f32 %v3100, %v3149
        %v3166 = vmul.f32 %v3102, %v3150
        %v3167 = vpack.c.bf16 %v3152, %v3151
        %v3168 = vpack.c.bf16 %v3154, %v3153
        %v3169 = vpack.c.bf16 %v3156, %v3155
        %v3170 = vpack.c.bf16 %v3158, %v3157
        %v3171 = vpack.c.bf16 %v3160, %v3159
        %v3172 = vpack.c.bf16 %v3162, %v3161
        %v3173 = vpack.c.bf16 %v3164, %v3163
        %v3174 = vpack.c.bf16 %v3166, %v3165
        %3175 = vrot.lane.b32.xlu0 %v1505, 32
        %v3176 = vpop.permute.xlu0 %3175
        %3177 = vrot.lane.b32.xlu0 %v1508, 32
        %v3178 = vpop.permute.xlu0 %3177
        %3179 = vrot.lane.b32.xlu0 %v1511, 32
        %v3180 = vpop.permute.xlu0 %3179
        %3181 = vrot.lane.b32.xlu0 %v1514, 32
        %v3182 = vpop.permute.xlu0 %3181
        %3183 = vrot.lane.b32.xlu0 %v1517, 32
        %v3184 = vpop.permute.xlu0 %3183
        %3185 = vrot.lane.b32.xlu0 %v1520, 32
        %v3186 = vpop.permute.xlu0 %3185
        %3187 = vrot.lane.b32.xlu0 %v1523, 32
        %v3188 = vpop.permute.xlu0 %3187
        %3189 = vrot.lane.b32.xlu0 %v1526, 32
        %v3190 = vpop.permute.xlu0 %3189
        %3199 = vmatprep.subr.bf16.mxu0 0
        %3200 = vmatpush1.bf16.msra.mxu0 %v3176
        %3201 = vmatprep.subr.bf16.mxu0 0
        %3202 = vmatpush1.bf16.msra.mxu0 %v3178
        %3203 = vmatprep.subr.bf16.mxu0 0
        %3204 = vmatpush1.bf16.msra.mxu0 %v3180
        %3205 = vmatprep.subr.bf16.mxu0 0
        %3206 = vmatpush1.bf16.msra.mxu0 %v3182
        %3207 = vmatprep.subr.bf16.mxu0 0
        %3208 = vmatpush1.bf16.msra.mxu0 %v3184
        %3209 = vmatprep.subr.bf16.mxu0 0
        %3210 = vmatpush1.bf16.msra.mxu0 %v3186
        %3211 = vmatprep.subr.bf16.mxu0 0
        %3212 = vmatpush1.bf16.msra.mxu0 %v3188
        %3213 = vmatprep.subr.bf16.mxu0 0
        %3214 = vmatpush1.bf16.msra.mxu0 %v3190
        %3215 = vmatprep.subr.bf16.mxu0 0
        %3216 = vmatpush1.bf16.msra.mxu0 0
        %3217 = vmatprep.subr.bf16.mxu0 0
        %3218 = vmatpush1.bf16.msra.mxu0 0
        %3219 = vmatprep.subr.bf16.mxu0 0
        %3220 = vmatpush1.bf16.msra.mxu0 0
        %3221 = vmatprep.subr.bf16.mxu0 0
        %3222 = vmatpush1.bf16.msra.mxu0 0
        %3223 = vmatprep.subr.bf16.mxu0 0
        %3224 = vmatpush1.bf16.msra.mxu0 0
        %3225 = vmatprep.subr.bf16.mxu0 0
        %3226 = vmatpush1.bf16.msra.mxu0 0
        %3227 = vmatprep.subr.bf16.mxu0 0
        %3228 = vmatpush1.bf16.msra.mxu0 0
        %3229 = vmatprep.subr.bf16.mxu0 0
        %3230 = vmatpush1.bf16.msra.mxu0 0
        %3231 = vmatprep.mubr.bf16.mxu0 0
        %3232 = vmatmul.mubr.bf16.gmra.mrb[0].mxu0 %v3167
        %v3233 = vpop.f32.mrb[0].mxu0
        %v3234 = vadd.f32 0.0, %v3233
        %v3235 = vpop.f32.mrb[0].mxu0
        %v3236 = vpop.f32.mrb[0].mxu0
        %v3237 = vadd.f32 0.0, %v3236
        %v3238 = vpop.f32.mrb[0].mxu0
        %3239 = vmatprep.mubr.bf16.mxu0 0
        %3240 = vmatmul.mubr.bf16.gmra.mrb[0].mxu0 %v3168
        %v3241 = vpop.f32.mrb[0].mxu0
        %v3242 = vadd.f32 0.0, %v3241
        %v3243 = vpop.f32.mrb[0].mxu0
        %v3244 = vpop.f32.mrb[0].mxu0
        %v3245 = vadd.f32 0.0, %v3244
        %v3246 = vpop.f32.mrb[0].mxu0
        %3247 = vmatprep.mubr.bf16.mxu0 0
        %3248 = vmatmul.mubr.bf16.gmra.mrb[0].mxu0 %v3169
        %v3249 = vpop.f32.mrb[0].mxu0
        %v3250 = vadd.f32 0.0, %v3249
        %v3251 = vpop.f32.mrb[0].mxu0
        %v3252 = vpop.f32.mrb[0].mxu0
        %v3253 = vadd.f32 0.0, %v3252
        %v3254 = vpop.f32.mrb[0].mxu0
        %3255 = vmatprep.mubr.bf16.mxu0 0
        %3256 = vmatmul.mubr.bf16.gmra.mrb[0].mxu0 %v3170
        %v3257 = vpop.f32.mrb[0].mxu0
        %v3258 = vadd.f32 0.0, %v3257
        %v3259 = vpop.f32.mrb[0].mxu0
        %v3260 = vpop.f32.mrb[0].mxu0
        %v3261 = vadd.f32 0.0, %v3260
        %v3262 = vpop.f32.mrb[0].mxu0
        %3263 = vmatprep.mubr.bf16.mxu0 0
        %3264 = vmatmul.mubr.bf16.gmra.mrb[0].mxu0 %v3171
        %v3265 = vpop.f32.mrb[0].mxu0
        %v3266 = vadd.f32 0.0, %v3265
        %v3267 = vpop.f32.mrb[0].mxu0
        %v3268 = vpop.f32.mrb[0].mxu0
        %v3269 = vadd.f32 0.0, %v3268
        %v3270 = vpop.f32.mrb[0].mxu0
        %3271 = vmatprep.mubr.bf16.mxu0 0
        %3272 = vmatmul.mubr.bf16.gmra.mrb[0].mxu0 %v3172
        %v3273 = vpop.f32.mrb[0].mxu0
        %v3274 = vadd.f32 0.0, %v3273
        %v3275 = vpop.f32.mrb[0].mxu0
        %v3276 = vpop.f32.mrb[0].mxu0
        %v3277 = vadd.f32 0.0, %v3276
        %v3278 = vpop.f32.mrb[0].mxu0
        %3279 = vmatprep.mubr.bf16.mxu0 0
        %3280 = vmatmul.mubr.bf16.gmra.mrb[0].mxu0 %v3173
        %v3281 = vpop.f32.mrb[0].mxu0
        %v3282 = vadd.f32 0.0, %v3281
        %v3283 = vpop.f32.mrb[0].mxu0
        %v3284 = vpop.f32.mrb[0].mxu0
        %v3285 = vadd.f32 0.0, %v3284
        %v3286 = vpop.f32.mrb[0].mxu0
        %3287 = vmatprep.mubr.bf16.mxu0 0
        %3288 = vmatmul.mubr.bf16.gmra.mrb[0].mxu0 %v3174
        %v3289 = vpop.f32.mrb[0].mxu0
        %v3290 = vadd.f32 0.0, %v3289
        %v3291 = vpop.f32.mrb[0].mxu0
        %v3292 = vpop.f32.mrb[0].mxu0
        %v3293 = vadd.f32 0.0, %v3292
        %v3294 = vpop.f32.mrb[0].mxu0
        %3295 = vdwg.mxu0
        %3312 = vrot.lane.b32.xlu0 %v2334, 32
        %v3313 = vpop.permute.xlu0 %3312
        %3314 = vrot.lane.b32.xlu0 %v2337, 32
        %v3315 = vpop.permute.xlu0 %3314
        %3316 = vrot.lane.b32.xlu0 %v2342, 32
        %v3317 = vpop.permute.xlu0 %3316
        %3318 = vrot.lane.b32.xlu0 %v2345, 32
        %v3319 = vpop.permute.xlu0 %3318
        %3320 = vrot.lane.b32.xlu0 %v2350, 32
        %v3321 = vpop.permute.xlu0 %3320
        %3322 = vrot.lane.b32.xlu0 %v2353, 32
        %v3323 = vpop.permute.xlu0 %3322
        %3324 = vrot.lane.b32.xlu0 %v2358, 32
        %v3325 = vpop.permute.xlu0 %3324
        %3326 = vrot.lane.b32.xlu0 %v2361, 32
        %v3327 = vpop.permute.xlu0 %3326
        %3328 = vrot.lane.b32.xlu0 %v2366, 32
        %v3329 = vpop.permute.xlu0 %3328
        %3330 = vrot.lane.b32.xlu0 %v2369, 32
        %v3331 = vpop.permute.xlu0 %3330
        %3332 = vrot.lane.b32.xlu0 %v2374, 32
        %v3333 = vpop.permute.xlu0 %3332
        %3334 = vrot.lane.b32.xlu0 %v2377, 32
        %v3335 = vpop.permute.xlu0 %3334
        %3336 = vrot.lane.b32.xlu0 %v2382, 32
        %v3337 = vpop.permute.xlu0 %3336
        %3338 = vrot.lane.b32.xlu0 %v2385, 32
        %v3339 = vpop.permute.xlu0 %3338
        %3340 = vrot.lane.b32.xlu0 %v2390, 32
        %v3341 = vpop.permute.xlu0 %3340
        %3342 = vrot.lane.b32.xlu0 %v2393, 32
        %v3343 = vpop.permute.xlu0 %3342
        %3376 = vrot.lane.b32.xlu0 %v2784, 64
        %v3377 = vpop.permute.xlu0 %3376
        %3378 = vrot.lane.b32.xlu0 %v2787, 64
        %v3379 = vpop.permute.xlu0 %3378
        %3380 = vrot.lane.b32.xlu0 %v2792, 64
        %v3381 = vpop.permute.xlu0 %3380
        %3382 = vrot.lane.b32.xlu0 %v2795, 64
        %v3383 = vpop.permute.xlu0 %3382
        %3384 = vrot.lane.b32.xlu0 %v2800, 64
        %v3385 = vpop.permute.xlu0 %3384
        %3386 = vrot.lane.b32.xlu0 %v2803, 64
        %v3387 = vpop.permute.xlu0 %3386
        %3388 = vrot.lane.b32.xlu0 %v2808, 64
        %v3389 = vpop.permute.xlu0 %3388
        %3390 = vrot.lane.b32.xlu0 %v2811, 64
        %v3391 = vpop.permute.xlu0 %3390
        %3392 = vrot.lane.b32.xlu0 %v2816, 64
        %v3393 = vpop.permute.xlu0 %3392
        %3394 = vrot.lane.b32.xlu0 %v2819, 64
        %v3395 = vpop.permute.xlu0 %3394
        %3396 = vrot.lane.b32.xlu0 %v2824, 64
        %v3397 = vpop.permute.xlu0 %3396
        %3398 = vrot.lane.b32.xlu0 %v2827, 64
        %v3399 = vpop.permute.xlu0 %3398
        %3400 = vrot.lane.b32.xlu0 %v2832, 64
        %v3401 = vpop.permute.xlu0 %3400
        %3402 = vrot.lane.b32.xlu0 %v2835, 64
        %v3403 = vpop.permute.xlu0 %3402
        %3404 = vrot.lane.b32.xlu0 %v2840, 64
        %v3405 = vpop.permute.xlu0 %3404
        %3406 = vrot.lane.b32.xlu0 %v2843, 64
        %v3407 = vpop.permute.xlu0 %3406
        %3440 = vrot.lane.b32.xlu0 %v3234, 96
        %v3441 = vpop.permute.xlu0 %3440
        %3442 = vrot.lane.b32.xlu0 %v3237, 96
        %v3443 = vpop.permute.xlu0 %3442
        %3444 = vrot.lane.b32.xlu0 %v3242, 96
        %v3445 = vpop.permute.xlu0 %3444
        %3446 = vrot.lane.b32.xlu0 %v3245, 96
        %v3447 = vpop.permute.xlu0 %3446
        %3448 = vrot.lane.b32.xlu0 %v3250, 96
        %v3449 = vpop.permute.xlu0 %3448
        %3450 = vrot.lane.b32.xlu0 %v3253, 96
        %v3451 = vpop.permute.xlu0 %3450
        %3452 = vrot.lane.b32.xlu0 %v3258, 96
        %v3453 = vpop.permute.xlu0 %3452
        %3454 = vrot.lane.b32.xlu0 %v3261, 96
        %v3455 = vpop.permute.xlu0 %3454
        %3456 = vrot.lane.b32.xlu0 %v3266, 96
        %v3457 = vpop.permute.xlu0 %3456
        %3458 = vrot.lane.b32.xlu0 %v3269, 96
        %v3459 = vpop.permute.xlu0 %3458
        %3460 = vrot.lane.b32.xlu0 %v3274, 96
        %v3461 = vpop.permute.xlu0 %3460
        %3462 = vrot.lane.b32.xlu0 %v3277, 96
        %v3463 = vpop.permute.xlu0 %3462
        %3464 = vrot.lane.b32.xlu0 %v3282, 96
        %v3465 = vpop.permute.xlu0 %3464
        %3466 = vrot.lane.b32.xlu0 %v3285, 96
        %v3467 = vpop.permute.xlu0 %3466
        %3468 = vrot.lane.b32.xlu0 %v3290, 96
        %v3469 = vpop.permute.xlu0 %3468
        %3470 = vrot.lane.b32.xlu0 %v3293, 96
        %v3471 = vpop.permute.xlu0 %3470
        %v3488 = vsel %vm1527, %v1860, %v3313
        %v3489 = vsel %vm1527, %v1863, %v3315
        %v3490 = vsel %vm1527, %v1868, %v3317
        %v3491 = vsel %vm1527, %v1871, %v3319
        %v3492 = vsel %vm1527, %v1876, %v3321
        %v3493 = vsel %vm1527, %v1879, %v3323
        %v3494 = vsel %vm1527, %v1884, %v3325
        %v3495 = vsel %vm1527, %v1887, %v3327
        %v3496 = vsel %vm1527, %v1892, %v3329
        %v3497 = vsel %vm1527, %v1895, %v3331
        %v3498 = vsel %vm1527, %v1900, %v3333
        %v3499 = vsel %vm1527, %v1903, %v3335
        %v3500 = vsel %vm1527, %v1908, %v3337
        %v3501 = vsel %vm1527, %v1911, %v3339
        %v3502 = vsel %vm1527, %v1916, %v3341
        %v3503 = vsel %vm1527, %v1919, %v3343
        %vm3504 = vcmask 523264
        %v3505 = vsel %vm3504, %v3488, %v3377
        %v3506 = vsel %vm3504, %v3489, %v3379
        %v3507 = vsel %vm3504, %v3490, %v3381
        %v3508 = vsel %vm3504, %v3491, %v3383
        %v3509 = vsel %vm3504, %v3492, %v3385
        %v3510 = vsel %vm3504, %v3493, %v3387
        %v3511 = vsel %vm3504, %v3494, %v3389
        %v3512 = vsel %vm3504, %v3495, %v3391
        %v3513 = vsel %vm3504, %v3496, %v3393
        %v3514 = vsel %vm3504, %v3497, %v3395
        %v3515 = vsel %vm3504, %v3498, %v3397
        %v3516 = vsel %vm3504, %v3499, %v3399
        %v3517 = vsel %vm3504, %v3500, %v3401
        %v3518 = vsel %vm3504, %v3501, %v3403
        %v3519 = vsel %vm3504, %v3502, %v3405
        %v3520 = vsel %vm3504, %v3503, %v3407
        %vm3521 = vcmask 785408
        %v3522 = vsel %vm3521, %v3505, %v3441
        %v3523 = vsel %vm3521, %v3506, %v3443
        %v3524 = vsel %vm3521, %v3507, %v3445
        %v3525 = vsel %vm3521, %v3508, %v3447
        %v3526 = vsel %vm3521, %v3509, %v3449
        %v3527 = vsel %vm3521, %v3510, %v3451
        %v3528 = vsel %vm3521, %v3511, %v3453
        %v3529 = vsel %vm3521, %v3512, %v3455
        %v3530 = vsel %vm3521, %v3513, %v3457
        %v3531 = vsel %vm3521, %v3514, %v3459
        %v3532 = vsel %vm3521, %v3515, %v3461
        %v3533 = vsel %vm3521, %v3516, %v3463
        %v3534 = vsel %vm3521, %v3517, %v3465
        %v3535 = vsel %vm3521, %v3518, %v3467
        %v3536 = vsel %vm3521, %v3519, %v3469
        %v3537 = vsel %vm3521, %v3520, %v3471
        %v3538 = vpack.c.bf16 %v3523, %v3522
        %v3539 = vpack.c.bf16 %v3525, %v3524
        %v3540 = vpack.c.bf16 %v3527, %v3526
        %v3541 = vpack.c.bf16 %v3529, %v3528
        %v3542 = vpack.c.bf16 %v3531, %v3530
        %v3543 = vpack.c.bf16 %v3533, %v3532
        %v3544 = vpack.c.bf16 %v3535, %v3534
        %v3545 = vpack.c.bf16 %v3537, %v3536
        %v3546 = vld [vmem:[%s660] sm:$0xf]
        %v3547 = vld [vmem:[%s660 + $0x4] sm:$0xf]
        %v3548 = vld [vmem:[%s660 + $0x8] sm:$0xf]
        %v3549 = vld [vmem:[%s660 + $0xc] sm:$0xf]
        %v3550 = vld [vmem:[%s660 + $0x10] sm:$0xf]
        %v3551 = vld [vmem:[%s660 + $0x14] sm:$0xf]
        %v3552 = vld [vmem:[%s660 + $0x18] sm:$0xf]
        %v3553 = vld [vmem:[%s660 + $0x1c] sm:$0xf]
        %v3554 = vld [vmem:[%s660 + $0x20] sm:$0xf]
        %v3555 = vld [vmem:[%s660 + $0x24] sm:$0xf]
        %v3556 = vld [vmem:[%s660 + $0x28] sm:$0xf]
        %v3557 = vld [vmem:[%s660 + $0x2c] sm:$0xf]
        %v3558 = vld [vmem:[%s660 + $0x30] sm:$0xf]
        %v3559 = vld [vmem:[%s660 + $0x34] sm:$0xf]
        %v3560 = vld [vmem:[%s660 + $0x38] sm:$0xf]
        %v3561 = vld [vmem:[%s660 + $0x3c] sm:$0xf]
        %v3562 = vld [vmem:[%s775] sm:$0x1]
        %v3564 = vlaneseq
        %v3565 = vshrl.u32 %v3564, 7
        %v3566 = vsub.s32 0, %v3565
        %v3567 = vrot.slane %v3562, %v3566
        %v3585 = vunpack.c.l.b16 %v3546
        %v3586 = vunpack.c.l.b16 %v3547
        %v3587 = vunpack.c.l.b16 %v3548
        %v3588 = vunpack.c.l.b16 %v3549
        %v3589 = vunpack.c.l.b16 %v3550
        %v3590 = vunpack.c.l.b16 %v3551
        %v3591 = vunpack.c.l.b16 %v3552
        %v3592 = vunpack.c.l.b16 %v3553
        %v3593 = vunpack.c.l.b16 %v3554
        %v3594 = vunpack.c.l.b16 %v3555
        %v3595 = vunpack.c.l.b16 %v3556
        %v3596 = vunpack.c.l.b16 %v3557
        %v3597 = vunpack.c.l.b16 %v3558
        %v3598 = vunpack.c.l.b16 %v3559
        %v3599 = vunpack.c.l.b16 %v3560
        %v3600 = vunpack.c.l.b16 %v3561
        %v3601 = vpack.c.b16 %v3586, %v3585
        %v3602 = vpack.c.b16 %v3588, %v3587
        %v3603 = vpack.c.b16 %v3590, %v3589
        %v3604 = vpack.c.b16 %v3592, %v3591
        %v3605 = vpack.c.b16 %v3594, %v3593
        %v3606 = vpack.c.b16 %v3596, %v3595
        %v3607 = vpack.c.b16 %v3598, %v3597
        %v3608 = vpack.c.b16 %v3600, %v3599
        %3617 = vmatprep.subr.bf16.mxu0 0
        %3618 = vmatpush1.bf16.msra.mxu0 %v3601
        %3619 = vmatprep.subr.bf16.mxu0 0
        %3620 = vmatpush1.bf16.msra.mxu0 %v3602
        %3621 = vmatprep.subr.bf16.mxu0 0
        %3622 = vmatpush1.bf16.msra.mxu0 %v3603
        %3623 = vmatprep.subr.bf16.mxu0 0
        %3624 = vmatpush1.bf16.msra.mxu0 %v3604
        %3625 = vmatprep.subr.bf16.mxu0 0
        %3626 = vmatpush1.bf16.msra.mxu0 %v3605
        %3627 = vmatprep.subr.bf16.mxu0 0
        %3628 = vmatpush1.bf16.msra.mxu0 %v3606
        %3629 = vmatprep.subr.bf16.mxu0 0
        %3630 = vmatpush1.bf16.msra.mxu0 %v3607
        %3631 = vmatprep.subr.bf16.mxu0 0
        %3632 = vmatpush1.bf16.msra.mxu0 %v3608
        %3633 = vmatprep.subr.bf16.mxu0 0
        %3634 = vmatpush1.bf16.msra.mxu0 0
        %3635 = vmatprep.subr.bf16.mxu0 0
        %3636 = vmatpush1.bf16.msra.mxu0 0
        %3637 = vmatprep.subr.bf16.mxu0 0
        %3638 = vmatpush1.bf16.msra.mxu0 0
        %3639 = vmatprep.subr.bf16.mxu0 0
        %3640 = vmatpush1.bf16.msra.mxu0 0
        %3641 = vmatprep.subr.bf16.mxu0 0
        %3642 = vmatpush1.bf16.msra.mxu0 0
        %3643 = vmatprep.subr.bf16.mxu0 0
        %3644 = vmatpush1.bf16.msra.mxu0 0
        %3645 = vmatprep.subr.bf16.mxu0 0
        %3646 = vmatpush1.bf16.msra.mxu0 0
        %3647 = vmatprep.subr.bf16.mxu0 0
        %3648 = vmatpush1.bf16.msra.mxu0 0
        %3649 = vmatprep.mubr.bf16.mxu0 0
        %3650 = vmatmul.mubr.bf16.gmra.mrb[0].mxu0 %v3538
        %v3651 = vpop.f32.mrb[0].mxu0
        %v3652 = vadd.f32 %v3567, %v3651
        %v3653 = vpop.f32.mrb[0].mxu0
        %v3654 = vpop.f32.mrb[0].mxu0
        %v3655 = vadd.f32 %v3567, %v3654
        %v3656 = vpop.f32.mrb[0].mxu0
        %3657 = vmatprep.mubr.bf16.mxu0 0
        %3658 = vmatmul.mubr.bf16.gmra.mrb[0].mxu0 %v3539
        %v3659 = vpop.f32.mrb[0].mxu0
        %v3660 = vadd.f32 %v3567, %v3659
        %v3661 = vpop.f32.mrb[0].mxu0
        %v3662 = vpop.f32.mrb[0].mxu0
        %v3663 = vadd.f32 %v3567, %v3662
        %v3664 = vpop.f32.mrb[0].mxu0
        %3665 = vmatprep.mubr.bf16.mxu0 0
        %3666 = vmatmul.mubr.bf16.gmra.mrb[0].mxu0 %v3540
        %v3667 = vpop.f32.mrb[0].mxu0
        %v3668 = vadd.f32 %v3567, %v3667
        %v3669 = vpop.f32.mrb[0].mxu0
        %v3670 = vpop.f32.mrb[0].mxu0
        %v3671 = vadd.f32 %v3567, %v3670
        %v3672 = vpop.f32.mrb[0].mxu0
        %3673 = vmatprep.mubr.bf16.mxu0 0
        %3674 = vmatmul.mubr.bf16.gmra.mrb[0].mxu0 %v3541
        %v3675 = vpop.f32.mrb[0].mxu0
        %v3676 = vadd.f32 %v3567, %v3675
        %v3677 = vpop.f32.mrb[0].mxu0
        %v3678 = vpop.f32.mrb[0].mxu0
        %v3679 = vadd.f32 %v3567, %v3678
        %v3680 = vpop.f32.mrb[0].mxu0
        %3681 = vmatprep.mubr.bf16.mxu0 0
        %3682 = vmatmul.mubr.bf16.gmra.mrb[0].mxu0 %v3542
        %v3683 = vpop.f32.mrb[0].mxu0
        %v3684 = vadd.f32 %v3567, %v3683
        %v3685 = vpop.f32.mrb[0].mxu0
        %v3686 = vpop.f32.mrb[0].mxu0
        %v3687 = vadd.f32 %v3567, %v3686
        %v3688 = vpop.f32.mrb[0].mxu0
        %3689 = vmatprep.mubr.bf16.mxu0 0
        %3690 = vmatmul.mubr.bf16.gmra.mrb[0].mxu0 %v3543
        %v3691 = vpop.f32.mrb[0].mxu0
        %v3692 = vadd.f32 %v3567, %v3691
        %v3693 = vpop.f32.mrb[0].mxu0
        %v3694 = vpop.f32.mrb[0].mxu0
        %v3695 = vadd.f32 %v3567, %v3694
        %v3696 = vpop.f32.mrb[0].mxu0
        %3697 = vmatprep.mubr.bf16.mxu0 0
        %3698 = vmatmul.mubr.bf16.gmra.mrb[0].mxu0 %v3544
        %v3699 = vpop.f32.mrb[0].mxu0
        %v3700 = vadd.f32 %v3567, %v3699
        %v3701 = vpop.f32.mrb[0].mxu0
        %v3702 = vpop.f32.mrb[0].mxu0
        %v3703 = vadd.f32 %v3567, %v3702
        %v3704 = vpop.f32.mrb[0].mxu0
        %3705 = vmatprep.mubr.bf16.mxu0 0
        %3706 = vmatmul.mubr.bf16.gmra.mrb[0].mxu0 %v3545
        %v3707 = vpop.f32.mrb[0].mxu0
        %v3708 = vadd.f32 %v3567, %v3707
        %v3709 = vpop.f32.mrb[0].mxu0
        %v3710 = vpop.f32.mrb[0].mxu0
        %v3711 = vadd.f32 %v3567, %v3710
        %v3712 = vpop.f32.mrb[0].mxu0
        %3713 = vdwg.mxu0
        %3715 = vset.pattern.permute.xlu0 0
        %3716 = vperm.xlu0 %3715, %v821
        %v3717 = vpop.permute.xlu0 %3716
        %3720 = vset.pattern.permute.xlu0 0
        %3721 = vperm.xlu0 %3720, %v822
        %v3722 = vpop.permute.xlu0 %3721
        %3725 = vset.pattern.permute.xlu0 0
        %3726 = vperm.xlu0 %3725, %v823
        %v3727 = vpop.permute.xlu0 %3726
        %3730 = vset.pattern.permute.xlu0 0
        %3731 = vperm.xlu0 %3730, %v824
        %v3732 = vpop.permute.xlu0 %3731
        %3735 = vset.pattern.permute.xlu0 0
        %3736 = vperm.xlu0 %3735, %v825
        %v3737 = vpop.permute.xlu0 %3736
        %3740 = vset.pattern.permute.xlu0 0
        %3741 = vperm.xlu0 %3740, %v826
        %v3742 = vpop.permute.xlu0 %3741
        %3745 = vset.pattern.permute.xlu0 0
        %3746 = vperm.xlu0 %3745, %v827
        %v3747 = vpop.permute.xlu0 %3746
        %3750 = vset.pattern.permute.xlu0 0
        %3751 = vperm.xlu0 %3750, %v828
        %v3752 = vpop.permute.xlu0 %3751
        %3755 = vset.pattern.permute.xlu0 0
        %3756 = vperm.xlu0 %3755, %v829
        %v3757 = vpop.permute.xlu0 %3756
        %3760 = vset.pattern.permute.xlu0 0
        %3761 = vperm.xlu0 %3760, %v830
        %v3762 = vpop.permute.xlu0 %3761
        %3765 = vset.pattern.permute.xlu0 0
        %3766 = vperm.xlu0 %3765, %v831
        %v3767 = vpop.permute.xlu0 %3766
        %3770 = vset.pattern.permute.xlu0 0
        %3771 = vperm.xlu0 %3770, %v832
        %v3772 = vpop.permute.xlu0 %3771
        %3775 = vset.pattern.permute.xlu0 0
        %3776 = vperm.xlu0 %3775, %v833
        %v3777 = vpop.permute.xlu0 %3776
        %3780 = vset.pattern.permute.xlu0 0
        %3781 = vperm.xlu0 %3780, %v834
        %v3782 = vpop.permute.xlu0 %3781
        %3785 = vset.pattern.permute.xlu0 0
        %3786 = vperm.xlu0 %3785, %v835
        %v3787 = vpop.permute.xlu0 %3786
        %3790 = vset.pattern.permute.xlu0 0
        %3791 = vperm.xlu0 %3790, %v836
        %v3792 = vpop.permute.xlu0 %3791
        %v3794 = vmul.f32 %v3717, %v3652
        %v3795 = vmul.f32 %v3722, %v3655
        %v3796 = vmul.f32 %v3727, %v3660
        %v3797 = vmul.f32 %v3732, %v3663
        %v3798 = vmul.f32 %v3737, %v3668
        %v3799 = vmul.f32 %v3742, %v3671
        %v3800 = vmul.f32 %v3747, %v3676
        %v3801 = vmul.f32 %v3752, %v3679
        %v3802 = vmul.f32 %v3757, %v3684
        %v3803 = vmul.f32 %v3762, %v3687
        %v3804 = vmul.f32 %v3767, %v3692
        %v3805 = vmul.f32 %v3772, %v3695
        %v3806 = vmul.f32 %v3777, %v3700
        %v3807 = vmul.f32 %v3782, %v3703
        %v3808 = vmul.f32 %v3787, %v3708
        %v3809 = vmul.f32 %v3792, %v3711
        %v3810 = vadd.f32 %v805, %v3794
        %v3811 = vadd.f32 %v806, %v3795
        %v3812 = vadd.f32 %v807, %v3796
        %v3813 = vadd.f32 %v808, %v3797
        %v3814 = vadd.f32 %v809, %v3798
        %v3815 = vadd.f32 %v810, %v3799
        %v3816 = vadd.f32 %v811, %v3800
        %v3817 = vadd.f32 %v812, %v3801
        %v3818 = vadd.f32 %v813, %v3802
        %v3819 = vadd.f32 %v814, %v3803
        %v3820 = vadd.f32 %v815, %v3804
        %v3821 = vadd.f32 %v816, %v3805
        %v3822 = vadd.f32 %v817, %v3806
        %v3823 = vadd.f32 %v818, %v3807
        %v3824 = vadd.f32 %v819, %v3808
        %v3825 = vadd.f32 %v820, %v3809
        %v3826 = vld [vmem:[%s778] sm:$0x1]
        %v3827 = vld [vmem:[%s781] sm:$0x1]
        %3828 = vadd.xlane.f32.xlu0 %v3810
        %v3829 = vpop.xlane.xlu0 %3828
        %3830 = vadd.xlane.f32.xlu0 %v3811
        %v3831 = vpop.xlane.xlu0 %3830
        %3832 = vadd.xlane.f32.xlu0 %v3812
        %v3833 = vpop.xlane.xlu0 %3832
        %3834 = vadd.xlane.f32.xlu0 %v3813
        %v3835 = vpop.xlane.xlu0 %3834
        %3836 = vadd.xlane.f32.xlu0 %v3814
        %v3837 = vpop.xlane.xlu0 %3836
        %3838 = vadd.xlane.f32.xlu0 %v3815
        %v3839 = vpop.xlane.xlu0 %3838
        %3840 = vadd.xlane.f32.xlu0 %v3816
        %v3841 = vpop.xlane.xlu0 %3840
        %3842 = vadd.xlane.f32.xlu0 %v3817
        %v3843 = vpop.xlane.xlu0 %3842
        %3844 = vadd.xlane.f32.xlu0 %v3818
        %v3845 = vpop.xlane.xlu0 %3844
        %3846 = vadd.xlane.f32.xlu0 %v3819
        %v3847 = vpop.xlane.xlu0 %3846
        %3848 = vadd.xlane.f32.xlu0 %v3820
        %v3849 = vpop.xlane.xlu0 %3848
        %3850 = vadd.xlane.f32.xlu0 %v3821
        %v3851 = vpop.xlane.xlu0 %3850
        %3852 = vadd.xlane.f32.xlu0 %v3822
        %v3853 = vpop.xlane.xlu0 %3852
        %3854 = vadd.xlane.f32.xlu0 %v3823
        %v3855 = vpop.xlane.xlu0 %3854
        %3856 = vadd.xlane.f32.xlu0 %v3824
        %v3857 = vpop.xlane.xlu0 %3856
        %3858 = vadd.xlane.f32.xlu0 %v3825
        %v3859 = vpop.xlane.xlu0 %3858
        %v3860 = vmul.f32 %v3829, %v903
        %v3861 = vmul.f32 %v3831, %v903
        %v3862 = vmul.f32 %v3833, %v903
        %v3863 = vmul.f32 %v3835, %v903
        %v3864 = vmul.f32 %v3837, %v903
        %v3865 = vmul.f32 %v3839, %v903
        %v3866 = vmul.f32 %v3841, %v903
        %v3867 = vmul.f32 %v3843, %v903
        %v3868 = vmul.f32 %v3845, %v903
        %v3869 = vmul.f32 %v3847, %v903
        %v3870 = vmul.f32 %v3849, %v903
        %v3871 = vmul.f32 %v3851, %v903
        %v3872 = vmul.f32 %v3853, %v903
        %v3873 = vmul.f32 %v3855, %v903
        %v3874 = vmul.f32 %v3857, %v903
        %v3875 = vmul.f32 %v3859, %v903
        %v3876 = vsub.f32 %v3810, %v3860
        %v3877 = vsub.f32 %v3811, %v3861
        %v3878 = vsub.f32 %v3812, %v3862
        %v3879 = vsub.f32 %v3813, %v3863
        %v3880 = vsub.f32 %v3814, %v3864
        %v3881 = vsub.f32 %v3815, %v3865
        %v3882 = vsub.f32 %v3816, %v3866
        %v3883 = vsub.f32 %v3817, %v3867
        %v3884 = vsub.f32 %v3818, %v3868
        %v3885 = vsub.f32 %v3819, %v3869
        %v3886 = vsub.f32 %v3820, %v3870
        %v3887 = vsub.f32 %v3821, %v3871
        %v3888 = vsub.f32 %v3822, %v3872
        %v3889 = vsub.f32 %v3823, %v3873
        %v3890 = vsub.f32 %v3824, %v3874
        %v3891 = vsub.f32 %v3825, %v3875
        %v3892 = vmul.f32 %v3876, %v3876
        %v3893 = vmul.f32 %v3877, %v3877
        %v3894 = vmul.f32 %v3878, %v3878
        %v3895 = vmul.f32 %v3879, %v3879
        %v3896 = vmul.f32 %v3880, %v3880
        %v3897 = vmul.f32 %v3881, %v3881
        %v3898 = vmul.f32 %v3882, %v3882
        %v3899 = vmul.f32 %v3883, %v3883
        %v3900 = vmul.f32 %v3884, %v3884
        %v3901 = vmul.f32 %v3885, %v3885
        %v3902 = vmul.f32 %v3886, %v3886
        %v3903 = vmul.f32 %v3887, %v3887
        %v3904 = vmul.f32 %v3888, %v3888
        %v3905 = vmul.f32 %v3889, %v3889
        %v3906 = vmul.f32 %v3890, %v3890
        %v3907 = vmul.f32 %v3891, %v3891
        %3908 = vadd.xlane.f32.xlu0 %v3892
        %v3909 = vpop.xlane.xlu0 %3908
        %3910 = vadd.xlane.f32.xlu0 %v3893
        %v3911 = vpop.xlane.xlu0 %3910
        %3912 = vadd.xlane.f32.xlu0 %v3894
        %v3913 = vpop.xlane.xlu0 %3912
        %3914 = vadd.xlane.f32.xlu0 %v3895
        %v3915 = vpop.xlane.xlu0 %3914
        %3916 = vadd.xlane.f32.xlu0 %v3896
        %v3917 = vpop.xlane.xlu0 %3916
        %3918 = vadd.xlane.f32.xlu0 %v3897
        %v3919 = vpop.xlane.xlu0 %3918
        %3920 = vadd.xlane.f32.xlu0 %v3898
        %v3921 = vpop.xlane.xlu0 %3920
        %3922 = vadd.xlane.f32.xlu0 %v3899
        %v3923 = vpop.xlane.xlu0 %3922
        %3924 = vadd.xlane.f32.xlu0 %v3900
        %v3925 = vpop.xlane.xlu0 %3924
        %3926 = vadd.xlane.f32.xlu0 %v3901
        %v3927 = vpop.xlane.xlu0 %3926
        %3928 = vadd.xlane.f32.xlu0 %v3902
        %v3929 = vpop.xlane.xlu0 %3928
        %3930 = vadd.xlane.f32.xlu0 %v3903
        %v3931 = vpop.xlane.xlu0 %3930
        %3932 = vadd.xlane.f32.xlu0 %v3904
        %v3933 = vpop.xlane.xlu0 %3932
        %3934 = vadd.xlane.f32.xlu0 %v3905
        %v3935 = vpop.xlane.xlu0 %3934
        %3936 = vadd.xlane.f32.xlu0 %v3906
        %v3937 = vpop.xlane.xlu0 %3936
        %3938 = vadd.xlane.f32.xlu0 %v3907
        %v3939 = vpop.xlane.xlu0 %3938
        %v3940 = vmul.f32 %v3909, %v903
        %v3941 = vmul.f32 %v3911, %v903
        %v3942 = vmul.f32 %v3913, %v903
        %v3943 = vmul.f32 %v3915, %v903
        %v3944 = vmul.f32 %v3917, %v903
        %v3945 = vmul.f32 %v3919, %v903
        %v3946 = vmul.f32 %v3921, %v903
        %v3947 = vmul.f32 %v3923, %v903
        %v3948 = vmul.f32 %v3925, %v903
        %v3949 = vmul.f32 %v3927, %v903
        %v3950 = vmul.f32 %v3929, %v903
        %v3951 = vmul.f32 %v3931, %v903
        %v3952 = vmul.f32 %v3933, %v903
        %v3953 = vmul.f32 %v3935, %v903
        %v3954 = vmul.f32 %v3937, %v903
        %v3955 = vmul.f32 %v3939, %v903
        %v3956 = vadd.f32 %v3940, 1e-05
        %v3957 = vadd.f32 %v3941, 1e-05
        %v3958 = vadd.f32 %v3942, 1e-05
        %v3959 = vadd.f32 %v3943, 1e-05
        %v3960 = vadd.f32 %v3944, 1e-05
        %v3961 = vadd.f32 %v3945, 1e-05
        %v3962 = vadd.f32 %v3946, 1e-05
        %v3963 = vadd.f32 %v3947, 1e-05
        %v3964 = vadd.f32 %v3948, 1e-05
        %v3965 = vadd.f32 %v3949, 1e-05
        %v3966 = vadd.f32 %v3950, 1e-05
        %v3967 = vadd.f32 %v3951, 1e-05
        %v3968 = vadd.f32 %v3952, 1e-05
        %v3969 = vadd.f32 %v3953, 1e-05
        %v3970 = vadd.f32 %v3954, 1e-05
        %v3971 = vadd.f32 %v3955, 1e-05
        %v3972 = vrsqrt.pop %v3956
        %v3973 = vrsqrt.pop %v3957
        %v3974 = vrsqrt.pop %v3958
        %v3975 = vrsqrt.pop %v3959
        %v3976 = vrsqrt.pop %v3960
        %v3977 = vrsqrt.pop %v3961
        %v3978 = vrsqrt.pop %v3962
        %v3979 = vrsqrt.pop %v3963
        %v3980 = vrsqrt.pop %v3964
        %v3981 = vrsqrt.pop %v3965
        %v3982 = vrsqrt.pop %v3966
        %v3983 = vrsqrt.pop %v3967
        %v3984 = vrsqrt.pop %v3968
        %v3985 = vrsqrt.pop %v3969
        %v3986 = vrsqrt.pop %v3970
        %v3987 = vrsqrt.pop %v3971
        %v3988 = vmul.f32 %v3876, %v3972
        %v3989 = vmul.f32 %v3877, %v3973
        %v3990 = vmul.f32 %v3878, %v3974
        %v3991 = vmul.f32 %v3879, %v3975
        %v3992 = vmul.f32 %v3880, %v3976
        %v3993 = vmul.f32 %v3881, %v3977
        %v3994 = vmul.f32 %v3882, %v3978
        %v3995 = vmul.f32 %v3883, %v3979
        %v3996 = vmul.f32 %v3884, %v3980
        %v3997 = vmul.f32 %v3885, %v3981
        %v3998 = vmul.f32 %v3886, %v3982
        %v3999 = vmul.f32 %v3887, %v3983
        %v4000 = vmul.f32 %v3888, %v3984
        %v4001 = vmul.f32 %v3889, %v3985
        %v4002 = vmul.f32 %v3890, %v3986
        %v4003 = vmul.f32 %v3891, %v3987
        %v4005 = vlaneseq
        %v4006 = vshrl.u32 %v4005, 7
        %v4007 = vsub.s32 0, %v4006
        %v4008 = vrot.slane %v3826, %v4007
        %v4010 = vmul.f32 %v3988, %v4008
        %v4011 = vmul.f32 %v3989, %v4008
        %v4012 = vmul.f32 %v3990, %v4008
        %v4013 = vmul.f32 %v3991, %v4008
        %v4014 = vmul.f32 %v3992, %v4008
        %v4015 = vmul.f32 %v3993, %v4008
        %v4016 = vmul.f32 %v3994, %v4008
        %v4017 = vmul.f32 %v3995, %v4008
        %v4018 = vmul.f32 %v3996, %v4008
        %v4019 = vmul.f32 %v3997, %v4008
        %v4020 = vmul.f32 %v3998, %v4008
        %v4021 = vmul.f32 %v3999, %v4008
        %v4022 = vmul.f32 %v4000, %v4008
        %v4023 = vmul.f32 %v4001, %v4008
        %v4024 = vmul.f32 %v4002, %v4008
        %v4025 = vmul.f32 %v4003, %v4008
        %v4027 = vlaneseq
        %v4028 = vshrl.u32 %v4027, 7
        %v4029 = vsub.s32 0, %v4028
        %v4030 = vrot.slane %v3827, %v4029
        %v4032 = vadd.f32 %v4010, %v4030
        %v4033 = vadd.f32 %v4011, %v4030
        %v4034 = vadd.f32 %v4012, %v4030
        %v4035 = vadd.f32 %v4013, %v4030
        %v4036 = vadd.f32 %v4014, %v4030
        %v4037 = vadd.f32 %v4015, %v4030
        %v4038 = vadd.f32 %v4016, %v4030
        %v4039 = vadd.f32 %v4017, %v4030
        %v4040 = vadd.f32 %v4018, %v4030
        %v4041 = vadd.f32 %v4019, %v4030
        %v4042 = vadd.f32 %v4020, %v4030
        %v4043 = vadd.f32 %v4021, %v4030
        %v4044 = vadd.f32 %v4022, %v4030
        %v4045 = vadd.f32 %v4023, %v4030
        %v4046 = vadd.f32 %v4024, %v4030
        %v4047 = vadd.f32 %v4025, %v4030
        %v4048 = vpack.c.bf16 %v4033, %v4032
        %v4049 = vpack.c.bf16 %v4035, %v4034
        %v4050 = vpack.c.bf16 %v4037, %v4036
        %v4051 = vpack.c.bf16 %v4039, %v4038
        %v4052 = vpack.c.bf16 %v4041, %v4040
        %v4053 = vpack.c.bf16 %v4043, %v4042
        %v4054 = vpack.c.bf16 %v4045, %v4044
        %v4055 = vpack.c.bf16 %v4047, %v4046
        %v4056 = vld [vmem:[%s669] sm:$0xff]
        %v4057 = vld [vmem:[%s669 + $0x8] sm:$0xff]
        %v4058 = vld [vmem:[%s669 + $0x10] sm:$0xff]
        %v4059 = vld [vmem:[%s669 + $0x18] sm:$0xff]
        %v4060 = vld [vmem:[%s669 + $0x20] sm:$0xff]
        %v4061 = vld [vmem:[%s669 + $0x28] sm:$0xff]
        %v4062 = vld [vmem:[%s669 + $0x30] sm:$0xff]
        %v4063 = vld [vmem:[%s669 + $0x38] sm:$0xff]
        %v4064 = vld [vmem:[%s669 + $0x40] sm:$0xff]
        %v4065 = vld [vmem:[%s669 + $0x48] sm:$0xff]
        %v4066 = vld [vmem:[%s669 + $0x50] sm:$0xff]
        %v4067 = vld [vmem:[%s669 + $0x58] sm:$0xff]
        %v4068 = vld [vmem:[%s669 + $0x60] sm:$0xff]
        %v4069 = vld [vmem:[%s669 + $0x68] sm:$0xff]
        %v4070 = vld [vmem:[%s669 + $0x70] sm:$0xff]
        %v4071 = vld [vmem:[%s669 + $0x78] sm:$0xff]
        %v4072 = vld [vmem:[%s785] sm:$0x3]
        %v4074 = vlaneseq
        %v4075 = vshrl.u32 %v4074, 7
        %v4076 = vsub.s32 0, %v4075
        %v4077 = vrot.slane %v4072, %v4076
        %v4078 = vlaneseq
        %v4079 = vshrl.u32 %v4078, 7
        %v4080 = vsub.s32 1, %v4079
        %v4081 = vrot.slane %v4072, %v4080
        %v4100 = vunpack.c.l.b16 %v4056
        %v4101 = vunpack.c.h.b16 %v4056
        %v4102 = vunpack.c.l.b16 %v4057
        %v4103 = vunpack.c.h.b16 %v4057
        %v4104 = vunpack.c.l.b16 %v4058
        %v4105 = vunpack.c.h.b16 %v4058
        %v4106 = vunpack.c.l.b16 %v4059
        %v4107 = vunpack.c.h.b16 %v4059
        %v4108 = vunpack.c.l.b16 %v4060
        %v4109 = vunpack.c.h.b16 %v4060
        %v4110 = vunpack.c.l.b16 %v4061
        %v4111 = vunpack.c.h.b16 %v4061
        %v4112 = vunpack.c.l.b16 %v4062
        %v4113 = vunpack.c.h.b16 %v4062
        %v4114 = vunpack.c.l.b16 %v4063
        %v4115 = vunpack.c.h.b16 %v4063
        %v4116 = vunpack.c.l.b16 %v4064
        %v4117 = vunpack.c.h.b16 %v4064
        %v4118 = vunpack.c.l.b16 %v4065
        %v4119 = vunpack.c.h.b16 %v4065
        %v4120 = vunpack.c.l.b16 %v4066
        %v4121 = vunpack.c.h.b16 %v4066
        %v4122 = vunpack.c.l.b16 %v4067
        %v4123 = vunpack.c.h.b16 %v4067
        %v4124 = vunpack.c.l.b16 %v4068
        %v4125 = vunpack.c.h.b16 %v4068
        %v4126 = vunpack.c.l.b16 %v4069
        %v4127 = vunpack.c.h.b16 %v4069
        %v4128 = vunpack.c.l.b16 %v4070
        %v4129 = vunpack.c.h.b16 %v4070
        %v4130 = vunpack.c.l.b16 %v4071
        %v4131 = vunpack.c.h.b16 %v4071
        %v4132 = vpack.c.b16 %v4102, %v4100
        %v4133 = vpack.c.b16 %v4103, %v4101
        %v4134 = vpack.c.b16 %v4106, %v4104
        %v4135 = vpack.c.b16 %v4107, %v4105
        %v4136 = vpack.c.b16 %v4110, %v4108
        %v4137 = vpack.c.b16 %v4111, %v4109
        %v4138 = vpack.c.b16 %v4114, %v4112
        %v4139 = vpack.c.b16 %v4115, %v4113
        %v4140 = vpack.c.b16 %v4118, %v4116
        %v4141 = vpack.c.b16 %v4119, %v4117
        %v4142 = vpack.c.b16 %v4122, %v4120
        %v4143 = vpack.c.b16 %v4123, %v4121
        %v4144 = vpack.c.b16 %v4126, %v4124
        %v4145 = vpack.c.b16 %v4127, %v4125
        %v4146 = vpack.c.b16 %v4130, %v4128
        %v4147 = vpack.c.b16 %v4131, %v4129
        %4164 = vmatprep.subr.bf16.mxu0 %v4133
        %4165 = vmatpush1.bf16.msra.mxu0 %v4132
        %4166 = vmatprep.subr.bf16.mxu0 %v4135
        %4167 = vmatpush1.bf16.msra.mxu0 %v4134
        %4168 = vmatprep.subr.bf16.mxu0 %v4137
        %4169 = vmatpush1.bf16.msra.mxu0 %v4136
        %4170 = vmatprep.subr.bf16.mxu0 %v4139
        %4171 = vmatpush1.bf16.msra.mxu0 %v4138
        %4172 = vmatprep.subr.bf16.mxu0 %v4141
        %4173 = vmatpush1.bf16.msra.mxu0 %v4140
        %4174 = vmatprep.subr.bf16.mxu0 %v4143
        %4175 = vmatpush1.bf16.msra.mxu0 %v4142
        %4176 = vmatprep.subr.bf16.mxu0 %v4145
        %4177 = vmatpush1.bf16.msra.mxu0 %v4144
        %4178 = vmatprep.subr.bf16.mxu0 %v4147
        %4179 = vmatpush1.bf16.msra.mxu0 %v4146
        %4180 = vmatprep.subr.bf16.mxu0 0
        %4181 = vmatpush1.bf16.msra.mxu0 0
        %4182 = vmatprep.subr.bf16.mxu0 0
        %4183 = vmatpush1.bf16.msra.mxu0 0
        %4184 = vmatprep.subr.bf16.mxu0 0
        %4185 = vmatpush1.bf16.msra.mxu0 0
        %4186 = vmatprep.subr.bf16.mxu0 0
        %4187 = vmatpush1.bf16.msra.mxu0 0
        %4188 = vmatprep.subr.bf16.mxu0 0
        %4189 = vmatpush1.bf16.msra.mxu0 0
        %4190 = vmatprep.subr.bf16.mxu0 0
        %4191 = vmatpush1.bf16.msra.mxu0 0
        %4192 = vmatprep.subr.bf16.mxu0 0
        %4193 = vmatpush1.bf16.msra.mxu0 0
        %4194 = vmatprep.subr.bf16.mxu0 0
        %4195 = vmatpush1.bf16.msra.mxu0 0
        %4196 = vmatprep.mubr.bf16.mxu0 0
        %4197 = vmatmul.mubr.bf16.gmra.mrb[0].mxu0 %v4048
        %v4198 = vpop.f32.mrb[0].mxu0
        %v4199 = vadd.f32 %v4077, %v4198
        %v4200 = vpop.f32.mrb[0].mxu0
        %v4201 = vadd.f32 %v4081, %v4200
        %v4202 = vpop.f32.mrb[0].mxu0
        %v4203 = vadd.f32 %v4077, %v4202
        %v4204 = vpop.f32.mrb[0].mxu0
        %v4205 = vadd.f32 %v4081, %v4204
        %4206 = vmatprep.mubr.bf16.mxu0 0
        %4207 = vmatmul.mubr.bf16.gmra.mrb[0].mxu0 %v4049
        %v4208 = vpop.f32.mrb[0].mxu0
        %v4209 = vadd.f32 %v4077, %v4208
        %v4210 = vpop.f32.mrb[0].mxu0
        %v4211 = vadd.f32 %v4081, %v4210
        %v4212 = vpop.f32.mrb[0].mxu0
        %v4213 = vadd.f32 %v4077, %v4212
        %v4214 = vpop.f32.mrb[0].mxu0
        %v4215 = vadd.f32 %v4081, %v4214
        %4216 = vmatprep.mubr.bf16.mxu0 0
        %4217 = vmatmul.mubr.bf16.gmra.mrb[0].mxu0 %v4050
        %v4218 = vpop.f32.mrb[0].mxu0
        %v4219 = vadd.f32 %v4077, %v4218
        %v4220 = vpop.f32.mrb[0].mxu0
        %v4221 = vadd.f32 %v4081, %v4220
        %v4222 = vpop.f32.mrb[0].mxu0
        %v4223 = vadd.f32 %v4077, %v4222
        %v4224 = vpop.f32.mrb[0].mxu0
        %v4225 = vadd.f32 %v4081, %v4224
        %4226 = vmatprep.mubr.bf16.mxu0 0
        %4227 = vmatmul.mubr.bf16.gmra.mrb[0].mxu0 %v4051
        %v4228 = vpop.f32.mrb[0].mxu0
        %v4229 = vadd.f32 %v4077, %v4228
        %v4230 = vpop.f32.mrb[0].mxu0
        %v4231 = vadd.f32 %v4081, %v4230
        %v4232 = vpop.f32.mrb[0].mxu0
        %v4233 = vadd.f32 %v4077, %v4232
        %v4234 = vpop.f32.mrb[0].mxu0
        %v4235 = vadd.f32 %v4081, %v4234
        %4236 = vmatprep.mubr.bf16.mxu0 0
        %4237 = vmatmul.mubr.bf16.gmra.mrb[0].mxu0 %v4052
        %v4238 = vpop.f32.mrb[0].mxu0
        %v4239 = vadd.f32 %v4077, %v4238
        %v4240 = vpop.f32.mrb[0].mxu0
        %v4241 = vadd.f32 %v4081, %v4240
        %v4242 = vpop.f32.mrb[0].mxu0
        %v4243 = vadd.f32 %v4077, %v4242
        %v4244 = vpop.f32.mrb[0].mxu0
        %v4245 = vadd.f32 %v4081, %v4244
        %4246 = vmatprep.mubr.bf16.mxu0 0
        %4247 = vmatmul.mubr.bf16.gmra.mrb[0].mxu0 %v4053
        %v4248 = vpop.f32.mrb[0].mxu0
        %v4249 = vadd.f32 %v4077, %v4248
        %v4250 = vpop.f32.mrb[0].mxu0
        %v4251 = vadd.f32 %v4081, %v4250
        %v4252 = vpop.f32.mrb[0].mxu0
        %v4253 = vadd.f32 %v4077, %v4252
        %v4254 = vpop.f32.mrb[0].mxu0
        %v4255 = vadd.f32 %v4081, %v4254
        %4256 = vmatprep.mubr.bf16.mxu0 0
        %4257 = vmatmul.mubr.bf16.gmra.mrb[0].mxu0 %v4054
        %v4258 = vpop.f32.mrb[0].mxu0
        %v4259 = vadd.f32 %v4077, %v4258
        %v4260 = vpop.f32.mrb[0].mxu0
        %v4261 = vadd.f32 %v4081, %v4260
        %v4262 = vpop.f32.mrb[0].mxu0
        %v4263 = vadd.f32 %v4077, %v4262
        %v4264 = vpop.f32.mrb[0].mxu0
        %v4265 = vadd.f32 %v4081, %v4264
        %4266 = vmatprep.mubr.bf16.mxu0 0
        %4267 = vmatmul.mubr.bf16.gmra.mrb[0].mxu0 %v4055
        %v4268 = vpop.f32.mrb[0].mxu0
        %v4269 = vadd.f32 %v4077, %v4268
        %v4270 = vpop.f32.mrb[0].mxu0
        %v4271 = vadd.f32 %v4081, %v4270
        %v4272 = vpop.f32.mrb[0].mxu0
        %v4273 = vadd.f32 %v4077, %v4272
        %v4274 = vpop.f32.mrb[0].mxu0
        %v4275 = vadd.f32 %v4081, %v4274
        %4276 = vdwg.mxu0
        %v4277 = vmax.f32 %v4199, 0.0
        %v4278 = vmax.f32 %v4201, 0.0
        %v4279 = vmax.f32 %v4203, 0.0
        %v4280 = vmax.f32 %v4205, 0.0
        %v4281 = vmax.f32 %v4209, 0.0
        %v4282 = vmax.f32 %v4211, 0.0
        %v4283 = vmax.f32 %v4213, 0.0
        %v4284 = vmax.f32 %v4215, 0.0
        %v4285 = vmax.f32 %v4219, 0.0
        %v4286 = vmax.f32 %v4221, 0.0
        %v4287 = vmax.f32 %v4223, 0.0
        %v4288 = vmax.f32 %v4225, 0.0
        %v4289 = vmax.f32 %v4229, 0.0
        %v4290 = vmax.f32 %v4231, 0.0
        %v4291 = vmax.f32 %v4233, 0.0
        %v4292 = vmax.f32 %v4235, 0.0
        %v4293 = vmax.f32 %v4239, 0.0
        %v4294 = vmax.f32 %v4241, 0.0
        %v4295 = vmax.f32 %v4243, 0.0
        %v4296 = vmax.f32 %v4245, 0.0
        %v4297 = vmax.f32 %v4249, 0.0
        %v4298 = vmax.f32 %v4251, 0.0
        %v4299 = vmax.f32 %v4253, 0.0
        %v4300 = vmax.f32 %v4255, 0.0
        %v4301 = vmax.f32 %v4259, 0.0
        %v4302 = vmax.f32 %v4261, 0.0
        %v4303 = vmax.f32 %v4263, 0.0
        %v4304 = vmax.f32 %v4265, 0.0
        %v4305 = vmax.f32 %v4269, 0.0
        %v4306 = vmax.f32 %v4271, 0.0
        %v4307 = vmax.f32 %v4273, 0.0
        %v4308 = vmax.f32 %v4275, 0.0
        %v4309 = vpack.c.bf16 %v4279, %v4277
        %v4310 = vpack.c.bf16 %v4280, %v4278
        %v4311 = vpack.c.bf16 %v4283, %v4281
        %v4312 = vpack.c.bf16 %v4284, %v4282
        %v4313 = vpack.c.bf16 %v4287, %v4285
        %v4314 = vpack.c.bf16 %v4288, %v4286
        %v4315 = vpack.c.bf16 %v4291, %v4289
        %v4316 = vpack.c.bf16 %v4292, %v4290
        %v4317 = vpack.c.bf16 %v4295, %v4293
        %v4318 = vpack.c.bf16 %v4296, %v4294
        %v4319 = vpack.c.bf16 %v4299, %v4297
        %v4320 = vpack.c.bf16 %v4300, %v4298
        %v4321 = vpack.c.bf16 %v4303, %v4301
        %v4322 = vpack.c.bf16 %v4304, %v4302
        %v4323 = vpack.c.bf16 %v4307, %v4305
        %v4324 = vpack.c.bf16 %v4308, %v4306
        %v4325 = vld [vmem:[%s678] sm:$0xf]
        %v4326 = vld [vmem:[%s678 + $0x4] sm:$0xf]
        %v4327 = vld [vmem:[%s678 + $0x8] sm:$0xf]
        %v4328 = vld [vmem:[%s678 + $0xc] sm:$0xf]
        %v4329 = vld [vmem:[%s678 + $0x10] sm:$0xf]
        %v4330 = vld [vmem:[%s678 + $0x14] sm:$0xf]
        %v4331 = vld [vmem:[%s678 + $0x18] sm:$0xf]
        %v4332 = vld [vmem:[%s678 + $0x1c] sm:$0xf]
        %v4333 = vld [vmem:[%s678 + $0x20] sm:$0xf]
        %v4334 = vld [vmem:[%s678 + $0x24] sm:$0xf]
        %v4335 = vld [vmem:[%s678 + $0x28] sm:$0xf]
        %v4336 = vld [vmem:[%s678 + $0x2c] sm:$0xf]
        %v4337 = vld [vmem:[%s678 + $0x30] sm:$0xf]
        %v4338 = vld [vmem:[%s678 + $0x34] sm:$0xf]
        %v4339 = vld [vmem:[%s678 + $0x38] sm:$0xf]
        %v4340 = vld [vmem:[%s678 + $0x3c] sm:$0xf]
        %v4341 = vld [vmem:[%s678 + $0x40] sm:$0xf]
        %v4342 = vld [vmem:[%s678 + $0x44] sm:$0xf]
        %v4343 = vld [vmem:[%s678 + $0x48] sm:$0xf]
        %v4344 = vld [vmem:[%s678 + $0x4c] sm:$0xf]
        %v4345 = vld [vmem:[%s678 + $0x50] sm:$0xf]
        %v4346 = vld [vmem:[%s678 + $0x54] sm:$0xf]
        %v4347 = vld [vmem:[%s678 + $0x58] sm:$0xf]
        %v4348 = vld [vmem:[%s678 + $0x5c] sm:$0xf]
        %v4349 = vld [vmem:[%s678 + $0x60] sm:$0xf]
        %v4350 = vld [vmem:[%s678 + $0x64] sm:$0xf]
        %v4351 = vld [vmem:[%s678 + $0x68] sm:$0xf]
        %v4352 = vld [vmem:[%s678 + $0x6c] sm:$0xf]
        %v4353 = vld [vmem:[%s678 + $0x70] sm:$0xf]
        %v4354 = vld [vmem:[%s678 + $0x74] sm:$0xf]
        %v4355 = vld [vmem:[%s678 + $0x78] sm:$0xf]
        %v4356 = vld [vmem:[%s678 + $0x7c] sm:$0xf]
        %v4357 = vld [vmem:[%s788] sm:$0x1]
        %v4359 = vlaneseq
        %v4360 = vshrl.u32 %v4359, 7
        %v4361 = vsub.s32 0, %v4360
        %v4362 = vrot.slane %v4357, %v4361
        %v4396 = vunpack.c.l.b16 %v4325
        %v4397 = vunpack.c.l.b16 %v4326
        %v4398 = vunpack.c.l.b16 %v4327
        %v4399 = vunpack.c.l.b16 %v4328
        %v4400 = vunpack.c.l.b16 %v4329
        %v4401 = vunpack.c.l.b16 %v4330
        %v4402 = vunpack.c.l.b16 %v4331
        %v4403 = vunpack.c.l.b16 %v4332
        %v4404 = vunpack.c.l.b16 %v4333
        %v4405 = vunpack.c.l.b16 %v4334
        %v4406 = vunpack.c.l.b16 %v4335
        %v4407 = vunpack.c.l.b16 %v4336
        %v4408 = vunpack.c.l.b16 %v4337
        %v4409 = vunpack.c.l.b16 %v4338
        %v4410 = vunpack.c.l.b16 %v4339
        %v4411 = vunpack.c.l.b16 %v4340
        %v4412 = vunpack.c.l.b16 %v4341
        %v4413 = vunpack.c.l.b16 %v4342
        %v4414 = vunpack.c.l.b16 %v4343
        %v4415 = vunpack.c.l.b16 %v4344
        %v4416 = vunpack.c.l.b16 %v4345
        %v4417 = vunpack.c.l.b16 %v4346
        %v4418 = vunpack.c.l.b16 %v4347
        %v4419 = vunpack.c.l.b16 %v4348
        %v4420 = vunpack.c.l.b16 %v4349
        %v4421 = vunpack.c.l.b16 %v4350
        %v4422 = vunpack.c.l.b16 %v4351
        %v4423 = vunpack.c.l.b16 %v4352
        %v4424 = vunpack.c.l.b16 %v4353
        %v4425 = vunpack.c.l.b16 %v4354
        %v4426 = vunpack.c.l.b16 %v4355
        %v4427 = vunpack.c.l.b16 %v4356
        %v4428 = vpack.c.b16 %v4397, %v4396
        %v4429 = vpack.c.b16 %v4399, %v4398
        %v4430 = vpack.c.b16 %v4401, %v4400
        %v4431 = vpack.c.b16 %v4403, %v4402
        %v4432 = vpack.c.b16 %v4405, %v4404
        %v4433 = vpack.c.b16 %v4407, %v4406
        %v4434 = vpack.c.b16 %v4409, %v4408
        %v4435 = vpack.c.b16 %v4411, %v4410
        %v4436 = vpack.c.b16 %v4413, %v4412
        %v4437 = vpack.c.b16 %v4415, %v4414
        %v4438 = vpack.c.b16 %v4417, %v4416
        %v4439 = vpack.c.b16 %v4419, %v4418
        %v4440 = vpack.c.b16 %v4421, %v4420
        %v4441 = vpack.c.b16 %v4423, %v4422
        %v4442 = vpack.c.b16 %v4425, %v4424
        %v4443 = vpack.c.b16 %v4427, %v4426
        %4460 = vmatprep.subr.bf16.mxu0 0
        %4461 = vmatpush1.bf16.msra.mxu0 %v4428
        %4462 = vmatprep.subr.bf16.mxu0 0
        %4463 = vmatpush1.bf16.msra.mxu0 %v4429
        %4464 = vmatprep.subr.bf16.mxu0 0
        %4465 = vmatpush1.bf16.msra.mxu0 %v4430
        %4466 = vmatprep.subr.bf16.mxu0 0
        %4467 = vmatpush1.bf16.msra.mxu0 %v4431
        %4468 = vmatprep.subr.bf16.mxu0 0
        %4469 = vmatpush1.bf16.msra.mxu0 %v4432
        %4470 = vmatprep.subr.bf16.mxu0 0
        %4471 = vmatpush1.bf16.msra.mxu0 %v4433
        %4472 = vmatprep.subr.bf16.mxu0 0
        %4473 = vmatpush1.bf16.msra.mxu0 %v4434
        %4474 = vmatprep.subr.bf16.mxu0 0
        %4475 = vmatpush1.bf16.msra.mxu0 %v4435
        %4476 = vmatprep.subr.bf16.mxu0 0
        %4477 = vmatpush1.bf16.msra.mxu0 %v4436
        %4478 = vmatprep.subr.bf16.mxu0 0
        %4479 = vmatpush1.bf16.msra.mxu0 %v4437
        %4480 = vmatprep.subr.bf16.mxu0 0
        %4481 = vmatpush1.bf16.msra.mxu0 %v4438
        %4482 = vmatprep.subr.bf16.mxu0 0
        %4483 = vmatpush1.bf16.msra.mxu0 %v4439
        %4484 = vmatprep.subr.bf16.mxu0 0
        %4485 = vmatpush1.bf16.msra.mxu0 %v4440
        %4486 = vmatprep.subr.bf16.mxu0 0
        %4487 = vmatpush1.bf16.msra.mxu0 %v4441
        %4488 = vmatprep.subr.bf16.mxu0 0
        %4489 = vmatpush1.bf16.msra.mxu0 %v4442
        %4490 = vmatprep.subr.bf16.mxu0 0
        %4491 = vmatpush1.bf16.msra.mxu0 %v4443
        %4492 = vmatprep.mubr.bf16.mxu0 %v4310
        %4493 = vmatmul.mubr.bf16.gmra.mrb[0].mxu0 %v4309
        %v4494 = vpop.f32.mrb[0].mxu0
        %v4495 = vadd.f32 %v4362, %v4494
        %v4496 = vpop.f32.mrb[0].mxu0
        %v4497 = vpop.f32.mrb[0].mxu0
        %v4498 = vadd.f32 %v4362, %v4497
        %v4499 = vpop.f32.mrb[0].mxu0
        %4500 = vmatprep.mubr.bf16.mxu0 %v4312
        %4501 = vmatmul.mubr.bf16.gmra.mrb[0].mxu0 %v4311
        %v4502 = vpop.f32.mrb[0].mxu0
        %v4503 = vadd.f32 %v4362, %v4502
        %v4504 = vpop.f32.mrb[0].mxu0
        %v4505 = vpop.f32.mrb[0].mxu0
        %v4506 = vadd.f32 %v4362, %v4505
        %v4507 = vpop.f32.mrb[0].mxu0
        %4508 = vmatprep.mubr.bf16.mxu0 %v4314
        %4509 = vmatmul.mubr.bf16.gmra.mrb[0].mxu0 %v4313
        %v4510 = vpop.f32.mrb[0].mxu0
        %v4511 = vadd.f32 %v4362, %v4510
        %v4512 = vpop.f32.mrb[0].mxu0
        %v4513 = vpop.f32.mrb[0].mxu0
        %v4514 = vadd.f32 %v4362, %v4513
        %v4515 = vpop.f32.mrb[0].mxu0
        %4516 = vmatprep.mubr.bf16.mxu0 %v4316
        %4517 = vmatmul.mubr.bf16.gmra.mrb[0].mxu0 %v4315
        %v4518 = vpop.f32.mrb[0].mxu0
        %v4519 = vadd.f32 %v4362, %v4518
        %v4520 = vpop.f32.mrb[0].mxu0
        %v4521 = vpop.f32.mrb[0].mxu0
        %v4522 = vadd.f32 %v4362, %v4521
        %v4523 = vpop.f32.mrb[0].mxu0
        %4524 = vmatprep.mubr.bf16.mxu0 %v4318
        %4525 = vmatmul.mubr.bf16.gmra.mrb[0].mxu0 %v4317
        %v4526 = vpop.f32.mrb[0].mxu0
        %v4527 = vadd.f32 %v4362, %v4526
        %v4528 = vpop.f32.mrb[0].mxu0
        %v4529 = vpop.f32.mrb[0].mxu0
        %v4530 = vadd.f32 %v4362, %v4529
        %v4531 = vpop.f32.mrb[0].mxu0
        %4532 = vmatprep.mubr.bf16.mxu0 %v4320
        %4533 = vmatmul.mubr.bf16.gmra.mrb[0].mxu0 %v4319
        %v4534 = vpop.f32.mrb[0].mxu0
        %v4535 = vadd.f32 %v4362, %v4534
        %v4536 = vpop.f32.mrb[0].mxu0
        %v4537 = vpop.f32.mrb[0].mxu0
        %v4538 = vadd.f32 %v4362, %v4537
        %v4539 = vpop.f32.mrb[0].mxu0
        %4540 = vmatprep.mubr.bf16.mxu0 %v4322
        %4541 = vmatmul.mubr.bf16.gmra.mrb[0].mxu0 %v4321
        %v4542 = vpop.f32.mrb[0].mxu0
        %v4543 = vadd.f32 %v4362, %v4542
        %v4544 = vpop.f32.mrb[0].mxu0
        %v4545 = vpop.f32.mrb[0].mxu0
        %v4546 = vadd.f32 %v4362, %v4545
        %v4547 = vpop.f32.mrb[0].mxu0
        %4548 = vmatprep.mubr.bf16.mxu0 %v4324
        %4549 = vmatmul.mubr.bf16.gmra.mrb[0].mxu0 %v4323
        %v4550 = vpop.f32.mrb[0].mxu0
        %v4551 = vadd.f32 %v4362, %v4550
        %v4552 = vpop.f32.mrb[0].mxu0
        %v4553 = vpop.f32.mrb[0].mxu0
        %v4554 = vadd.f32 %v4362, %v4553
        %v4555 = vpop.f32.mrb[0].mxu0
        %4556 = vdwg.mxu0
        %v4557 = vadd.f32 %v3810, %v4495
        %v4558 = vadd.f32 %v3811, %v4498
        %v4559 = vadd.f32 %v3812, %v4503
        %v4560 = vadd.f32 %v3813, %v4506
        %v4561 = vadd.f32 %v3814, %v4511
        %v4562 = vadd.f32 %v3815, %v4514
        %v4563 = vadd.f32 %v3816, %v4519
        %v4564 = vadd.f32 %v3817, %v4522
        %v4565 = vadd.f32 %v3818, %v4527
        %v4566 = vadd.f32 %v3819, %v4530
        %v4567 = vadd.f32 %v3820, %v4535
        %v4568 = vadd.f32 %v3821, %v4538
        %v4569 = vadd.f32 %v3822, %v4543
        %v4570 = vadd.f32 %v3823, %v4546
        %v4571 = vadd.f32 %v3824, %v4551
        %v4572 = vadd.f32 %v3825, %v4554
        %4573 = vst [vmem:[#allocation13] sm:$0xff] %v4557
        %4574 = vst [vmem:[#allocation13 + $0x8] sm:$0xff] %v4558
        %4575 = vst [vmem:[#allocation13 + $0x10] sm:$0xff] %v4559
        %4576 = vst [vmem:[#allocation13 + $0x18] sm:$0xff] %v4560
        %4577 = vst [vmem:[#allocation13 + $0x20] sm:$0xff] %v4561
        %4578 = vst [vmem:[#allocation13 + $0x28] sm:$0xff] %v4562
        %4579 = vst [vmem:[#allocation13 + $0x30] sm:$0xff] %v4563
        %4580 = vst [vmem:[#allocation13 + $0x38] sm:$0xff] %v4564
        %4581 = vst [vmem:[#allocation13 + $0x40] sm:$0xff] %v4565
        %4582 = vst [vmem:[#allocation13 + $0x48] sm:$0xff] %v4566
        %4583 = vst [vmem:[#allocation13 + $0x50] sm:$0xff] %v4567
        %4584 = vst [vmem:[#allocation13 + $0x58] sm:$0xff] %v4568
        %4585 = vst [vmem:[#allocation13 + $0x60] sm:$0xff] %v4569
        %4586 = vst [vmem:[#allocation13 + $0x68] sm:$0xff] %v4570
        %4587 = vst [vmem:[#allocation13 + $0x70] sm:$0xff] %v4571
        %4588 = vst [vmem:[#allocation13 + $0x78] sm:$0xff] %v4572
        // Predicated region
        $region120: #{tpu_custom_call.1} parent=83 // pred_check
          %p4589 = pneg %p444
        $region121: #{tpu_custom_call.1} parent=83 // pred_check_branch
          %4591 = sbr.rel (%p4589) target = $region123
        $region122: #{tpu_custom_call.1} parent=83 // pred_region
          %s4593 = ssub.s32 2048, 2048
          %4594 = vsyncadd [#allocation6], %s4593
          %s4595 = sshll.u32 [#allocation13], 4
          %s4596 = int_to_ptr.vmem [resolvable:$true] %s4595
          %4601 = dma.vmem_to_hbm [thread:$0]  %s4596, 2048, %s17, [#allocation6], 128, 128, 8
        $region123: #{tpu_custom_call.1} parent=83 // pred_fallthru
          _
        // Predicated region
        $region124: #{tpu_custom_call.1} parent=83 // pred_check
          %p4602 = pneg %p444
        $region125: #{tpu_custom_call.1} parent=83 // pred_check_branch
          %4604 = sbr.rel (%p4602) target = $region127
        $region126: #{tpu_custom_call.1} parent=83 // pred_region
          %4605 = dma.done [#allocation6], 2048
        $region127: #{tpu_custom_call.1} parent=83 // pred_fallthru
          _
      $region84: #{tpu_custom_call.1} parent=5 // pred_fallthru
        _
      %p4606 = scmp.le.s32.totalorder 2, %s30
      // Predicated region
      $region128: #{tpu_custom_call.1} parent=5 // pred_check
        %p4607 = pneg %p4606
      $region129: #{tpu_custom_call.1} parent=5 // pred_check_branch
        %4609 = sbr.rel (%p4607) target = $region131
      $region130: #{tpu_custom_call.1} parent=5 // pred_region
        %s4610 = ssub.s32 %s30, 2
      $region131: #{tpu_custom_call.1} parent=5 // pred_fallthru
        _
    $region6: #{tpu_custom_call.1} parent=1 // loop_footer
      %s34 = sadd.s32 1, %s30
    $region7: #{tpu_custom_call.1} parent=1 // loop_footer_branch
      %29 = sbr.rel target = $region3
    $region8: #{tpu_custom_call.1} parent=1 // loop_exit
      _
    %4611 = vsyncpa [#allocation5], 1
    %s4612 = scalar_lea.sflag [#allocation5], 1
    %4613 = vsyncpa %s4612, 1
    %4614 = vsyncpa [#allocation8], 1
    %4615 = vsyncpa [#allocation6], 1
    %s4616 = scalar_lea.sflag [#allocation6], 1
    %4617 = vsyncpa %s4616, 1

</llo_original>
